<compile_context>
chip_gen: v7x
topology: tpu7x:2x2x1
jax: 0.10.0
libtpu: 0.0.40
codegen_flags: <defaults>
</compile_context>

<pallas_src>
import functools

import jax
import jax.numpy as jnp
from jax.experimental import pallas as pl
from jax.experimental.pallas import tpu as pltpu

KSIZE = 5       # Conv1d kernel size
PAD = 2         # Conv1d padding
C_IN = 2        # input channels (fixed by module)
C_HID = 32      # hidden channels
N_CLS = 2       # fc output features
HALO = 8        # sublane-aligned halo rows per sample in the conv2 scratch (>= PAD)


def resnet1d_kernel(x_ref, w1_ref, b1_ref, w2_ref, b2_ref, wfc_ref, bfc_ref,
                    out_ref, hpad_ref, *, nb, l):
    """One batch tile (nb samples, full length L) per grid step.

    x_ref    : (nb, L + 2*PAD, C_IN)        zero-padded input, NLC layout
    w1_ref   : (K, C_IN, C_HID)             conv1 weight, tap-major
    b1_ref   : (1, C_HID)
    w2_ref   : (K, C_HID, C_HID)            conv2 weight, tap-major
    b2_ref   : (1, C_HID)
    wfc_ref  : (C_HID, N_CLS)               fc weight (transposed)
    bfc_ref  : (1, N_CLS)
    out_ref  : (nb, N_CLS)
    hpad_ref : (nb, HALO + L + HALO, C_HID) VMEM scratch for the conv2 halo
    """
    rows = nb * l
    w1_all = w1_ref[...]                     # (K, C_IN, C_HID), read once
    w2_all = w2_ref[...]                     # (K, C_HID, C_HID), read once

    # ---- conv1: 5 accumulating per-tap matmuls over the padded input ----
    acc1 = jnp.zeros((rows, C_HID), jnp.float32)
    for k in range(KSIZE):
        tap = x_ref[:, k:k + l, :].reshape(rows, C_IN)
        acc1 = acc1 + jnp.dot(tap, w1_all[k],
                              preferred_element_type=jnp.float32)
    h1 = jnp.maximum(acc1 + b1_ref[...], 0.0)                    # (rows, C_HID)

    # ---- conv2 halo scratch: zero only the (aligned) halo row blocks, then
    #      one aligned interior store of h1.  Must re-zero every grid step
    #      (scratch is uninitialized / persistent, and with "parallel"
    #      semantics each core has its own copy).
    hpad_ref[:, :HALO, :] = jnp.zeros((nb, HALO, C_HID), jnp.float32)
    hpad_ref[:, HALO + l:, :] = jnp.zeros((nb, HALO, C_HID), jnp.float32)
    hpad_ref[:, HALO:HALO + l, :] = h1.reshape(nb, l, C_HID)

    # ---- conv2: 5 accumulating per-tap matmuls + bias + residual + ReLU ----
    h2 = h1 + b2_ref[...]
    for k in range(KSIZE):
        off = HALO - PAD + k
        tap = hpad_ref[:, off:off + l, :].reshape(rows, C_HID)
        h2 = h2 + jnp.dot(tap, w2_all[k],
                          preferred_element_type=jnp.float32)
    h2 = jnp.maximum(h2, 0.0)                                     # (rows, C_HID)

    # ---- fc then pool (mathematically identical to pool-then-fc): the
    #      cross-sublane reduction is over 2 lanes instead of 32.
    logits = jnp.dot(h2, wfc_ref[...],
                     preferred_element_type=jnp.float32)          # (rows, N_CLS)
    pooled = jnp.mean(logits.reshape(nb, l, N_CLS), axis=1)       # (nb, N_CLS)
    out_ref[...] = pooled + bfc_ref[...]


def _pick_batch_tile(n, l, target_rows=256):
    """Largest multiple-of-8 divisor of n with nb*l <= target_rows, else n."""
    best = None
    for nb in range(8, n + 1, 8):
        if n % nb == 0 and nb * l <= target_rows:
            best = nb
    return best if best is not None else n


@jax.jit
def resnet1d_forward(x_ncl, params):
    """x_ncl: (N, C_IN, L) float32, PyTorch NCL layout."""
    w1, b1, w2, b2, wfc, bfc = params
    N, _, L = x_ncl.shape
    nb = _pick_batch_tile(N, L)
    assert N % nb == 0
    grid = (N // nb,)
    lp = L + 2 * PAD

    # Wrapper glue (fused under this jit): layout change + PAD-row zero pad
    # (no 5x im2col replication of x in HBM) and weight re-layout so the
    # kernel's per-tap slices are (C_in, C_out) matrices.
    x_nlc = jnp.transpose(x_ncl, (0, 2, 1))                       # (N, L, C_IN)
    x_pad = jnp.pad(x_nlc, ((0, 0), (PAD, PAD), (0, 0)))          # (N, Lp, C_IN)

    w1c = jnp.transpose(w1, (2, 1, 0))                            # (K, C_IN, C_HID)
    w2c = jnp.transpose(w2, (2, 1, 0))                            # (K, C_HID, C_HID)
    wfc_t = jnp.transpose(wfc)                                    # (C_HID, N_CLS)
    b1r = b1.reshape(1, C_HID)
    b2r = b2.reshape(1, C_HID)
    bfcr = bfc.reshape(1, N_CLS)

    kernel = functools.partial(resnet1d_kernel, nb=nb, l=L)
    return pl.pallas_call(
        kernel,
        out_shape=jax.ShapeDtypeStruct((N, N_CLS), jnp.float32),
        grid=grid,
        in_specs=[
            pl.BlockSpec((nb, lp, C_IN), lambda i: (i, 0, 0)),
            pl.BlockSpec((KSIZE, C_IN, C_HID), lambda i: (0, 0, 0)),
            pl.BlockSpec((1, C_HID), lambda i: (0, 0)),
            pl.BlockSpec((KSIZE, C_HID, C_HID), lambda i: (0, 0, 0)),
            pl.BlockSpec((1, C_HID), lambda i: (0, 0)),
            pl.BlockSpec((C_HID, N_CLS), lambda i: (0, 0)),
            pl.BlockSpec((1, N_CLS), lambda i: (0, 0)),
        ],
        out_specs=pl.BlockSpec((nb, N_CLS), lambda i: (i, 0)),
        scratch_shapes=[pltpu.VMEM((nb, HALO + L + HALO, C_HID), jnp.float32)],
        compiler_params=pltpu.CompilerParams(
            dimension_semantics=("parallel",)),
    )(x_pad, w1c, b1r, w2c, b2r, wfc_t, bfcr)


def reference(x_ncl, params):
    """Pure-JAX reference mirroring the PyTorch forward (NCL layout)."""
    w1, b1, w2, b2, wfc, bfc = params
    y = jax.lax.conv_general_dilated(
        x_ncl, w1, window_strides=(1,), padding=[(PAD, PAD)],
        dimension_numbers=("NCH", "OIH", "NCH"))
    y = jax.nn.relu(y + b1[None, :, None])
    z = jax.lax.conv_general_dilated(
        y, w2, window_strides=(1,), padding=[(PAD, PAD)],
        dimension_numbers=("NCH", "OIH", "NCH"))
    z = jax.nn.relu(z + b2[None, :, None] + y)
    p = jnp.mean(z, axis=-1)                                      # (N, C_HID)
    return p @ wfc.T + bfc


if __name__ == "__main__":
    key = jax.random.PRNGKey(0)
    ks = jax.random.split(key, 7)
    N, L = 32, 16      # small shapes; L a multiple of 8 for aligned stores

    # Deterministic synthetic parameters (PyTorch layouts):
    #   conv weight (C_out, C_in, K), conv bias (C_out,),
    #   fc weight (out, in), fc bias (out,)
    x = jax.random.normal(ks[0], (N, C_IN, L), jnp.float32)
    w1 = jax.random.normal(ks[1], (C_HID, C_IN, KSIZE), jnp.float32) * 0.30
    b1 = jax.random.normal(ks[2], (C_HID,), jnp.float32) * 0.10
    w2 = jax.random.normal(ks[3], (C_HID, C_HID, KSIZE), jnp.float32) * 0.10
    b2 = jax.random.normal(ks[4], (C_HID,), jnp.float32) * 0.10
    wfc = jax.random.normal(ks[5], (N_CLS, C_HID), jnp.float32) * 0.20
    bfc = jax.random.normal(ks[6], (N_CLS,), jnp.float32) * 0.10
    params = (w1, b1, w2, b2, wfc, bfc)

    out = resnet1d_forward(x, params)
    out = jax.block_until_ready(out)

    ref = reference(x, params)
    assert out.shape == (N, N_CLS), out.shape
    assert jnp.allclose(out, ref, atol=1e-4, rtol=1e-4), (out, ref)
    print("KERNEL_OK")
</pallas_src>

<mosaic_0001>
module attributes {stable_mosaic.version = 11 : i64} {
  func.func @resnet1d_kernel(%arg0: i32, %arg1: memref<16x20x2xf32, #tpu.memory_space<vmem>>, %arg2: memref<5x2x32xf32, #tpu.memory_space<vmem>>, %arg3: memref<1x32xf32, #tpu.memory_space<vmem>>, %arg4: memref<5x32x32xf32, #tpu.memory_space<vmem>>, %arg5: memref<1x32xf32, #tpu.memory_space<vmem>>, %arg6: memref<32x2xf32, #tpu.memory_space<vmem>>, %arg7: memref<1x2xf32, #tpu.memory_space<vmem>>, %arg8: memref<16x2xf32, #tpu.memory_space<vmem>>, %arg9: memref<16x32x32xf32, #tpu.memory_space<vmem>>) attributes {dimension_semantics = [#tpu.dimension_semantics<parallel>], iteration_bounds = array<i64: 2>, scalar_prefetch = 0 : i64, scratch_operands = 1 : i64, tpu.core_type = #tpu.core_type<tc>, window_params = [{transform_indices = @transform_0, window_bounds = array<i64: 16, 20, 2>}, {pipeline_mode = #tpu.pipeline_mode<synchronous>, transform_indices = @transform_1, window_bounds = array<i64: 5, 2, 32>}, {pipeline_mode = #tpu.pipeline_mode<synchronous>, transform_indices = @transform_2, window_bounds = array<i64: 1, 32>}, {pipeline_mode = #tpu.pipeline_mode<synchronous>, transform_indices = @transform_3, window_bounds = array<i64: 5, 32, 32>}, {pipeline_mode = #tpu.pipeline_mode<synchronous>, transform_indices = @transform_4, window_bounds = array<i64: 1, 32>}, {pipeline_mode = #tpu.pipeline_mode<synchronous>, transform_indices = @transform_5, window_bounds = array<i64: 32, 2>}, {pipeline_mode = #tpu.pipeline_mode<synchronous>, transform_indices = @transform_6, window_bounds = array<i64: 1, 2>}, {transform_indices = @transform_7, window_bounds = array<i64: 16, 2>}]} {
    %c0 = arith.constant 0 : index
    %c0_0 = arith.constant 0 : index
    %c0_1 = arith.constant 0 : index
    %0 = vector.load %arg2[%c0, %c0_0, %c0_1] : memref<5x2x32xf32, #tpu.memory_space<vmem>>, vector<5x2x32xf32>
    %c0_2 = arith.constant 0 : index
    %c0_3 = arith.constant 0 : index
    %c0_4 = arith.constant 0 : index
    %1 = vector.load %arg4[%c0_2, %c0_3, %c0_4] : memref<5x32x32xf32, #tpu.memory_space<vmem>>, vector<5x32x32xf32>
    %cst = arith.constant 0.000000e+00 : f32
    %2 = vector.broadcast %cst : f32 to vector<256x32xf32>
    %c0_5 = arith.constant 0 : index
    %c0_6 = arith.constant 0 : index
    %c0_7 = arith.constant 0 : index
    %3 = vector.load %arg1[%c0_5, %c0_6, %c0_7] : memref<16x20x2xf32, #tpu.memory_space<vmem>>, vector<16x16x2xf32>
    %4 = vector.shape_cast %3 : vector<16x16x2xf32> to vector<256x2xf32>
    %5 = vector.extract_strided_slice %0 {offsets = [0, 0, 0], sizes = [1, 2, 32], strides = [1, 1, 1]} : vector<5x2x32xf32> to vector<1x2x32xf32>
    %6 = vector.shape_cast %5 : vector<1x2x32xf32> to vector<2x32xf32>
    %cst_8 = arith.constant dense<0.000000e+00> : vector<256x32xf32>
    %7 = tpu.matmul %4, %6, %cst_8 {dimension_numbers = #tpu.dot_dimension_numbers<[1], [0], [0], [1], [0, 0, 1, 1], [], []>} : vector<256x2xf32>, vector<2x32xf32>, vector<256x32xf32> -> vector<256x32xf32>
    %8 = arith.addf %2, %7 : vector<256x32xf32>
    %c0_9 = arith.constant 0 : index
    %c1 = arith.constant 1 : index
    %c0_10 = arith.constant 0 : index
    %9 = vector.load %arg1[%c0_9, %c1, %c0_10] : memref<16x20x2xf32, #tpu.memory_space<vmem>>, vector<16x16x2xf32>
    %10 = vector.shape_cast %9 : vector<16x16x2xf32> to vector<256x2xf32>
    %11 = vector.extract_strided_slice %0 {offsets = [1, 0, 0], sizes = [1, 2, 32], strides = [1, 1, 1]} : vector<5x2x32xf32> to vector<1x2x32xf32>
    %12 = vector.shape_cast %11 : vector<1x2x32xf32> to vector<2x32xf32>
    %cst_11 = arith.constant dense<0.000000e+00> : vector<256x32xf32>
    %13 = tpu.matmul %10, %12, %cst_11 {dimension_numbers = #tpu.dot_dimension_numbers<[1], [0], [0], [1], [0, 0, 1, 1], [], []>} : vector<256x2xf32>, vector<2x32xf32>, vector<256x32xf32> -> vector<256x32xf32>
    %14 = arith.addf %8, %13 : vector<256x32xf32>
    %c0_12 = arith.constant 0 : index
    %c2 = arith.constant 2 : index
    %c0_13 = arith.constant 0 : index
    %15 = vector.load %arg1[%c0_12, %c2, %c0_13] : memref<16x20x2xf32, #tpu.memory_space<vmem>>, vector<16x16x2xf32>
    %16 = vector.shape_cast %15 : vector<16x16x2xf32> to vector<256x2xf32>
    %17 = vector.extract_strided_slice %0 {offsets = [2, 0, 0], sizes = [1, 2, 32], strides = [1, 1, 1]} : vector<5x2x32xf32> to vector<1x2x32xf32>
    %18 = vector.shape_cast %17 : vector<1x2x32xf32> to vector<2x32xf32>
    %cst_14 = arith.constant dense<0.000000e+00> : vector<256x32xf32>
    %19 = tpu.matmul %16, %18, %cst_14 {dimension_numbers = #tpu.dot_dimension_numbers<[1], [0], [0], [1], [0, 0, 1, 1], [], []>} : vector<256x2xf32>, vector<2x32xf32>, vector<256x32xf32> -> vector<256x32xf32>
    %20 = arith.addf %14, %19 : vector<256x32xf32>
    %c0_15 = arith.constant 0 : index
    %c3 = arith.constant 3 : index
    %c0_16 = arith.constant 0 : index
    %21 = vector.load %arg1[%c0_15, %c3, %c0_16] : memref<16x20x2xf32, #tpu.memory_space<vmem>>, vector<16x16x2xf32>
    %22 = vector.shape_cast %21 : vector<16x16x2xf32> to vector<256x2xf32>
    %23 = vector.extract_strided_slice %0 {offsets = [3, 0, 0], sizes = [1, 2, 32], strides = [1, 1, 1]} : vector<5x2x32xf32> to vector<1x2x32xf32>
    %24 = vector.shape_cast %23 : vector<1x2x32xf32> to vector<2x32xf32>
    %cst_17 = arith.constant dense<0.000000e+00> : vector<256x32xf32>
    %25 = tpu.matmul %22, %24, %cst_17 {dimension_numbers = #tpu.dot_dimension_numbers<[1], [0], [0], [1], [0, 0, 1, 1], [], []>} : vector<256x2xf32>, vector<2x32xf32>, vector<256x32xf32> -> vector<256x32xf32>
    %26 = arith.addf %20, %25 : vector<256x32xf32>
    %c0_18 = arith.constant 0 : index
    %c4 = arith.constant 4 : index
    %c0_19 = arith.constant 0 : index
    %27 = vector.load %arg1[%c0_18, %c4, %c0_19] : memref<16x20x2xf32, #tpu.memory_space<vmem>>, vector<16x16x2xf32>
    %28 = vector.shape_cast %27 : vector<16x16x2xf32> to vector<256x2xf32>
    %29 = vector.extract_strided_slice %0 {offsets = [4, 0, 0], sizes = [1, 2, 32], strides = [1, 1, 1]} : vector<5x2x32xf32> to vector<1x2x32xf32>
    %30 = vector.shape_cast %29 : vector<1x2x32xf32> to vector<2x32xf32>
    %cst_20 = arith.constant dense<0.000000e+00> : vector<256x32xf32>
    %31 = tpu.matmul %28, %30, %cst_20 {dimension_numbers = #tpu.dot_dimension_numbers<[1], [0], [0], [1], [0, 0, 1, 1], [], []>} : vector<256x2xf32>, vector<2x32xf32>, vector<256x32xf32> -> vector<256x32xf32>
    %32 = arith.addf %26, %31 : vector<256x32xf32>
    %c0_21 = arith.constant 0 : index
    %c0_22 = arith.constant 0 : index
    %33 = vector.load %arg3[%c0_21, %c0_22] : memref<1x32xf32, #tpu.memory_space<vmem>>, vector<1x32xf32>
    %34 = vector.broadcast %33 : vector<1x32xf32> to vector<256x32xf32>
    %35 = arith.addf %32, %34 : vector<256x32xf32>
    %cst_23 = arith.constant 0.000000e+00 : f32
    %36 = vector.broadcast %cst_23 : f32 to vector<256x32xf32>
    %37 = arith.maximumf %35, %36 : vector<256x32xf32>
    %cst_24 = arith.constant 0.000000e+00 : f32
    %38 = vector.broadcast %cst_24 : f32 to vector<16x8x32xf32>
    %c0_25 = arith.constant 0 : index
    %c0_26 = arith.constant 0 : index
    %c0_27 = arith.constant 0 : index
    %39 = vector.load %arg9[%c0_25, %c0_26, %c0_27] : memref<16x32x32xf32, #tpu.memory_space<vmem>>, vector<16x8x32xf32>
    tpu.vector_store %arg9[%c0_25, %c0_26, %c0_27], %38 {strides = array<i32>} : memref<16x32x32xf32, #tpu.memory_space<vmem>>, vector<16x8x32xf32>,
    %cst_28 = arith.constant 0.000000e+00 : f32
    %40 = vector.broadcast %cst_28 : f32 to vector<16x8x32xf32>
    %c0_29 = arith.constant 0 : index
    %c24 = arith.constant 24 : index
    %c0_30 = arith.constant 0 : index
    %41 = vector.load %arg9[%c0_29, %c24, %c0_30] : memref<16x32x32xf32, #tpu.memory_space<vmem>>, vector<16x8x32xf32>
    tpu.vector_store %arg9[%c0_29, %c24, %c0_30], %40 {strides = array<i32>} : memref<16x32x32xf32, #tpu.memory_space<vmem>>, vector<16x8x32xf32>,
    %42 = vector.shape_cast %37 : vector<256x32xf32> to vector<16x16x32xf32>
    %c0_31 = arith.constant 0 : index
    %c8 = arith.constant 8 : index
    %c0_32 = arith.constant 0 : index
    %43 = vector.load %arg9[%c0_31, %c8, %c0_32] : memref<16x32x32xf32, #tpu.memory_space<vmem>>, vector<16x16x32xf32>
    tpu.vector_store %arg9[%c0_31, %c8, %c0_32], %42 {strides = array<i32>} : memref<16x32x32xf32, #tpu.memory_space<vmem>>, vector<16x16x32xf32>,
    %c0_33 = arith.constant 0 : index
    %c0_34 = arith.constant 0 : index
    %44 = vector.load %arg5[%c0_33, %c0_34] : memref<1x32xf32, #tpu.memory_space<vmem>>, vector<1x32xf32>
    %45 = vector.broadcast %44 : vector<1x32xf32> to vector<256x32xf32>
    %46 = arith.addf %37, %45 : vector<256x32xf32>
    %c0_35 = arith.constant 0 : index
    %c6 = arith.constant 6 : index
    %c0_36 = arith.constant 0 : index
    %47 = vector.load %arg9[%c0_35, %c6, %c0_36] : memref<16x32x32xf32, #tpu.memory_space<vmem>>, vector<16x16x32xf32>
    %48 = vector.shape_cast %47 : vector<16x16x32xf32> to vector<256x32xf32>
    %49 = vector.extract_strided_slice %1 {offsets = [0, 0, 0], sizes = [1, 32, 32], strides = [1, 1, 1]} : vector<5x32x32xf32> to vector<1x32x32xf32>
    %50 = vector.shape_cast %49 : vector<1x32x32xf32> to vector<32x32xf32>
    %cst_37 = arith.constant dense<0.000000e+00> : vector<256x32xf32>
    %51 = tpu.matmul %48, %50, %cst_37 {dimension_numbers = #tpu.dot_dimension_numbers<[1], [0], [0], [1], [0, 0, 1, 1], [], []>} : vector<256x32xf32>, vector<32x32xf32>, vector<256x32xf32> -> vector<256x32xf32>
    %52 = arith.addf %46, %51 : vector<256x32xf32>
    %c0_38 = arith.constant 0 : index
    %c7 = arith.constant 7 : index
    %c0_39 = arith.constant 0 : index
    %53 = vector.load %arg9[%c0_38, %c7, %c0_39] : memref<16x32x32xf32, #tpu.memory_space<vmem>>, vector<16x16x32xf32>
    %54 = vector.shape_cast %53 : vector<16x16x32xf32> to vector<256x32xf32>
    %55 = vector.extract_strided_slice %1 {offsets = [1, 0, 0], sizes = [1, 32, 32], strides = [1, 1, 1]} : vector<5x32x32xf32> to vector<1x32x32xf32>
    %56 = vector.shape_cast %55 : vector<1x32x32xf32> to vector<32x32xf32>
    %cst_40 = arith.constant dense<0.000000e+00> : vector<256x32xf32>
    %57 = tpu.matmul %54, %56, %cst_40 {dimension_numbers = #tpu.dot_dimension_numbers<[1], [0], [0], [1], [0, 0, 1, 1], [], []>} : vector<256x32xf32>, vector<32x32xf32>, vector<256x32xf32> -> vector<256x32xf32>
    %58 = arith.addf %52, %57 : vector<256x32xf32>
    %c0_41 = arith.constant 0 : index
    %c8_42 = arith.constant 8 : index
    %c0_43 = arith.constant 0 : index
    %59 = vector.load %arg9[%c0_41, %c8_42, %c0_43] : memref<16x32x32xf32, #tpu.memory_space<vmem>>, vector<16x16x32xf32>
    %60 = vector.shape_cast %59 : vector<16x16x32xf32> to vector<256x32xf32>
    %61 = vector.extract_strided_slice %1 {offsets = [2, 0, 0], sizes = [1, 32, 32], strides = [1, 1, 1]} : vector<5x32x32xf32> to vector<1x32x32xf32>
    %62 = vector.shape_cast %61 : vector<1x32x32xf32> to vector<32x32xf32>
    %cst_44 = arith.constant dense<0.000000e+00> : vector<256x32xf32>
    %63 = tpu.matmul %60, %62, %cst_44 {dimension_numbers = #tpu.dot_dimension_numbers<[1], [0], [0], [1], [0, 0, 1, 1], [], []>} : vector<256x32xf32>, vector<32x32xf32>, vector<256x32xf32> -> vector<256x32xf32>
    %64 = arith.addf %58, %63 : vector<256x32xf32>
    %c0_45 = arith.constant 0 : index
    %c9 = arith.constant 9 : index
    %c0_46 = arith.constant 0 : index
    %65 = vector.load %arg9[%c0_45, %c9, %c0_46] : memref<16x32x32xf32, #tpu.memory_space<vmem>>, vector<16x16x32xf32>
    %66 = vector.shape_cast %65 : vector<16x16x32xf32> to vector<256x32xf32>
    %67 = vector.extract_strided_slice %1 {offsets = [3, 0, 0], sizes = [1, 32, 32], strides = [1, 1, 1]} : vector<5x32x32xf32> to vector<1x32x32xf32>
    %68 = vector.shape_cast %67 : vector<1x32x32xf32> to vector<32x32xf32>
    %cst_47 = arith.constant dense<0.000000e+00> : vector<256x32xf32>
    %69 = tpu.matmul %66, %68, %cst_47 {dimension_numbers = #tpu.dot_dimension_numbers<[1], [0], [0], [1], [0, 0, 1, 1], [], []>} : vector<256x32xf32>, vector<32x32xf32>, vector<256x32xf32> -> vector<256x32xf32>
    %70 = arith.addf %64, %69 : vector<256x32xf32>
    %c0_48 = arith.constant 0 : index
    %c10 = arith.constant 10 : index
    %c0_49 = arith.constant 0 : index
    %71 = vector.load %arg9[%c0_48, %c10, %c0_49] : memref<16x32x32xf32, #tpu.memory_space<vmem>>, vector<16x16x32xf32>
    %72 = vector.shape_cast %71 : vector<16x16x32xf32> to vector<256x32xf32>
    %73 = vector.extract_strided_slice %1 {offsets = [4, 0, 0], sizes = [1, 32, 32], strides = [1, 1, 1]} : vector<5x32x32xf32> to vector<1x32x32xf32>
    %74 = vector.shape_cast %73 : vector<1x32x32xf32> to vector<32x32xf32>
    %cst_50 = arith.constant dense<0.000000e+00> : vector<256x32xf32>
    %75 = tpu.matmul %72, %74, %cst_50 {dimension_numbers = #tpu.dot_dimension_numbers<[1], [0], [0], [1], [0, 0, 1, 1], [], []>} : vector<256x32xf32>, vector<32x32xf32>, vector<256x32xf32> -> vector<256x32xf32>
    %76 = arith.addf %70, %75 : vector<256x32xf32>
    %cst_51 = arith.constant 0.000000e+00 : f32
    %77 = vector.broadcast %cst_51 : f32 to vector<256x32xf32>
    %78 = arith.maximumf %76, %77 : vector<256x32xf32>
    %c0_52 = arith.constant 0 : index
    %c0_53 = arith.constant 0 : index
    %79 = vector.load %arg6[%c0_52, %c0_53] : memref<32x2xf32, #tpu.memory_space<vmem>>, vector<32x2xf32>
    %cst_54 = arith.constant dense<0.000000e+00> : vector<256x2xf32>
    %80 = tpu.matmul %78, %79, %cst_54 {dimension_numbers = #tpu.dot_dimension_numbers<[1], [0], [0], [1], [0, 0, 1, 1], [], []>} : vector<256x32xf32>, vector<32x2xf32>, vector<256x2xf32> -> vector<256x2xf32>
    %81 = vector.shape_cast %80 : vector<256x2xf32> to vector<16x16x2xf32>
    %cst_55 = arith.constant dense<0.000000e+00> : vector<16x2xf32>
    %82 = vector.multi_reduction <add>, %81, %cst_55 [1] : vector<16x16x2xf32> to vector<16x2xf32>
    %cst_56 = arith.constant 1.600000e+01 : f32
    %83 = vector.broadcast %cst_56 : f32 to vector<16x2xf32>
    %84 = arith.divf %82, %83 : vector<16x2xf32>
    %c0_57 = arith.constant 0 : index
    %c0_58 = arith.constant 0 : index
    %85 = vector.load %arg7[%c0_57, %c0_58] : memref<1x2xf32, #tpu.memory_space<vmem>>, vector<1x2xf32>
    %86 = vector.broadcast %85 : vector<1x2xf32> to vector<16x2xf32>
    %87 = arith.addf %84, %86 : vector<16x2xf32>
    %c0_59 = arith.constant 0 : index
    %c0_60 = arith.constant 0 : index
    %88 = vector.load %arg8[%c0_59, %c0_60] : memref<16x2xf32, #tpu.memory_space<vmem>>, vector<16x2xf32>
    tpu.vector_store %arg8[%c0_59, %c0_60], %87 {strides = array<i32>} : memref<16x2xf32, #tpu.memory_space<vmem>>, vector<16x2xf32>,
    return
  }
  func.func @transform_0(%arg0: i32) -> (i32, i32, i32) {
    %c0_i32 = arith.constant 0 : i32
    %c0_i32_0 = arith.constant 0 : i32
    %c0_i32_1 = arith.constant 0 : i32
    return %arg0, %c0_i32, %c0_i32_0 : i32, i32, i32
  }
  func.func @transform_1(%arg0: i32) -> (i32, i32, i32) {
    %c0_i32 = arith.constant 0 : i32
    %c0_i32_0 = arith.constant 0 : i32
    %c0_i32_1 = arith.constant 0 : i32
    %c0_i32_2 = arith.constant 0 : i32
    return %c0_i32, %c0_i32_0, %c0_i32_1 : i32, i32, i32
  }
  func.func @transform_2(%arg0: i32) -> (i32, i32) {
    %c0_i32 = arith.constant 0 : i32
    %c0_i32_0 = arith.constant 0 : i32
    %c0_i32_1 = arith.constant 0 : i32
    return %c0_i32, %c0_i32_0 : i32, i32
  }
  func.func @transform_3(%arg0: i32) -> (i32, i32, i32) {
    %c0_i32 = arith.constant 0 : i32
    %c0_i32_0 = arith.constant 0 : i32
    %c0_i32_1 = arith.constant 0 : i32
    %c0_i32_2 = arith.constant 0 : i32
    return %c0_i32, %c0_i32_0, %c0_i32_1 : i32, i32, i32
  }
  func.func @transform_4(%arg0: i32) -> (i32, i32) {
    %c0_i32 = arith.constant 0 : i32
    %c0_i32_0 = arith.constant 0 : i32
    %c0_i32_1 = arith.constant 0 : i32
    return %c0_i32, %c0_i32_0 : i32, i32
  }
  func.func @transform_5(%arg0: i32) -> (i32, i32) {
    %c0_i32 = arith.constant 0 : i32
    %c0_i32_0 = arith.constant 0 : i32
    %c0_i32_1 = arith.constant 0 : i32
    return %c0_i32, %c0_i32_0 : i32, i32
  }
  func.func @transform_6(%arg0: i32) -> (i32, i32) {
    %c0_i32 = arith.constant 0 : i32
    %c0_i32_0 = arith.constant 0 : i32
    %c0_i32_1 = arith.constant 0 : i32
    return %c0_i32, %c0_i32_0 : i32, i32
  }
  func.func @transform_7(%arg0: i32) -> (i32, i32) {
    %c0_i32 = arith.constant 0 : i32
    %c0_i32_0 = arith.constant 0 : i32
    return %arg0, %c0_i32 : i32, i32
  }
}

</mosaic_0001>

<llo_original>
// kernel: resnet1d_forward.1
$region0: #{resnet1d_forward.1}
  #allocation0 [shape = 'u32[]', space=smem, size = 0x4, offset = 0x4, fixed_abs, tag = 'smem constant byte address 0x4 - core index']
  #allocation1 [shape = 'u32[144,128]{1,0:T(1,128)}', space=vmem, size = 0x12000, scoped, tag = 'internal scratch']
  #allocation2 [shape = 'f32[16,32,32]{2,1,0:T(8,128)}', space=vmem, size = 0x40000, scoped, tag = 'scratch operand']
  %s0 = inlined_call_operand.vmem [shape: f32[32,20,2], index: 0, kind: input, shape index: {}]
  %s1 = inlined_call_operand.vmem [shape: f32[5,2,32], index: 1, kind: input, shape index: {}]
  %s2 = inlined_call_operand.vmem [shape: f32[1,32], index: 2, kind: input, shape index: {}]
  %s3 = inlined_call_operand.vmem [shape: f32[5,32,32], index: 3, kind: input, shape index: {}]
  %s4 = inlined_call_operand.vmem [shape: f32[1,32], index: 4, kind: input, shape index: {}]
  %s5 = inlined_call_operand.vmem [shape: f32[32,2], index: 5, kind: input, shape index: {}]
  %s6 = inlined_call_operand.vmem [shape: f32[1,2], index: 6, kind: input, shape index: {}]
  %s7 = inlined_call_operand.vmem [shape: f32[32,2], index: 7, kind: output, shape index: {}]
  %s8 = sld [smem:[#allocation0]]
  $region61: #{resnet1d_forward.1} parent=0
    _
  %s10 = ssub.s32 1, %s8
  %s11 = scalar_select 0, %s10, %s8
  loop: start=0, step=1, limit=4
  $region2: #{resnet1d_forward.1} parent=0 // loop_pre_header
    _
  $region3: #{resnet1d_forward.1} parent=0 // loop_header
    %s13 = sphi 0, %s17
    %p14 = scmp.ge.s32.totalorder %s13, 4
    %s23 = sphi 0, %s25
    %s26 = sphi 0, %s23
    %s27 = sphi 0, %s26
    %s43 = sphi 0, %s27
    %s47 = sphi 0, %s47
    %s49 = sphi 0, %s47
    %s50 = sphi 0, %s49
    %s64 = sphi 0, %s50
    %s68 = sphi 0, %s68
    %s70 = sphi 0, %s68
    %s71 = sphi 0, %s70
    %s85 = sphi 0, %s71
    %s89 = sphi 0, %s89
    %s91 = sphi 0, %s89
    %s92 = sphi 0, %s91
    %s106 = sphi 0, %s92
    %s110 = sphi 0, %s110
    %s112 = sphi 0, %s110
    %s113 = sphi 0, %s112
    %s127 = sphi 0, %s113
    %s131 = sphi 0, %s131
    %s133 = sphi 0, %s131
    %s134 = sphi 0, %s133
    %s148 = sphi 0, %s134
    %s152 = sphi 0, %s152
    %s154 = sphi 0, %s152
    %s155 = sphi 0, %s154
    %s169 = sphi 0, %s155
    %s175 = sphi 0, %s177
    %s178 = sphi 0, %s175
    %s179 = sphi 0, %s178
    %s195 = sphi 0, %s179
  $region4: #{resnet1d_forward.1} parent=0 // loop_header_branch
    %16 = sbr.rel (%p14) target = $region8
  $region5: #{resnet1d_forward.1} parent=0 // loop_body
    %s18 = ssub.s32 %s13, 1
    %s19 = ssub.s32 %s13, 2
    %s20 = sadd.s32 %s13, 1
    %s21 = ssub.s32 %s13, %s20
    %p22 = scmp.eq.s32.totalorder %s21, 0
    %s24 = sadd.s32 %s23, 1
    %s25 = scalar_select %p22, %s23, %s24
    %p28 = pneg %p22
    %p29 = scmp.eq.s32.totalorder %s13, 1
    %p30 = por %p28, %p29
    %p31 = scmp.ne.s32.totalorder %s23, %s26
    %p32 = scmp.eq.s32.totalorder %s13, 0
    %p33 = por %p31, %p32
    %p34 = scmp.ne.s32.totalorder %s23, %s26
    %p35 = scmp.eq.s32.totalorder %s18, 1
    %p36 = por %p34, %p35
    %p37 = scmp.ne.s32.totalorder %s26, %s27
    %p38 = scmp.eq.s32.totalorder %s18, 0
    %p39 = por %p37, %p38
    %p40 = scmp.ne.s32.totalorder %s26, %s27
    %p41 = scmp.eq.s32.totalorder %s19, 1
    %p42 = por %p40, %p41
    %p44 = scmp.ne.s32.totalorder %s27, %s43
    %p45 = scmp.eq.s32.totalorder %s19, 0
    %p46 = por %p44, %p45
    %s48 = sadd.s32 %s47, 1
    %p51 = scmp.eq.s32.totalorder %s13, 1
    %p52 = scmp.ne.s32.totalorder %s47, %s49
    %p53 = scmp.eq.s32.totalorder %s13, 0
    %p54 = por %p52, %p53
    %p55 = scmp.ne.s32.totalorder %s47, %s49
    %p56 = scmp.eq.s32.totalorder %s18, 1
    %p57 = por %p55, %p56
    %p58 = scmp.ne.s32.totalorder %s49, %s50
    %p59 = scmp.eq.s32.totalorder %s18, 0
    %p60 = por %p58, %p59
    %p61 = scmp.ne.s32.totalorder %s49, %s50
    %p62 = scmp.eq.s32.totalorder %s19, 1
    %p63 = por %p61, %p62
    %p65 = scmp.ne.s32.totalorder %s50, %s64
    %p66 = scmp.eq.s32.totalorder %s19, 0
    %p67 = por %p65, %p66
    %s69 = sadd.s32 %s68, 1
    %p72 = scmp.eq.s32.totalorder %s13, 1
    %p73 = scmp.ne.s32.totalorder %s68, %s70
    %p74 = scmp.eq.s32.totalorder %s13, 0
    %p75 = por %p73, %p74
    %p76 = scmp.ne.s32.totalorder %s68, %s70
    %p77 = scmp.eq.s32.totalorder %s18, 1
    %p78 = por %p76, %p77
    %p79 = scmp.ne.s32.totalorder %s70, %s71
    %p80 = scmp.eq.s32.totalorder %s18, 0
    %p81 = por %p79, %p80
    %p82 = scmp.ne.s32.totalorder %s70, %s71
    %p83 = scmp.eq.s32.totalorder %s19, 1
    %p84 = por %p82, %p83
    %p86 = scmp.ne.s32.totalorder %s71, %s85
    %p87 = scmp.eq.s32.totalorder %s19, 0
    %p88 = por %p86, %p87
    %s90 = sadd.s32 %s89, 1
    %p93 = scmp.eq.s32.totalorder %s13, 1
    %p94 = scmp.ne.s32.totalorder %s89, %s91
    %p95 = scmp.eq.s32.totalorder %s13, 0
    %p96 = por %p94, %p95
    %p97 = scmp.ne.s32.totalorder %s89, %s91
    %p98 = scmp.eq.s32.totalorder %s18, 1
    %p99 = por %p97, %p98
    %p100 = scmp.ne.s32.totalorder %s91, %s92
    %p101 = scmp.eq.s32.totalorder %s18, 0
    %p102 = por %p100, %p101
    %p103 = scmp.ne.s32.totalorder %s91, %s92
    %p104 = scmp.eq.s32.totalorder %s19, 1
    %p105 = por %p103, %p104
    %p107 = scmp.ne.s32.totalorder %s92, %s106
    %p108 = scmp.eq.s32.totalorder %s19, 0
    %p109 = por %p107, %p108
    %s111 = sadd.s32 %s110, 1
    %p114 = scmp.eq.s32.totalorder %s13, 1
    %p115 = scmp.ne.s32.totalorder %s110, %s112
    %p116 = scmp.eq.s32.totalorder %s13, 0
    %p117 = por %p115, %p116
    %p118 = scmp.ne.s32.totalorder %s110, %s112
    %p119 = scmp.eq.s32.totalorder %s18, 1
    %p120 = por %p118, %p119
    %p121 = scmp.ne.s32.totalorder %s112, %s113
    %p122 = scmp.eq.s32.totalorder %s18, 0
    %p123 = por %p121, %p122
    %p124 = scmp.ne.s32.totalorder %s112, %s113
    %p125 = scmp.eq.s32.totalorder %s19, 1
    %p126 = por %p124, %p125
    %p128 = scmp.ne.s32.totalorder %s113, %s127
    %p129 = scmp.eq.s32.totalorder %s19, 0
    %p130 = por %p128, %p129
    %s132 = sadd.s32 %s131, 1
    %p135 = scmp.eq.s32.totalorder %s13, 1
    %p136 = scmp.ne.s32.totalorder %s131, %s133
    %p137 = scmp.eq.s32.totalorder %s13, 0
    %p138 = por %p136, %p137
    %p139 = scmp.ne.s32.totalorder %s131, %s133
    %p140 = scmp.eq.s32.totalorder %s18, 1
    %p141 = por %p139, %p140
    %p142 = scmp.ne.s32.totalorder %s133, %s134
    %p143 = scmp.eq.s32.totalorder %s18, 0
    %p144 = por %p142, %p143
    %p145 = scmp.ne.s32.totalorder %s133, %s134
    %p146 = scmp.eq.s32.totalorder %s19, 1
    %p147 = por %p145, %p146
    %p149 = scmp.ne.s32.totalorder %s134, %s148
    %p150 = scmp.eq.s32.totalorder %s19, 0
    %p151 = por %p149, %p150
    %s153 = sadd.s32 %s152, 1
    %p156 = scmp.eq.s32.totalorder %s13, 1
    %p157 = scmp.ne.s32.totalorder %s152, %s154
    %p158 = scmp.eq.s32.totalorder %s13, 0
    %p159 = por %p157, %p158
    %p160 = scmp.ne.s32.totalorder %s152, %s154
    %p161 = scmp.eq.s32.totalorder %s18, 1
    %p162 = por %p160, %p161
    %p163 = scmp.ne.s32.totalorder %s154, %s155
    %p164 = scmp.eq.s32.totalorder %s18, 0
    %p165 = por %p163, %p164
    %p166 = scmp.ne.s32.totalorder %s154, %s155
    %p167 = scmp.eq.s32.totalorder %s19, 1
    %p168 = por %p166, %p167
    %p170 = scmp.ne.s32.totalorder %s155, %s169
    %p171 = scmp.eq.s32.totalorder %s19, 0
    %p172 = por %p170, %p171
    %s173 = ssub.s32 %s13, %s20
    %p174 = scmp.eq.s32.totalorder %s173, 0
    %s176 = sadd.s32 %s175, 1
    %s177 = scalar_select %p174, %s175, %s176
    %p180 = pneg %p174
    %p181 = scmp.eq.s32.totalorder %s13, 1
    %p182 = por %p180, %p181
    %p183 = scmp.ne.s32.totalorder %s175, %s178
    %p184 = scmp.eq.s32.totalorder %s13, 0
    %p185 = por %p183, %p184
    %p186 = scmp.ne.s32.totalorder %s175, %s178
    %p187 = scmp.eq.s32.totalorder %s18, 1
    %p188 = por %p186, %p187
    %p189 = scmp.ne.s32.totalorder %s178, %s179
    %p190 = scmp.eq.s32.totalorder %s18, 0
    %p191 = por %p189, %p190
    %p192 = scmp.ne.s32.totalorder %s178, %s179
    %p193 = scmp.eq.s32.totalorder %s19, 1
    %p194 = por %p192, %p193
    %p196 = scmp.ne.s32.totalorder %s179, %s195
    %p197 = scmp.eq.s32.totalorder %s19, 0
    %p198 = por %p196, %p197
    %p199 = scmp.le.s32.totalorder 1, %s13
    %p200 = scmp.lt.s32.totalorder %s13, 3
    %p201 = pnand %p199, %p200
    %p202 = pneg %p201
    // Predicated region
    $region9: #{resnet1d_forward.1} parent=5 // pred_check
      _
    $region10: #{resnet1d_forward.1} parent=5 // pred_check_branch
      %204 = sbr.rel (%p201) target = $region12
    $region11: #{resnet1d_forward.1} parent=5 // pred_region
      %s205 = ssub.s32 %s13, 1
      // Predicated region
      $region13: #{resnet1d_forward.1} parent=11 // pred_check
        %p206 = pneg %p60
      $region14: #{resnet1d_forward.1} parent=11 // pred_check_branch
        %208 = sbr.rel (%p206) target = $region16
      $region15: #{resnet1d_forward.1} parent=11 // pred_region
        _
      $region16: #{resnet1d_forward.1} parent=11 // pred_fallthru
        _
      // Predicated region
      $region17: #{resnet1d_forward.1} parent=11 // pred_check
        %p209 = pneg %p81
      $region18: #{resnet1d_forward.1} parent=11 // pred_check_branch
        %211 = sbr.rel (%p209) target = $region20
      $region19: #{resnet1d_forward.1} parent=11 // pred_region
        _
      $region20: #{resnet1d_forward.1} parent=11 // pred_fallthru
        _
      // Predicated region
      $region21: #{resnet1d_forward.1} parent=11 // pred_check
        %p212 = pneg %p102
      $region22: #{resnet1d_forward.1} parent=11 // pred_check_branch
        %214 = sbr.rel (%p212) target = $region24
      $region23: #{resnet1d_forward.1} parent=11 // pred_region
        _
      $region24: #{resnet1d_forward.1} parent=11 // pred_fallthru
        _
      // Predicated region
      $region25: #{resnet1d_forward.1} parent=11 // pred_check
        %p215 = pneg %p123
      $region26: #{resnet1d_forward.1} parent=11 // pred_check_branch
        %217 = sbr.rel (%p215) target = $region28
      $region27: #{resnet1d_forward.1} parent=11 // pred_region
        _
      $region28: #{resnet1d_forward.1} parent=11 // pred_fallthru
        _
      // Predicated region
      $region29: #{resnet1d_forward.1} parent=11 // pred_check
        %p218 = pneg %p144
      $region30: #{resnet1d_forward.1} parent=11 // pred_check_branch
        %220 = sbr.rel (%p218) target = $region32
      $region31: #{resnet1d_forward.1} parent=11 // pred_region
        _
      $region32: #{resnet1d_forward.1} parent=11 // pred_fallthru
        _
      // Predicated region
      $region33: #{resnet1d_forward.1} parent=11 // pred_check
        %p221 = pneg %p165
      $region34: #{resnet1d_forward.1} parent=11 // pred_check_branch
        %223 = sbr.rel (%p221) target = $region36
      $region35: #{resnet1d_forward.1} parent=11 // pred_region
        _
      $region36: #{resnet1d_forward.1} parent=11 // pred_fallthru
        _
    $region12: #{resnet1d_forward.1} parent=5 // pred_fallthru
      _
    %p224 = scmp.lt.s32.totalorder %s13, 2
    // Predicated region
    $region37: #{resnet1d_forward.1} parent=5 // pred_check
      %p225 = pneg %p224
    $region38: #{resnet1d_forward.1} parent=5 // pred_check_branch
      %227 = sbr.rel (%p225) target = $region40
    $region39: #{resnet1d_forward.1} parent=5 // pred_region
      // Predicated region
      $region41: #{resnet1d_forward.1} parent=39 // pred_check
        %p228 = pneg %p33
      $region42: #{resnet1d_forward.1} parent=39 // pred_check_branch
        %230 = sbr.rel (%p228) target = $region44
      $region43: #{resnet1d_forward.1} parent=39 // pred_region
        %s231 = smul.u32 16, %s13
        %p232 = scmp.lt.s32.totalorder %s231, 31
        %s233 = scalar_select %p232, %s231, 31
        %s234 = smul.addr %s233, 3
        %s235 = smul.addr %s234, 8
        %s236 = scalar_lea.vmem %s0, %s235
        %s237 = smul.u32 16, %s13
      $region44: #{resnet1d_forward.1} parent=39 // pred_fallthru
        _
    $region40: #{resnet1d_forward.1} parent=5 // pred_fallthru
      _
    %p238 = scmp.le.s32.totalorder 1, %s13
    %p239 = scmp.lt.s32.totalorder %s13, 3
    %p240 = pnand %p238, %p239
    %p241 = pneg %p240
    // Predicated region
    $region45: #{resnet1d_forward.1} parent=5 // pred_check
      _
    $region46: #{resnet1d_forward.1} parent=5 // pred_check_branch
      %243 = sbr.rel (%p240) target = $region48
    $region47: #{resnet1d_forward.1} parent=5 // pred_region
      %s244 = ssub.s32 %s13, 1
      %s245 = smul.u32 16, %s18
      %p246 = scmp.lt.s32.totalorder %s245, 31
      %s247 = scalar_select %p246, %s245, 31
      %s248 = smul.addr %s247, 3
      %s249 = smul.addr %s248, 8
      %s250 = scalar_lea.vmem %s0, %s249
      %p251 = pneg %p39
      %p252 = pneg %p36
      %p253 = pneg %p60
      %p254 = pneg %p57
      %p255 = pneg %p81
      %p256 = pneg %p78
      %p257 = pneg %p102
      %p258 = pneg %p99
      %p259 = pneg %p123
      %p260 = pneg %p120
      %p261 = pneg %p144
      %p262 = pneg %p141
      %p263 = pneg %p165
      %p264 = pneg %p162
      %p265 = pneg %p191
      %p266 = pneg %p188
      %s267 = smul.u32 2, %s18
      %p268 = scmp.lt.s32.totalorder %s267, 3
      %s269 = scalar_select %p268, %s267, 3
      %s270 = smul.addr %s269, 8
      %s271 = scalar_lea.vmem %s7, %s270
      %s272 = smul.u32 16, %s18
      %p273 = scmp.lt.s32.totalorder %s272, 31
      %s274 = scalar_select %p273, %s272, 31
      %s275 = smul.addr %s274, 3
      %s276 = smul.addr %s275, 8
      %s277 = scalar_lea.vmem %s0, %s276
      %s278 = smul.u32 16, %s18
      %s279 = smul.u32 2, %s18
      %p280 = scmp.lt.s32.totalorder %s279, 3
      %s281 = scalar_select %p280, %s279, 3
      %s282 = smul.addr %s281, 8
      %s283 = scalar_lea.vmem %s7, %s282
      %s284 = smul.u32 2, %s18
      %v285 = vld [vmem:[%s1] sm:$0x3]
      %v286 = vld [vmem:[%s1 + $0x2] sm:$0x3]
      %v287 = vld [vmem:[%s1 + $0x4] sm:$0x3]
      %v288 = vld [vmem:[%s1 + $0x6] sm:$0x3]
      %v289 = vld [vmem:[%s1 + $0x8] sm:$0x3]
      %v290 = vld [vmem:[%s3] sm:$0xff]
      %v291 = vld [vmem:[%s3 + $0x8] sm:$0xff]
      %v292 = vld [vmem:[%s3 + $0x10] sm:$0xff]
      %v293 = vld [vmem:[%s3 + $0x18] sm:$0xff]
      %v294 = vld [vmem:[%s3 + $0x20] sm:$0xff]
      %v295 = vld [vmem:[%s3 + $0x28] sm:$0xff]
      %v296 = vld [vmem:[%s3 + $0x30] sm:$0xff]
      %v297 = vld [vmem:[%s3 + $0x38] sm:$0xff]
      %v298 = vld [vmem:[%s3 + $0x40] sm:$0xff]
      %v299 = vld [vmem:[%s3 + $0x48] sm:$0xff]
      %v300 = vld [vmem:[%s3 + $0x50] sm:$0xff]
      %v301 = vld [vmem:[%s3 + $0x58] sm:$0xff]
      %v302 = vld [vmem:[%s3 + $0x60] sm:$0xff]
      %v303 = vld [vmem:[%s3 + $0x68] sm:$0xff]
      %v304 = vld [vmem:[%s3 + $0x70] sm:$0xff]
      %v305 = vld [vmem:[%s3 + $0x78] sm:$0xff]
      %v306 = vld [vmem:[%s3 + $0x80] sm:$0xff]
      %v307 = vld [vmem:[%s3 + $0x88] sm:$0xff]
      %v308 = vld [vmem:[%s3 + $0x90] sm:$0xff]
      %v309 = vld [vmem:[%s3 + $0x98] sm:$0xff]
      %v310 = vld [vmem:[%s277] sm:$0xff]
      %v311 = vld [vmem:[%s277 + $0x8] sm:$0xff]
      %v312 = vld [vmem:[%s277 + $0x18] sm:$0xff]
      %v313 = vld [vmem:[%s277 + $0x20] sm:$0xff]
      %v314 = vld [vmem:[%s277 + $0x30] sm:$0xff]
      %v315 = vld [vmem:[%s277 + $0x38] sm:$0xff]
      %v316 = vld [vmem:[%s277 + $0x48] sm:$0xff]
      %v317 = vld [vmem:[%s277 + $0x50] sm:$0xff]
      %v318 = vld [vmem:[%s277 + $0x60] sm:$0xff]
      %v319 = vld [vmem:[%s277 + $0x68] sm:$0xff]
      %v320 = vld [vmem:[%s277 + $0x78] sm:$0xff]
      %v321 = vld [vmem:[%s277 + $0x80] sm:$0xff]
      %v322 = vld [vmem:[%s277 + $0x90] sm:$0xff]
      %v323 = vld [vmem:[%s277 + $0x98] sm:$0xff]
      %v324 = vld [vmem:[%s277 + $0xa8] sm:$0xff]
      %v325 = vld [vmem:[%s277 + $0xb0] sm:$0xff]
      %v326 = vld [vmem:[%s277 + $0xc0] sm:$0xff]
      %v327 = vld [vmem:[%s277 + $0xc8] sm:$0xff]
      %v328 = vld [vmem:[%s277 + $0xd8] sm:$0xff]
      %v329 = vld [vmem:[%s277 + $0xe0] sm:$0xff]
      %v330 = vld [vmem:[%s277 + $0xf0] sm:$0xff]
      %v331 = vld [vmem:[%s277 + $0xf8] sm:$0xff]
      %v332 = vld [vmem:[%s277 + $0x108] sm:$0xff]
      %v333 = vld [vmem:[%s277 + $0x110] sm:$0xff]
      %v334 = vld [vmem:[%s277 + $0x120] sm:$0xff]
      %v335 = vld [vmem:[%s277 + $0x128] sm:$0xff]
      %v336 = vld [vmem:[%s277 + $0x138] sm:$0xff]
      %v337 = vld [vmem:[%s277 + $0x140] sm:$0xff]
      %v338 = vld [vmem:[%s277 + $0x150] sm:$0xff]
      %v339 = vld [vmem:[%s277 + $0x158] sm:$0xff]
      %v340 = vld [vmem:[%s277 + $0x168] sm:$0xff]
      %v341 = vld [vmem:[%s277 + $0x170] sm:$0xff]
      %v342 = vld [vmem:[%s277 + $0x1] sm:$0xff]
      %v343 = vld [vmem:[%s277 + $0x9] sm:$0xff]
      %v344 = vld [vmem:[%s277 + $0x19] sm:$0xff]
      %v345 = vld [vmem:[%s277 + $0x21] sm:$0xff]
      %v346 = vld [vmem:[%s277 + $0x31] sm:$0xff]
      %v347 = vld [vmem:[%s277 + $0x39] sm:$0xff]
      %v348 = vld [vmem:[%s277 + $0x49] sm:$0xff]
      %v349 = vld [vmem:[%s277 + $0x51] sm:$0xff]
      %v350 = vld [vmem:[%s277 + $0x61] sm:$0xff]
      %v351 = vld [vmem:[%s277 + $0x69] sm:$0xff]
      %v352 = vld [vmem:[%s277 + $0x79] sm:$0xff]
      %v353 = vld [vmem:[%s277 + $0x81] sm:$0xff]
      %v354 = vld [vmem:[%s277 + $0x91] sm:$0xff]
      %v355 = vld [vmem:[%s277 + $0x99] sm:$0xff]
      %v356 = vld [vmem:[%s277 + $0xa9] sm:$0xff]
      %v357 = vld [vmem:[%s277 + $0xb1] sm:$0xff]
      %v358 = vld [vmem:[%s277 + $0xc1] sm:$0xff]
      %v359 = vld [vmem:[%s277 + $0xc9] sm:$0xff]
      %v360 = vld [vmem:[%s277 + $0xd9] sm:$0xff]
      %v361 = vld [vmem:[%s277 + $0xe1] sm:$0xff]
      %v362 = vld [vmem:[%s277 + $0xf1] sm:$0xff]
      %v363 = vld [vmem:[%s277 + $0xf9] sm:$0xff]
      %v364 = vld [vmem:[%s277 + $0x109] sm:$0xff]
      %v365 = vld [vmem:[%s277 + $0x111] sm:$0xff]
      %v366 = vld [vmem:[%s277 + $0x121] sm:$0xff]
      %v367 = vld [vmem:[%s277 + $0x129] sm:$0xff]
      %v368 = vld [vmem:[%s277 + $0x139] sm:$0xff]
      %v369 = vld [vmem:[%s277 + $0x141] sm:$0xff]
      %v370 = vld [vmem:[%s277 + $0x151] sm:$0xff]
      %v371 = vld [vmem:[%s277 + $0x159] sm:$0xff]
      %v372 = vld [vmem:[%s277 + $0x169] sm:$0xff]
      %v373 = vld [vmem:[%s277 + $0x171] sm:$0xff]
      %vm374 = vcmask 15360
      %v376 = vsel %vm374, %v342, 0
      %v379 = vsel %vm374, %v343, 0
      %v382 = vsel %vm374, %v344, 0
      %v385 = vsel %vm374, %v345, 0
      %v388 = vsel %vm374, %v346, 0
      %v391 = vsel %vm374, %v347, 0
      %v394 = vsel %vm374, %v348, 0
      %v397 = vsel %vm374, %v349, 0
      %v400 = vsel %vm374, %v350, 0
      %v403 = vsel %vm374, %v351, 0
      %v406 = vsel %vm374, %v352, 0
      %v409 = vsel %vm374, %v353, 0
      %v412 = vsel %vm374, %v354, 0
      %v415 = vsel %vm374, %v355, 0
      %v418 = vsel %vm374, %v356, 0
      %v421 = vsel %vm374, %v357, 0
      %v424 = vsel %vm374, %v358, 0
      %v427 = vsel %vm374, %v359, 0
      %v430 = vsel %vm374, %v360, 0
      %v433 = vsel %vm374, %v361, 0
      %v436 = vsel %vm374, %v362, 0
      %v439 = vsel %vm374, %v363, 0
      %v442 = vsel %vm374, %v364, 0
      %v445 = vsel %vm374, %v365, 0
      %v448 = vsel %vm374, %v366, 0
      %v451 = vsel %vm374, %v367, 0
      %v454 = vsel %vm374, %v368, 0
      %v457 = vsel %vm374, %v369, 0
      %v460 = vsel %vm374, %v370, 0
      %v463 = vsel %vm374, %v371, 0
      %v466 = vsel %vm374, %v372, 0
      %v469 = vsel %vm374, %v373, 0
      %vm471 = vcmask 1041408
      %v473 = vsel %vm471, %v286, 0
      %475 = vmatprep.subr.mxu0 0.0
      %476 = vmatpush1.msra.mxu0 %v473
      %477 = vmatprep.subr.mxu0 0.0
      %478 = vmatpush1.msra.mxu0 0.0
      %479 = vmatprep.subr.mxu0 0.0
      %480 = vmatpush1.msra.mxu0 0.0
      %481 = vmatprep.subr.mxu0 0.0
      %482 = vmatpush1.msra.mxu0 0.0
      %483 = vmatprep.subr.mxu0 0.0
      %484 = vmatpush1.msra.mxu0 0.0
      %485 = vmatprep.subr.mxu0 0.0
      %486 = vmatpush1.msra.mxu0 0.0
      %487 = vmatprep.subr.mxu0 0.0
      %488 = vmatpush1.msra.mxu0 0.0
      %489 = vmatprep.subr.mxu0 0.0
      %490 = vmatpush1.msra.mxu0 0.0
      %491 = vmatprep.subr.mxu0 0.0
      %492 = vmatpush1.msra.mxu0 0.0
      %493 = vmatprep.subr.mxu0 0.0
      %494 = vmatpush1.msra.mxu0 0.0
      %495 = vmatprep.subr.mxu0 0.0
      %496 = vmatpush1.msra.mxu0 0.0
      %497 = vmatprep.subr.mxu0 0.0
      %498 = vmatpush1.msra.mxu0 0.0
      %499 = vmatprep.subr.mxu0 0.0
      %500 = vmatpush1.msra.mxu0 0.0
      %501 = vmatprep.subr.mxu0 0.0
      %502 = vmatpush1.msra.mxu0 0.0
      %503 = vmatprep.subr.mxu0 0.0
      %504 = vmatpush1.msra.mxu0 0.0
      %505 = vmatprep.subr.mxu0 0.0
      %506 = vmatpush1.msra.mxu0 0.0
      %507 = vmatprep.subr.mxu0 0.0
      %508 = vmatpush1.msra.mxu0 0.0
      %509 = vmatprep.subr.mxu0 0.0
      %510 = vmatpush1.msra.mxu0 0.0
      %511 = vmatprep.subr.mxu0 0.0
      %512 = vmatpush1.msra.mxu0 0.0
      %513 = vmatprep.subr.mxu0 0.0
      %514 = vmatpush1.msra.mxu0 0.0
      %515 = vmatprep.subr.mxu0 0.0
      %516 = vmatpush1.msra.mxu0 0.0
      %517 = vmatprep.subr.mxu0 0.0
      %518 = vmatpush1.msra.mxu0 0.0
      %519 = vmatprep.subr.mxu0 0.0
      %520 = vmatpush1.msra.mxu0 0.0
      %521 = vmatprep.subr.mxu0 0.0
      %522 = vmatpush1.msra.mxu0 0.0
      %523 = vmatprep.subr.mxu0 0.0
      %524 = vmatpush1.msra.mxu0 0.0
      %525 = vmatprep.subr.mxu0 0.0
      %526 = vmatpush1.msra.mxu0 0.0
      %527 = vmatprep.subr.mxu0 0.0
      %528 = vmatpush1.msra.mxu0 0.0
      %529 = vmatprep.subr.mxu0 0.0
      %530 = vmatpush1.msra.mxu0 0.0
      %531 = vmatprep.subr.mxu0 0.0
      %532 = vmatpush1.msra.mxu0 0.0
      %533 = vmatprep.subr.mxu0 0.0
      %534 = vmatpush1.msra.mxu0 0.0
      %535 = vmatprep.subr.mxu0 0.0
      %536 = vmatpush1.msra.mxu0 0.0
      %537 = vmatprep.subr.mxu0 0.0
      %538 = vmatpush1.msra.mxu0 0.0
      %539 = vmatprep.mubr.f32.mxu0 0.0
      %540 = vmatmul.mubr.f32.gmra.mrb[0].mxu0 %v376
      %v541 = vpop.f32.mrb[0].mxu0
      %v542 = vadd.f32 0.0, %v541
      %v543 = vpop.f32.mrb[0].mxu0
      %544 = vmatprep.mubr.f32.mxu0 0.0
      %545 = vmatmul.mubr.f32.gmra.mrb[0].mxu0 %v379
      %v546 = vpop.f32.mrb[0].mxu0
      %v547 = vadd.f32 0.0, %v546
      %v548 = vpop.f32.mrb[0].mxu0
      %549 = vmatprep.mubr.f32.mxu0 0.0
      %550 = vmatmul.mubr.f32.gmra.mrb[0].mxu0 %v382
      %v551 = vpop.f32.mrb[0].mxu0
      %v552 = vadd.f32 0.0, %v551
      %v553 = vpop.f32.mrb[0].mxu0
      %554 = vmatprep.mubr.f32.mxu0 0.0
      %555 = vmatmul.mubr.f32.gmra.mrb[0].mxu0 %v385
      %v556 = vpop.f32.mrb[0].mxu0
      %v557 = vadd.f32 0.0, %v556
      %v558 = vpop.f32.mrb[0].mxu0
      %559 = vmatprep.mubr.f32.mxu0 0.0
      %560 = vmatmul.mubr.f32.gmra.mrb[0].mxu0 %v388
      %v561 = vpop.f32.mrb[0].mxu0
      %v562 = vadd.f32 0.0, %v561
      %v563 = vpop.f32.mrb[0].mxu0
      %564 = vmatprep.mubr.f32.mxu0 0.0
      %565 = vmatmul.mubr.f32.gmra.mrb[0].mxu0 %v391
      %v566 = vpop.f32.mrb[0].mxu0
      %v567 = vadd.f32 0.0, %v566
      %v568 = vpop.f32.mrb[0].mxu0
      %569 = vmatprep.mubr.f32.mxu0 0.0
      %570 = vmatmul.mubr.f32.gmra.mrb[0].mxu0 %v394
      %v571 = vpop.f32.mrb[0].mxu0
      %v572 = vadd.f32 0.0, %v571
      %v573 = vpop.f32.mrb[0].mxu0
      %574 = vmatprep.mubr.f32.mxu0 0.0
      %575 = vmatmul.mubr.f32.gmra.mrb[0].mxu0 %v397
      %v576 = vpop.f32.mrb[0].mxu0
      %v577 = vadd.f32 0.0, %v576
      %v578 = vpop.f32.mrb[0].mxu0
      %579 = vmatprep.mubr.f32.mxu0 0.0
      %580 = vmatmul.mubr.f32.gmra.mrb[0].mxu0 %v400
      %v581 = vpop.f32.mrb[0].mxu0
      %v582 = vadd.f32 0.0, %v581
      %v583 = vpop.f32.mrb[0].mxu0
      %584 = vmatprep.mubr.f32.mxu0 0.0
      %585 = vmatmul.mubr.f32.gmra.mrb[0].mxu0 %v403
      %v586 = vpop.f32.mrb[0].mxu0
      %v587 = vadd.f32 0.0, %v586
      %v588 = vpop.f32.mrb[0].mxu0
      %589 = vmatprep.mubr.f32.mxu0 0.0
      %590 = vmatmul.mubr.f32.gmra.mrb[0].mxu0 %v406
      %v591 = vpop.f32.mrb[0].mxu0
      %v592 = vadd.f32 0.0, %v591
      %v593 = vpop.f32.mrb[0].mxu0
      %594 = vmatprep.mubr.f32.mxu0 0.0
      %595 = vmatmul.mubr.f32.gmra.mrb[0].mxu0 %v409
      %v596 = vpop.f32.mrb[0].mxu0
      %v597 = vadd.f32 0.0, %v596
      %v598 = vpop.f32.mrb[0].mxu0
      %599 = vmatprep.mubr.f32.mxu0 0.0
      %600 = vmatmul.mubr.f32.gmra.mrb[0].mxu0 %v412
      %v601 = vpop.f32.mrb[0].mxu0
      %v602 = vadd.f32 0.0, %v601
      %v603 = vpop.f32.mrb[0].mxu0
      %604 = vmatprep.mubr.f32.mxu0 0.0
      %605 = vmatmul.mubr.f32.gmra.mrb[0].mxu0 %v415
      %v606 = vpop.f32.mrb[0].mxu0
      %v607 = vadd.f32 0.0, %v606
      %v608 = vpop.f32.mrb[0].mxu0
      %609 = vmatprep.mubr.f32.mxu0 0.0
      %610 = vmatmul.mubr.f32.gmra.mrb[0].mxu0 %v418
      %v611 = vpop.f32.mrb[0].mxu0
      %v612 = vadd.f32 0.0, %v611
      %v613 = vpop.f32.mrb[0].mxu0
      %614 = vmatprep.mubr.f32.mxu0 0.0
      %615 = vmatmul.mubr.f32.gmra.mrb[0].mxu0 %v421
      %v616 = vpop.f32.mrb[0].mxu0
      %v617 = vadd.f32 0.0, %v616
      %v618 = vpop.f32.mrb[0].mxu0
      %619 = vmatprep.mubr.f32.mxu0 0.0
      %620 = vmatmul.mubr.f32.gmra.mrb[0].mxu0 %v424
      %v621 = vpop.f32.mrb[0].mxu0
      %v622 = vadd.f32 0.0, %v621
      %v623 = vpop.f32.mrb[0].mxu0
      %624 = vmatprep.mubr.f32.mxu0 0.0
      %625 = vmatmul.mubr.f32.gmra.mrb[0].mxu0 %v427
      %v626 = vpop.f32.mrb[0].mxu0
      %v627 = vadd.f32 0.0, %v626
      %v628 = vpop.f32.mrb[0].mxu0
      %629 = vmatprep.mubr.f32.mxu0 0.0
      %630 = vmatmul.mubr.f32.gmra.mrb[0].mxu0 %v430
      %v631 = vpop.f32.mrb[0].mxu0
      %v632 = vadd.f32 0.0, %v631
      %v633 = vpop.f32.mrb[0].mxu0
      %634 = vmatprep.mubr.f32.mxu0 0.0
      %635 = vmatmul.mubr.f32.gmra.mrb[0].mxu0 %v433
      %v636 = vpop.f32.mrb[0].mxu0
      %v637 = vadd.f32 0.0, %v636
      %v638 = vpop.f32.mrb[0].mxu0
      %639 = vmatprep.mubr.f32.mxu0 0.0
      %640 = vmatmul.mubr.f32.gmra.mrb[0].mxu0 %v436
      %v641 = vpop.f32.mrb[0].mxu0
      %v642 = vadd.f32 0.0, %v641
      %v643 = vpop.f32.mrb[0].mxu0
      %644 = vmatprep.mubr.f32.mxu0 0.0
      %645 = vmatmul.mubr.f32.gmra.mrb[0].mxu0 %v439
      %v646 = vpop.f32.mrb[0].mxu0
      %v647 = vadd.f32 0.0, %v646
      %v648 = vpop.f32.mrb[0].mxu0
      %649 = vmatprep.mubr.f32.mxu0 0.0
      %650 = vmatmul.mubr.f32.gmra.mrb[0].mxu0 %v442
      %v651 = vpop.f32.mrb[0].mxu0
      %v652 = vadd.f32 0.0, %v651
      %v653 = vpop.f32.mrb[0].mxu0
      %654 = vmatprep.mubr.f32.mxu0 0.0
      %655 = vmatmul.mubr.f32.gmra.mrb[0].mxu0 %v445
      %v656 = vpop.f32.mrb[0].mxu0
      %v657 = vadd.f32 0.0, %v656
      %v658 = vpop.f32.mrb[0].mxu0
      %659 = vmatprep.mubr.f32.mxu0 0.0
      %660 = vmatmul.mubr.f32.gmra.mrb[0].mxu0 %v448
      %v661 = vpop.f32.mrb[0].mxu0
      %v662 = vadd.f32 0.0, %v661
      %v663 = vpop.f32.mrb[0].mxu0
      %664 = vmatprep.mubr.f32.mxu0 0.0
      %665 = vmatmul.mubr.f32.gmra.mrb[0].mxu0 %v451
      %v666 = vpop.f32.mrb[0].mxu0
      %v667 = vadd.f32 0.0, %v666
      %v668 = vpop.f32.mrb[0].mxu0
      %669 = vmatprep.mubr.f32.mxu0 0.0
      %670 = vmatmul.mubr.f32.gmra.mrb[0].mxu0 %v454
      %v671 = vpop.f32.mrb[0].mxu0
      %v672 = vadd.f32 0.0, %v671
      %v673 = vpop.f32.mrb[0].mxu0
      %674 = vmatprep.mubr.f32.mxu0 0.0
      %675 = vmatmul.mubr.f32.gmra.mrb[0].mxu0 %v457
      %v676 = vpop.f32.mrb[0].mxu0
      %v677 = vadd.f32 0.0, %v676
      %v678 = vpop.f32.mrb[0].mxu0
      %679 = vmatprep.mubr.f32.mxu0 0.0
      %680 = vmatmul.mubr.f32.gmra.mrb[0].mxu0 %v460
      %v681 = vpop.f32.mrb[0].mxu0
      %v682 = vadd.f32 0.0, %v681
      %v683 = vpop.f32.mrb[0].mxu0
      %684 = vmatprep.mubr.f32.mxu0 0.0
      %685 = vmatmul.mubr.f32.gmra.mrb[0].mxu0 %v463
      %v686 = vpop.f32.mrb[0].mxu0
      %v687 = vadd.f32 0.0, %v686
      %v688 = vpop.f32.mrb[0].mxu0
      %689 = vmatprep.mubr.f32.mxu0 0.0
      %690 = vmatmul.mubr.f32.gmra.mrb[0].mxu0 %v466
      %v691 = vpop.f32.mrb[0].mxu0
      %v692 = vadd.f32 0.0, %v691
      %v693 = vpop.f32.mrb[0].mxu0
      %694 = vmatprep.mubr.f32.mxu0 0.0
      %695 = vmatmul.mubr.f32.gmra.mrb[0].mxu0 %v469
      %v696 = vpop.f32.mrb[0].mxu0
      %v697 = vadd.f32 0.0, %v696
      %v698 = vpop.f32.mrb[0].mxu0
      %699 = vdwg.mxu0
      %v701 = vsel %vm374, %v310, 0
      %v704 = vsel %vm374, %v311, 0
      %v707 = vsel %vm374, %v312, 0
      %v710 = vsel %vm374, %v313, 0
      %v713 = vsel %vm374, %v314, 0
      %v716 = vsel %vm374, %v315, 0
      %v719 = vsel %vm374, %v316, 0
      %v722 = vsel %vm374, %v317, 0
      %v725 = vsel %vm374, %v318, 0
      %v728 = vsel %vm374, %v319, 0
      %v731 = vsel %vm374, %v320, 0
      %v734 = vsel %vm374, %v321, 0
      %v737 = vsel %vm374, %v322, 0
      %v740 = vsel %vm374, %v323, 0
      %v743 = vsel %vm374, %v324, 0
      %v746 = vsel %vm374, %v325, 0
      %v749 = vsel %vm374, %v326, 0
      %v752 = vsel %vm374, %v327, 0
      %v755 = vsel %vm374, %v328, 0
      %v758 = vsel %vm374, %v329, 0
      %v761 = vsel %vm374, %v330, 0
      %v764 = vsel %vm374, %v331, 0
      %v767 = vsel %vm374, %v332, 0
      %v770 = vsel %vm374, %v333, 0
      %v773 = vsel %vm374, %v334, 0
      %v776 = vsel %vm374, %v335, 0
      %v779 = vsel %vm374, %v336, 0
      %v782 = vsel %vm374, %v337, 0
      %v785 = vsel %vm374, %v338, 0
      %v788 = vsel %vm374, %v339, 0
      %v791 = vsel %vm374, %v340, 0
      %v794 = vsel %vm374, %v341, 0
      %v797 = vsel %vm471, %v285, 0
      %799 = vmatprep.subr.mxu0 0.0
      %800 = vmatpush1.msra.mxu0 %v797
      %801 = vmatprep.subr.mxu0 0.0
      %802 = vmatpush1.msra.mxu0 0.0
      %803 = vmatprep.subr.mxu0 0.0
      %804 = vmatpush1.msra.mxu0 0.0
      %805 = vmatprep.subr.mxu0 0.0
      %806 = vmatpush1.msra.mxu0 0.0
      %807 = vmatprep.subr.mxu0 0.0
      %808 = vmatpush1.msra.mxu0 0.0
      %809 = vmatprep.subr.mxu0 0.0
      %810 = vmatpush1.msra.mxu0 0.0
      %811 = vmatprep.subr.mxu0 0.0
      %812 = vmatpush1.msra.mxu0 0.0
      %813 = vmatprep.subr.mxu0 0.0
      %814 = vmatpush1.msra.mxu0 0.0
      %815 = vmatprep.subr.mxu0 0.0
      %816 = vmatpush1.msra.mxu0 0.0
      %817 = vmatprep.subr.mxu0 0.0
      %818 = vmatpush1.msra.mxu0 0.0
      %819 = vmatprep.subr.mxu0 0.0
      %820 = vmatpush1.msra.mxu0 0.0
      %821 = vmatprep.subr.mxu0 0.0
      %822 = vmatpush1.msra.mxu0 0.0
      %823 = vmatprep.subr.mxu0 0.0
      %824 = vmatpush1.msra.mxu0 0.0
      %825 = vmatprep.subr.mxu0 0.0
      %826 = vmatpush1.msra.mxu0 0.0
      %827 = vmatprep.subr.mxu0 0.0
      %828 = vmatpush1.msra.mxu0 0.0
      %829 = vmatprep.subr.mxu0 0.0
      %830 = vmatpush1.msra.mxu0 0.0
      %831 = vmatprep.subr.mxu0 0.0
      %832 = vmatpush1.msra.mxu0 0.0
      %833 = vmatprep.subr.mxu0 0.0
      %834 = vmatpush1.msra.mxu0 0.0
      %835 = vmatprep.subr.mxu0 0.0
      %836 = vmatpush1.msra.mxu0 0.0
      %837 = vmatprep.subr.mxu0 0.0
      %838 = vmatpush1.msra.mxu0 0.0
      %839 = vmatprep.subr.mxu0 0.0
      %840 = vmatpush1.msra.mxu0 0.0
      %841 = vmatprep.subr.mxu0 0.0
      %842 = vmatpush1.msra.mxu0 0.0
      %843 = vmatprep.subr.mxu0 0.0
      %844 = vmatpush1.msra.mxu0 0.0
      %845 = vmatprep.subr.mxu0 0.0
      %846 = vmatpush1.msra.mxu0 0.0
      %847 = vmatprep.subr.mxu0 0.0
      %848 = vmatpush1.msra.mxu0 0.0
      %849 = vmatprep.subr.mxu0 0.0
      %850 = vmatpush1.msra.mxu0 0.0
      %851 = vmatprep.subr.mxu0 0.0
      %852 = vmatpush1.msra.mxu0 0.0
      %853 = vmatprep.subr.mxu0 0.0
      %854 = vmatpush1.msra.mxu0 0.0
      %855 = vmatprep.subr.mxu0 0.0
      %856 = vmatpush1.msra.mxu0 0.0
      %857 = vmatprep.subr.mxu0 0.0
      %858 = vmatpush1.msra.mxu0 0.0
      %859 = vmatprep.subr.mxu0 0.0
      %860 = vmatpush1.msra.mxu0 0.0
      %861 = vmatprep.subr.mxu0 0.0
      %862 = vmatpush1.msra.mxu0 0.0
      %863 = vmatprep.mubr.f32.mxu0 0.0
      %864 = vmatmul.mubr.f32.gmra.mrb[0].mxu0 %v701
      %v865 = vpop.f32.mrb[0].mxu0
      %v866 = vadd.f32 %v542, %v865
      %v867 = vpop.f32.mrb[0].mxu0
      %868 = vmatprep.mubr.f32.mxu0 0.0
      %869 = vmatmul.mubr.f32.gmra.mrb[0].mxu0 %v704
      %v870 = vpop.f32.mrb[0].mxu0
      %v871 = vadd.f32 %v547, %v870
      %v872 = vpop.f32.mrb[0].mxu0
      %873 = vmatprep.mubr.f32.mxu0 0.0
      %874 = vmatmul.mubr.f32.gmra.mrb[0].mxu0 %v707
      %v875 = vpop.f32.mrb[0].mxu0
      %v876 = vadd.f32 %v552, %v875
      %v877 = vpop.f32.mrb[0].mxu0
      %878 = vmatprep.mubr.f32.mxu0 0.0
      %879 = vmatmul.mubr.f32.gmra.mrb[0].mxu0 %v710
      %v880 = vpop.f32.mrb[0].mxu0
      %v881 = vadd.f32 %v557, %v880
      %v882 = vpop.f32.mrb[0].mxu0
      %883 = vmatprep.mubr.f32.mxu0 0.0
      %884 = vmatmul.mubr.f32.gmra.mrb[0].mxu0 %v713
      %v885 = vpop.f32.mrb[0].mxu0
      %v886 = vadd.f32 %v562, %v885
      %v887 = vpop.f32.mrb[0].mxu0
      %888 = vmatprep.mubr.f32.mxu0 0.0
      %889 = vmatmul.mubr.f32.gmra.mrb[0].mxu0 %v716
      %v890 = vpop.f32.mrb[0].mxu0
      %v891 = vadd.f32 %v567, %v890
      %v892 = vpop.f32.mrb[0].mxu0
      %893 = vmatprep.mubr.f32.mxu0 0.0
      %894 = vmatmul.mubr.f32.gmra.mrb[0].mxu0 %v719
      %v895 = vpop.f32.mrb[0].mxu0
      %v896 = vadd.f32 %v572, %v895
      %v897 = vpop.f32.mrb[0].mxu0
      %898 = vmatprep.mubr.f32.mxu0 0.0
      %899 = vmatmul.mubr.f32.gmra.mrb[0].mxu0 %v722
      %v900 = vpop.f32.mrb[0].mxu0
      %v901 = vadd.f32 %v577, %v900
      %v902 = vpop.f32.mrb[0].mxu0
      %903 = vmatprep.mubr.f32.mxu0 0.0
      %904 = vmatmul.mubr.f32.gmra.mrb[0].mxu0 %v725
      %v905 = vpop.f32.mrb[0].mxu0
      %v906 = vadd.f32 %v582, %v905
      %v907 = vpop.f32.mrb[0].mxu0
      %908 = vmatprep.mubr.f32.mxu0 0.0
      %909 = vmatmul.mubr.f32.gmra.mrb[0].mxu0 %v728
      %v910 = vpop.f32.mrb[0].mxu0
      %v911 = vadd.f32 %v587, %v910
      %v912 = vpop.f32.mrb[0].mxu0
      %913 = vmatprep.mubr.f32.mxu0 0.0
      %914 = vmatmul.mubr.f32.gmra.mrb[0].mxu0 %v731
      %v915 = vpop.f32.mrb[0].mxu0
      %v916 = vadd.f32 %v592, %v915
      %v917 = vpop.f32.mrb[0].mxu0
      %918 = vmatprep.mubr.f32.mxu0 0.0
      %919 = vmatmul.mubr.f32.gmra.mrb[0].mxu0 %v734
      %v920 = vpop.f32.mrb[0].mxu0
      %v921 = vadd.f32 %v597, %v920
      %v922 = vpop.f32.mrb[0].mxu0
      %923 = vmatprep.mubr.f32.mxu0 0.0
      %924 = vmatmul.mubr.f32.gmra.mrb[0].mxu0 %v737
      %v925 = vpop.f32.mrb[0].mxu0
      %v926 = vadd.f32 %v602, %v925
      %v927 = vpop.f32.mrb[0].mxu0
      %928 = vmatprep.mubr.f32.mxu0 0.0
      %929 = vmatmul.mubr.f32.gmra.mrb[0].mxu0 %v740
      %v930 = vpop.f32.mrb[0].mxu0
      %v931 = vadd.f32 %v607, %v930
      %v932 = vpop.f32.mrb[0].mxu0
      %933 = vmatprep.mubr.f32.mxu0 0.0
      %934 = vmatmul.mubr.f32.gmra.mrb[0].mxu0 %v743
      %v935 = vpop.f32.mrb[0].mxu0
      %v936 = vadd.f32 %v612, %v935
      %v937 = vpop.f32.mrb[0].mxu0
      %938 = vmatprep.mubr.f32.mxu0 0.0
      %939 = vmatmul.mubr.f32.gmra.mrb[0].mxu0 %v746
      %v940 = vpop.f32.mrb[0].mxu0
      %v941 = vadd.f32 %v617, %v940
      %v942 = vpop.f32.mrb[0].mxu0
      %943 = vmatprep.mubr.f32.mxu0 0.0
      %944 = vmatmul.mubr.f32.gmra.mrb[0].mxu0 %v749
      %v945 = vpop.f32.mrb[0].mxu0
      %v946 = vadd.f32 %v622, %v945
      %v947 = vpop.f32.mrb[0].mxu0
      %948 = vmatprep.mubr.f32.mxu0 0.0
      %949 = vmatmul.mubr.f32.gmra.mrb[0].mxu0 %v752
      %v950 = vpop.f32.mrb[0].mxu0
      %v951 = vadd.f32 %v627, %v950
      %v952 = vpop.f32.mrb[0].mxu0
      %953 = vmatprep.mubr.f32.mxu0 0.0
      %954 = vmatmul.mubr.f32.gmra.mrb[0].mxu0 %v755
      %v955 = vpop.f32.mrb[0].mxu0
      %v956 = vadd.f32 %v632, %v955
      %v957 = vpop.f32.mrb[0].mxu0
      %958 = vmatprep.mubr.f32.mxu0 0.0
      %959 = vmatmul.mubr.f32.gmra.mrb[0].mxu0 %v758
      %v960 = vpop.f32.mrb[0].mxu0
      %v961 = vadd.f32 %v637, %v960
      %v962 = vpop.f32.mrb[0].mxu0
      %963 = vmatprep.mubr.f32.mxu0 0.0
      %964 = vmatmul.mubr.f32.gmra.mrb[0].mxu0 %v761
      %v965 = vpop.f32.mrb[0].mxu0
      %v966 = vadd.f32 %v642, %v965
      %v967 = vpop.f32.mrb[0].mxu0
      %968 = vmatprep.mubr.f32.mxu0 0.0
      %969 = vmatmul.mubr.f32.gmra.mrb[0].mxu0 %v764
      %v970 = vpop.f32.mrb[0].mxu0
      %v971 = vadd.f32 %v647, %v970
      %v972 = vpop.f32.mrb[0].mxu0
      %973 = vmatprep.mubr.f32.mxu0 0.0
      %974 = vmatmul.mubr.f32.gmra.mrb[0].mxu0 %v767
      %v975 = vpop.f32.mrb[0].mxu0
      %v976 = vadd.f32 %v652, %v975
      %v977 = vpop.f32.mrb[0].mxu0
      %978 = vmatprep.mubr.f32.mxu0 0.0
      %979 = vmatmul.mubr.f32.gmra.mrb[0].mxu0 %v770
      %v980 = vpop.f32.mrb[0].mxu0
      %v981 = vadd.f32 %v657, %v980
      %v982 = vpop.f32.mrb[0].mxu0
      %983 = vmatprep.mubr.f32.mxu0 0.0
      %984 = vmatmul.mubr.f32.gmra.mrb[0].mxu0 %v773
      %v985 = vpop.f32.mrb[0].mxu0
      %v986 = vadd.f32 %v662, %v985
      %v987 = vpop.f32.mrb[0].mxu0
      %988 = vmatprep.mubr.f32.mxu0 0.0
      %989 = vmatmul.mubr.f32.gmra.mrb[0].mxu0 %v776
      %v990 = vpop.f32.mrb[0].mxu0
      %v991 = vadd.f32 %v667, %v990
      %v992 = vpop.f32.mrb[0].mxu0
      %993 = vmatprep.mubr.f32.mxu0 0.0
      %994 = vmatmul.mubr.f32.gmra.mrb[0].mxu0 %v779
      %v995 = vpop.f32.mrb[0].mxu0
      %v996 = vadd.f32 %v672, %v995
      %v997 = vpop.f32.mrb[0].mxu0
      %998 = vmatprep.mubr.f32.mxu0 0.0
      %999 = vmatmul.mubr.f32.gmra.mrb[0].mxu0 %v782
      %v1000 = vpop.f32.mrb[0].mxu0
      %v1001 = vadd.f32 %v677, %v1000
      %v1002 = vpop.f32.mrb[0].mxu0
      %1003 = vmatprep.mubr.f32.mxu0 0.0
      %1004 = vmatmul.mubr.f32.gmra.mrb[0].mxu0 %v785
      %v1005 = vpop.f32.mrb[0].mxu0
      %v1006 = vadd.f32 %v682, %v1005
      %v1007 = vpop.f32.mrb[0].mxu0
      %1008 = vmatprep.mubr.f32.mxu0 0.0
      %1009 = vmatmul.mubr.f32.gmra.mrb[0].mxu0 %v788
      %v1010 = vpop.f32.mrb[0].mxu0
      %v1011 = vadd.f32 %v687, %v1010
      %v1012 = vpop.f32.mrb[0].mxu0
      %1013 = vmatprep.mubr.f32.mxu0 0.0
      %1014 = vmatmul.mubr.f32.gmra.mrb[0].mxu0 %v791
      %v1015 = vpop.f32.mrb[0].mxu0
      %v1016 = vadd.f32 %v692, %v1015
      %v1017 = vpop.f32.mrb[0].mxu0
      %1018 = vmatprep.mubr.f32.mxu0 0.0
      %1019 = vmatmul.mubr.f32.gmra.mrb[0].mxu0 %v794
      %v1020 = vpop.f32.mrb[0].mxu0
      %v1021 = vadd.f32 %v697, %v1020
      %v1022 = vpop.f32.mrb[0].mxu0
      %1023 = vdwg.mxu0
      %v1024 = vld [vmem:[%s277 + $0x2] sm:$0xff]
      %v1025 = vld [vmem:[%s277 + $0xa] sm:$0xff]
      %v1026 = vld [vmem:[%s277 + $0x1a] sm:$0xff]
      %v1027 = vld [vmem:[%s277 + $0x22] sm:$0xff]
      %v1028 = vld [vmem:[%s277 + $0x32] sm:$0xff]
      %v1029 = vld [vmem:[%s277 + $0x3a] sm:$0xff]
      %v1030 = vld [vmem:[%s277 + $0x4a] sm:$0xff]
      %v1031 = vld [vmem:[%s277 + $0x52] sm:$0xff]
      %v1032 = vld [vmem:[%s277 + $0x62] sm:$0xff]
      %v1033 = vld [vmem:[%s277 + $0x6a] sm:$0xff]
      %v1034 = vld [vmem:[%s277 + $0x7a] sm:$0xff]
      %v1035 = vld [vmem:[%s277 + $0x82] sm:$0xff]
      %v1036 = vld [vmem:[%s277 + $0x92] sm:$0xff]
      %v1037 = vld [vmem:[%s277 + $0x9a] sm:$0xff]
      %v1038 = vld [vmem:[%s277 + $0xaa] sm:$0xff]
      %v1039 = vld [vmem:[%s277 + $0xb2] sm:$0xff]
      %v1040 = vld [vmem:[%s277 + $0xc2] sm:$0xff]
      %v1041 = vld [vmem:[%s277 + $0xca] sm:$0xff]
      %v1042 = vld [vmem:[%s277 + $0xda] sm:$0xff]
      %v1043 = vld [vmem:[%s277 + $0xe2] sm:$0xff]
      %v1044 = vld [vmem:[%s277 + $0xf2] sm:$0xff]
      %v1045 = vld [vmem:[%s277 + $0xfa] sm:$0xff]
      %v1046 = vld [vmem:[%s277 + $0x10a] sm:$0xff]
      %v1047 = vld [vmem:[%s277 + $0x112] sm:$0xff]
      %v1048 = vld [vmem:[%s277 + $0x122] sm:$0xff]
      %v1049 = vld [vmem:[%s277 + $0x12a] sm:$0xff]
      %v1050 = vld [vmem:[%s277 + $0x13a] sm:$0xff]
      %v1051 = vld [vmem:[%s277 + $0x142] sm:$0xff]
      %v1052 = vld [vmem:[%s277 + $0x152] sm:$0xff]
      %v1053 = vld [vmem:[%s277 + $0x15a] sm:$0xff]
      %v1054 = vld [vmem:[%s277 + $0x16a] sm:$0xff]
      %v1055 = vld [vmem:[%s277 + $0x172] sm:$0xff]
      %v1057 = vsel %vm374, %v1024, 0
      %v1060 = vsel %vm374, %v1025, 0
      %v1063 = vsel %vm374, %v1026, 0
      %v1066 = vsel %vm374, %v1027, 0
      %v1069 = vsel %vm374, %v1028, 0
      %v1072 = vsel %vm374, %v1029, 0
      %v1075 = vsel %vm374, %v1030, 0
      %v1078 = vsel %vm374, %v1031, 0
      %v1081 = vsel %vm374, %v1032, 0
      %v1084 = vsel %vm374, %v1033, 0
      %v1087 = vsel %vm374, %v1034, 0
      %v1090 = vsel %vm374, %v1035, 0
      %v1093 = vsel %vm374, %v1036, 0
      %v1096 = vsel %vm374, %v1037, 0
      %v1099 = vsel %vm374, %v1038, 0
      %v1102 = vsel %vm374, %v1039, 0
      %v1105 = vsel %vm374, %v1040, 0
      %v1108 = vsel %vm374, %v1041, 0
      %v1111 = vsel %vm374, %v1042, 0
      %v1114 = vsel %vm374, %v1043, 0
      %v1117 = vsel %vm374, %v1044, 0
      %v1120 = vsel %vm374, %v1045, 0
      %v1123 = vsel %vm374, %v1046, 0
      %v1126 = vsel %vm374, %v1047, 0
      %v1129 = vsel %vm374, %v1048, 0
      %v1132 = vsel %vm374, %v1049, 0
      %v1135 = vsel %vm374, %v1050, 0
      %v1138 = vsel %vm374, %v1051, 0
      %v1141 = vsel %vm374, %v1052, 0
      %v1144 = vsel %vm374, %v1053, 0
      %v1147 = vsel %vm374, %v1054, 0
      %v1150 = vsel %vm374, %v1055, 0
      %v1153 = vsel %vm471, %v287, 0
      %1155 = vmatprep.subr.mxu0 0.0
      %1156 = vmatpush1.msra.mxu0 %v1153
      %1157 = vmatprep.subr.mxu0 0.0
      %1158 = vmatpush1.msra.mxu0 0.0
      %1159 = vmatprep.subr.mxu0 0.0
      %1160 = vmatpush1.msra.mxu0 0.0
      %1161 = vmatprep.subr.mxu0 0.0
      %1162 = vmatpush1.msra.mxu0 0.0
      %1163 = vmatprep.subr.mxu0 0.0
      %1164 = vmatpush1.msra.mxu0 0.0
      %1165 = vmatprep.subr.mxu0 0.0
      %1166 = vmatpush1.msra.mxu0 0.0
      %1167 = vmatprep.subr.mxu0 0.0
      %1168 = vmatpush1.msra.mxu0 0.0
      %1169 = vmatprep.subr.mxu0 0.0
      %1170 = vmatpush1.msra.mxu0 0.0
      %1171 = vmatprep.subr.mxu0 0.0
      %1172 = vmatpush1.msra.mxu0 0.0
      %1173 = vmatprep.subr.mxu0 0.0
      %1174 = vmatpush1.msra.mxu0 0.0
      %1175 = vmatprep.subr.mxu0 0.0
      %1176 = vmatpush1.msra.mxu0 0.0
      %1177 = vmatprep.subr.mxu0 0.0
      %1178 = vmatpush1.msra.mxu0 0.0
      %1179 = vmatprep.subr.mxu0 0.0
      %1180 = vmatpush1.msra.mxu0 0.0
      %1181 = vmatprep.subr.mxu0 0.0
      %1182 = vmatpush1.msra.mxu0 0.0
      %1183 = vmatprep.subr.mxu0 0.0
      %1184 = vmatpush1.msra.mxu0 0.0
      %1185 = vmatprep.subr.mxu0 0.0
      %1186 = vmatpush1.msra.mxu0 0.0
      %1187 = vmatprep.subr.mxu0 0.0
      %1188 = vmatpush1.msra.mxu0 0.0
      %1189 = vmatprep.subr.mxu0 0.0
      %1190 = vmatpush1.msra.mxu0 0.0
      %1191 = vmatprep.subr.mxu0 0.0
      %1192 = vmatpush1.msra.mxu0 0.0
      %1193 = vmatprep.subr.mxu0 0.0
      %1194 = vmatpush1.msra.mxu0 0.0
      %1195 = vmatprep.subr.mxu0 0.0
      %1196 = vmatpush1.msra.mxu0 0.0
      %1197 = vmatprep.subr.mxu0 0.0
      %1198 = vmatpush1.msra.mxu0 0.0
      %1199 = vmatprep.subr.mxu0 0.0
      %1200 = vmatpush1.msra.mxu0 0.0
      %1201 = vmatprep.subr.mxu0 0.0
      %1202 = vmatpush1.msra.mxu0 0.0
      %1203 = vmatprep.subr.mxu0 0.0
      %1204 = vmatpush1.msra.mxu0 0.0
      %1205 = vmatprep.subr.mxu0 0.0
      %1206 = vmatpush1.msra.mxu0 0.0
      %1207 = vmatprep.subr.mxu0 0.0
      %1208 = vmatpush1.msra.mxu0 0.0
      %1209 = vmatprep.subr.mxu0 0.0
      %1210 = vmatpush1.msra.mxu0 0.0
      %1211 = vmatprep.subr.mxu0 0.0
      %1212 = vmatpush1.msra.mxu0 0.0
      %1213 = vmatprep.subr.mxu0 0.0
      %1214 = vmatpush1.msra.mxu0 0.0
      %1215 = vmatprep.subr.mxu0 0.0
      %1216 = vmatpush1.msra.mxu0 0.0
      %1217 = vmatprep.subr.mxu0 0.0
      %1218 = vmatpush1.msra.mxu0 0.0
      %1219 = vmatprep.mubr.f32.mxu0 0.0
      %1220 = vmatmul.mubr.f32.gmra.mrb[0].mxu0 %v1057
      %v1221 = vpop.f32.mrb[0].mxu0
      %v1222 = vadd.f32 0.0, %v1221
      %v1223 = vpop.f32.mrb[0].mxu0
      %1224 = vmatprep.mubr.f32.mxu0 0.0
      %1225 = vmatmul.mubr.f32.gmra.mrb[0].mxu0 %v1060
      %v1226 = vpop.f32.mrb[0].mxu0
      %v1227 = vadd.f32 0.0, %v1226
      %v1228 = vpop.f32.mrb[0].mxu0
      %1229 = vmatprep.mubr.f32.mxu0 0.0
      %1230 = vmatmul.mubr.f32.gmra.mrb[0].mxu0 %v1063
      %v1231 = vpop.f32.mrb[0].mxu0
      %v1232 = vadd.f32 0.0, %v1231
      %v1233 = vpop.f32.mrb[0].mxu0
      %1234 = vmatprep.mubr.f32.mxu0 0.0
      %1235 = vmatmul.mubr.f32.gmra.mrb[0].mxu0 %v1066
      %v1236 = vpop.f32.mrb[0].mxu0
      %v1237 = vadd.f32 0.0, %v1236
      %v1238 = vpop.f32.mrb[0].mxu0
      %1239 = vmatprep.mubr.f32.mxu0 0.0
      %1240 = vmatmul.mubr.f32.gmra.mrb[0].mxu0 %v1069
      %v1241 = vpop.f32.mrb[0].mxu0
      %v1242 = vadd.f32 0.0, %v1241
      %v1243 = vpop.f32.mrb[0].mxu0
      %1244 = vmatprep.mubr.f32.mxu0 0.0
      %1245 = vmatmul.mubr.f32.gmra.mrb[0].mxu0 %v1072
      %v1246 = vpop.f32.mrb[0].mxu0
      %v1247 = vadd.f32 0.0, %v1246
      %v1248 = vpop.f32.mrb[0].mxu0
      %1249 = vmatprep.mubr.f32.mxu0 0.0
      %1250 = vmatmul.mubr.f32.gmra.mrb[0].mxu0 %v1075
      %v1251 = vpop.f32.mrb[0].mxu0
      %v1252 = vadd.f32 0.0, %v1251
      %v1253 = vpop.f32.mrb[0].mxu0
      %1254 = vmatprep.mubr.f32.mxu0 0.0
      %1255 = vmatmul.mubr.f32.gmra.mrb[0].mxu0 %v1078
      %v1256 = vpop.f32.mrb[0].mxu0
      %v1257 = vadd.f32 0.0, %v1256
      %v1258 = vpop.f32.mrb[0].mxu0
      %1259 = vmatprep.mubr.f32.mxu0 0.0
      %1260 = vmatmul.mubr.f32.gmra.mrb[0].mxu0 %v1081
      %v1261 = vpop.f32.mrb[0].mxu0
      %v1262 = vadd.f32 0.0, %v1261
      %v1263 = vpop.f32.mrb[0].mxu0
      %1264 = vmatprep.mubr.f32.mxu0 0.0
      %1265 = vmatmul.mubr.f32.gmra.mrb[0].mxu0 %v1084
      %v1266 = vpop.f32.mrb[0].mxu0
      %v1267 = vadd.f32 0.0, %v1266
      %v1268 = vpop.f32.mrb[0].mxu0
      %1269 = vmatprep.mubr.f32.mxu0 0.0
      %1270 = vmatmul.mubr.f32.gmra.mrb[0].mxu0 %v1087
      %v1271 = vpop.f32.mrb[0].mxu0
      %v1272 = vadd.f32 0.0, %v1271
      %v1273 = vpop.f32.mrb[0].mxu0
      %1274 = vmatprep.mubr.f32.mxu0 0.0
      %1275 = vmatmul.mubr.f32.gmra.mrb[0].mxu0 %v1090
      %v1276 = vpop.f32.mrb[0].mxu0
      %v1277 = vadd.f32 0.0, %v1276
      %v1278 = vpop.f32.mrb[0].mxu0
      %1279 = vmatprep.mubr.f32.mxu0 0.0
      %1280 = vmatmul.mubr.f32.gmra.mrb[0].mxu0 %v1093
      %v1281 = vpop.f32.mrb[0].mxu0
      %v1282 = vadd.f32 0.0, %v1281
      %v1283 = vpop.f32.mrb[0].mxu0
      %1284 = vmatprep.mubr.f32.mxu0 0.0
      %1285 = vmatmul.mubr.f32.gmra.mrb[0].mxu0 %v1096
      %v1286 = vpop.f32.mrb[0].mxu0
      %v1287 = vadd.f32 0.0, %v1286
      %v1288 = vpop.f32.mrb[0].mxu0
      %1289 = vmatprep.mubr.f32.mxu0 0.0
      %1290 = vmatmul.mubr.f32.gmra.mrb[0].mxu0 %v1099
      %v1291 = vpop.f32.mrb[0].mxu0
      %v1292 = vadd.f32 0.0, %v1291
      %v1293 = vpop.f32.mrb[0].mxu0
      %1294 = vmatprep.mubr.f32.mxu0 0.0
      %1295 = vmatmul.mubr.f32.gmra.mrb[0].mxu0 %v1102
      %v1296 = vpop.f32.mrb[0].mxu0
      %v1297 = vadd.f32 0.0, %v1296
      %v1298 = vpop.f32.mrb[0].mxu0
      %1299 = vmatprep.mubr.f32.mxu0 0.0
      %1300 = vmatmul.mubr.f32.gmra.mrb[0].mxu0 %v1105
      %v1301 = vpop.f32.mrb[0].mxu0
      %v1302 = vadd.f32 0.0, %v1301
      %v1303 = vpop.f32.mrb[0].mxu0
      %1304 = vmatprep.mubr.f32.mxu0 0.0
      %1305 = vmatmul.mubr.f32.gmra.mrb[0].mxu0 %v1108
      %v1306 = vpop.f32.mrb[0].mxu0
      %v1307 = vadd.f32 0.0, %v1306
      %v1308 = vpop.f32.mrb[0].mxu0
      %1309 = vmatprep.mubr.f32.mxu0 0.0
      %1310 = vmatmul.mubr.f32.gmra.mrb[0].mxu0 %v1111
      %v1311 = vpop.f32.mrb[0].mxu0
      %v1312 = vadd.f32 0.0, %v1311
      %v1313 = vpop.f32.mrb[0].mxu0
      %1314 = vmatprep.mubr.f32.mxu0 0.0
      %1315 = vmatmul.mubr.f32.gmra.mrb[0].mxu0 %v1114
      %v1316 = vpop.f32.mrb[0].mxu0
      %v1317 = vadd.f32 0.0, %v1316
      %v1318 = vpop.f32.mrb[0].mxu0
      %1319 = vmatprep.mubr.f32.mxu0 0.0
      %1320 = vmatmul.mubr.f32.gmra.mrb[0].mxu0 %v1117
      %v1321 = vpop.f32.mrb[0].mxu0
      %v1322 = vadd.f32 0.0, %v1321
      %v1323 = vpop.f32.mrb[0].mxu0
      %1324 = vmatprep.mubr.f32.mxu0 0.0
      %1325 = vmatmul.mubr.f32.gmra.mrb[0].mxu0 %v1120
      %v1326 = vpop.f32.mrb[0].mxu0
      %v1327 = vadd.f32 0.0, %v1326
      %v1328 = vpop.f32.mrb[0].mxu0
      %1329 = vmatprep.mubr.f32.mxu0 0.0
      %1330 = vmatmul.mubr.f32.gmra.mrb[0].mxu0 %v1123
      %v1331 = vpop.f32.mrb[0].mxu0
      %v1332 = vadd.f32 0.0, %v1331
      %v1333 = vpop.f32.mrb[0].mxu0
      %1334 = vmatprep.mubr.f32.mxu0 0.0
      %1335 = vmatmul.mubr.f32.gmra.mrb[0].mxu0 %v1126
      %v1336 = vpop.f32.mrb[0].mxu0
      %v1337 = vadd.f32 0.0, %v1336
      %v1338 = vpop.f32.mrb[0].mxu0
      %1339 = vmatprep.mubr.f32.mxu0 0.0
      %1340 = vmatmul.mubr.f32.gmra.mrb[0].mxu0 %v1129
      %v1341 = vpop.f32.mrb[0].mxu0
      %v1342 = vadd.f32 0.0, %v1341
      %v1343 = vpop.f32.mrb[0].mxu0
      %1344 = vmatprep.mubr.f32.mxu0 0.0
      %1345 = vmatmul.mubr.f32.gmra.mrb[0].mxu0 %v1132
      %v1346 = vpop.f32.mrb[0].mxu0
      %v1347 = vadd.f32 0.0, %v1346
      %v1348 = vpop.f32.mrb[0].mxu0
      %1349 = vmatprep.mubr.f32.mxu0 0.0
      %1350 = vmatmul.mubr.f32.gmra.mrb[0].mxu0 %v1135
      %v1351 = vpop.f32.mrb[0].mxu0
      %v1352 = vadd.f32 0.0, %v1351
      %v1353 = vpop.f32.mrb[0].mxu0
      %1354 = vmatprep.mubr.f32.mxu0 0.0
      %1355 = vmatmul.mubr.f32.gmra.mrb[0].mxu0 %v1138
      %v1356 = vpop.f32.mrb[0].mxu0
      %v1357 = vadd.f32 0.0, %v1356
      %v1358 = vpop.f32.mrb[0].mxu0
      %1359 = vmatprep.mubr.f32.mxu0 0.0
      %1360 = vmatmul.mubr.f32.gmra.mrb[0].mxu0 %v1141
      %v1361 = vpop.f32.mrb[0].mxu0
      %v1362 = vadd.f32 0.0, %v1361
      %v1363 = vpop.f32.mrb[0].mxu0
      %1364 = vmatprep.mubr.f32.mxu0 0.0
      %1365 = vmatmul.mubr.f32.gmra.mrb[0].mxu0 %v1144
      %v1366 = vpop.f32.mrb[0].mxu0
      %v1367 = vadd.f32 0.0, %v1366
      %v1368 = vpop.f32.mrb[0].mxu0
      %1369 = vmatprep.mubr.f32.mxu0 0.0
      %1370 = vmatmul.mubr.f32.gmra.mrb[0].mxu0 %v1147
      %v1371 = vpop.f32.mrb[0].mxu0
      %v1372 = vadd.f32 0.0, %v1371
      %v1373 = vpop.f32.mrb[0].mxu0
      %1374 = vmatprep.mubr.f32.mxu0 0.0
      %1375 = vmatmul.mubr.f32.gmra.mrb[0].mxu0 %v1150
      %v1376 = vpop.f32.mrb[0].mxu0
      %v1377 = vadd.f32 0.0, %v1376
      %v1378 = vpop.f32.mrb[0].mxu0
      %1379 = vdwg.mxu0
      %v1380 = vadd.f32 %v866, %v1222
      %v1381 = vadd.f32 %v871, %v1227
      %v1382 = vadd.f32 %v876, %v1232
      %v1383 = vadd.f32 %v881, %v1237
      %v1384 = vadd.f32 %v886, %v1242
      %v1385 = vadd.f32 %v891, %v1247
      %v1386 = vadd.f32 %v896, %v1252
      %v1387 = vadd.f32 %v901, %v1257
      %v1388 = vadd.f32 %v906, %v1262
      %v1389 = vadd.f32 %v911, %v1267
      %v1390 = vadd.f32 %v916, %v1272
      %v1391 = vadd.f32 %v921, %v1277
      %v1392 = vadd.f32 %v926, %v1282
      %v1393 = vadd.f32 %v931, %v1287
      %v1394 = vadd.f32 %v936, %v1292
      %v1395 = vadd.f32 %v941, %v1297
      %v1396 = vadd.f32 %v946, %v1302
      %v1397 = vadd.f32 %v951, %v1307
      %v1398 = vadd.f32 %v956, %v1312
      %v1399 = vadd.f32 %v961, %v1317
      %v1400 = vadd.f32 %v966, %v1322
      %v1401 = vadd.f32 %v971, %v1327
      %v1402 = vadd.f32 %v976, %v1332
      %v1403 = vadd.f32 %v981, %v1337
      %v1404 = vadd.f32 %v986, %v1342
      %v1405 = vadd.f32 %v991, %v1347
      %v1406 = vadd.f32 %v996, %v1352
      %v1407 = vadd.f32 %v1001, %v1357
      %v1408 = vadd.f32 %v1006, %v1362
      %v1409 = vadd.f32 %v1011, %v1367
      %v1410 = vadd.f32 %v1016, %v1372
      %v1411 = vadd.f32 %v1021, %v1377
      %v1412 = vld [vmem:[%s277 + $0x3] sm:$0xff]
      %v1413 = vld [vmem:[%s277 + $0xb] sm:$0xff]
      %v1414 = vld [vmem:[%s277 + $0x1b] sm:$0xff]
      %v1415 = vld [vmem:[%s277 + $0x23] sm:$0xff]
      %v1416 = vld [vmem:[%s277 + $0x33] sm:$0xff]
      %v1417 = vld [vmem:[%s277 + $0x3b] sm:$0xff]
      %v1418 = vld [vmem:[%s277 + $0x4b] sm:$0xff]
      %v1419 = vld [vmem:[%s277 + $0x53] sm:$0xff]
      %v1420 = vld [vmem:[%s277 + $0x63] sm:$0xff]
      %v1421 = vld [vmem:[%s277 + $0x6b] sm:$0xff]
      %v1422 = vld [vmem:[%s277 + $0x7b] sm:$0xff]
      %v1423 = vld [vmem:[%s277 + $0x83] sm:$0xff]
      %v1424 = vld [vmem:[%s277 + $0x93] sm:$0xff]
      %v1425 = vld [vmem:[%s277 + $0x9b] sm:$0xff]
      %v1426 = vld [vmem:[%s277 + $0xab] sm:$0xff]
      %v1427 = vld [vmem:[%s277 + $0xb3] sm:$0xff]
      %v1428 = vld [vmem:[%s277 + $0xc3] sm:$0xff]
      %v1429 = vld [vmem:[%s277 + $0xcb] sm:$0xff]
      %v1430 = vld [vmem:[%s277 + $0xdb] sm:$0xff]
      %v1431 = vld [vmem:[%s277 + $0xe3] sm:$0xff]
      %v1432 = vld [vmem:[%s277 + $0xf3] sm:$0xff]
      %v1433 = vld [vmem:[%s277 + $0xfb] sm:$0xff]
      %v1434 = vld [vmem:[%s277 + $0x10b] sm:$0xff]
      %v1435 = vld [vmem:[%s277 + $0x113] sm:$0xff]
      %v1436 = vld [vmem:[%s277 + $0x123] sm:$0xff]
      %v1437 = vld [vmem:[%s277 + $0x12b] sm:$0xff]
      %v1438 = vld [vmem:[%s277 + $0x13b] sm:$0xff]
      %v1439 = vld [vmem:[%s277 + $0x143] sm:$0xff]
      %v1440 = vld [vmem:[%s277 + $0x153] sm:$0xff]
      %v1441 = vld [vmem:[%s277 + $0x15b] sm:$0xff]
      %v1442 = vld [vmem:[%s277 + $0x16b] sm:$0xff]
      %v1443 = vld [vmem:[%s277 + $0x173] sm:$0xff]
      %v1445 = vsel %vm374, %v1412, 0
      %v1448 = vsel %vm374, %v1413, 0
      %v1451 = vsel %vm374, %v1414, 0
      %v1454 = vsel %vm374, %v1415, 0
      %v1457 = vsel %vm374, %v1416, 0
      %v1460 = vsel %vm374, %v1417, 0
      %v1463 = vsel %vm374, %v1418, 0
      %v1466 = vsel %vm374, %v1419, 0
      %v1469 = vsel %vm374, %v1420, 0
      %v1472 = vsel %vm374, %v1421, 0
      %v1475 = vsel %vm374, %v1422, 0
      %v1478 = vsel %vm374, %v1423, 0
      %v1481 = vsel %vm374, %v1424, 0
      %v1484 = vsel %vm374, %v1425, 0
      %v1487 = vsel %vm374, %v1426, 0
      %v1490 = vsel %vm374, %v1427, 0
      %v1493 = vsel %vm374, %v1428, 0
      %v1496 = vsel %vm374, %v1429, 0
      %v1499 = vsel %vm374, %v1430, 0
      %v1502 = vsel %vm374, %v1431, 0
      %v1505 = vsel %vm374, %v1432, 0
      %v1508 = vsel %vm374, %v1433, 0
      %v1511 = vsel %vm374, %v1434, 0
      %v1514 = vsel %vm374, %v1435, 0
      %v1517 = vsel %vm374, %v1436, 0
      %v1520 = vsel %vm374, %v1437, 0
      %v1523 = vsel %vm374, %v1438, 0
      %v1526 = vsel %vm374, %v1439, 0
      %v1529 = vsel %vm374, %v1440, 0
      %v1532 = vsel %vm374, %v1441, 0
      %v1535 = vsel %vm374, %v1442, 0
      %v1538 = vsel %vm374, %v1443, 0
      %v1541 = vsel %vm471, %v288, 0
      %1543 = vmatprep.subr.mxu0 0.0
      %1544 = vmatpush1.msra.mxu0 %v1541
      %1545 = vmatprep.subr.mxu0 0.0
      %1546 = vmatpush1.msra.mxu0 0.0
      %1547 = vmatprep.subr.mxu0 0.0
      %1548 = vmatpush1.msra.mxu0 0.0
      %1549 = vmatprep.subr.mxu0 0.0
      %1550 = vmatpush1.msra.mxu0 0.0
      %1551 = vmatprep.subr.mxu0 0.0
      %1552 = vmatpush1.msra.mxu0 0.0
      %1553 = vmatprep.subr.mxu0 0.0
      %1554 = vmatpush1.msra.mxu0 0.0
      %1555 = vmatprep.subr.mxu0 0.0
      %1556 = vmatpush1.msra.mxu0 0.0
      %1557 = vmatprep.subr.mxu0 0.0
      %1558 = vmatpush1.msra.mxu0 0.0
      %1559 = vmatprep.subr.mxu0 0.0
      %1560 = vmatpush1.msra.mxu0 0.0
      %1561 = vmatprep.subr.mxu0 0.0
      %1562 = vmatpush1.msra.mxu0 0.0
      %1563 = vmatprep.subr.mxu0 0.0
      %1564 = vmatpush1.msra.mxu0 0.0
      %1565 = vmatprep.subr.mxu0 0.0
      %1566 = vmatpush1.msra.mxu0 0.0
      %1567 = vmatprep.subr.mxu0 0.0
      %1568 = vmatpush1.msra.mxu0 0.0
      %1569 = vmatprep.subr.mxu0 0.0
      %1570 = vmatpush1.msra.mxu0 0.0
      %1571 = vmatprep.subr.mxu0 0.0
      %1572 = vmatpush1.msra.mxu0 0.0
      %1573 = vmatprep.subr.mxu0 0.0
      %1574 = vmatpush1.msra.mxu0 0.0
      %1575 = vmatprep.subr.mxu0 0.0
      %1576 = vmatpush1.msra.mxu0 0.0
      %1577 = vmatprep.subr.mxu0 0.0
      %1578 = vmatpush1.msra.mxu0 0.0
      %1579 = vmatprep.subr.mxu0 0.0
      %1580 = vmatpush1.msra.mxu0 0.0
      %1581 = vmatprep.subr.mxu0 0.0
      %1582 = vmatpush1.msra.mxu0 0.0
      %1583 = vmatprep.subr.mxu0 0.0
      %1584 = vmatpush1.msra.mxu0 0.0
      %1585 = vmatprep.subr.mxu0 0.0
      %1586 = vmatpush1.msra.mxu0 0.0
      %1587 = vmatprep.subr.mxu0 0.0
      %1588 = vmatpush1.msra.mxu0 0.0
      %1589 = vmatprep.subr.mxu0 0.0
      %1590 = vmatpush1.msra.mxu0 0.0
      %1591 = vmatprep.subr.mxu0 0.0
      %1592 = vmatpush1.msra.mxu0 0.0
      %1593 = vmatprep.subr.mxu0 0.0
      %1594 = vmatpush1.msra.mxu0 0.0
      %1595 = vmatprep.subr.mxu0 0.0
      %1596 = vmatpush1.msra.mxu0 0.0
      %1597 = vmatprep.subr.mxu0 0.0
      %1598 = vmatpush1.msra.mxu0 0.0
      %1599 = vmatprep.subr.mxu0 0.0
      %1600 = vmatpush1.msra.mxu0 0.0
      %1601 = vmatprep.subr.mxu0 0.0
      %1602 = vmatpush1.msra.mxu0 0.0
      %1603 = vmatprep.subr.mxu0 0.0
      %1604 = vmatpush1.msra.mxu0 0.0
      %1605 = vmatprep.subr.mxu0 0.0
      %1606 = vmatpush1.msra.mxu0 0.0
      %1607 = vmatprep.mubr.f32.mxu0 0.0
      %1608 = vmatmul.mubr.f32.gmra.mrb[0].mxu0 %v1445
      %v1609 = vpop.f32.mrb[0].mxu0
      %v1610 = vadd.f32 0.0, %v1609
      %v1611 = vpop.f32.mrb[0].mxu0
      %1612 = vmatprep.mubr.f32.mxu0 0.0
      %1613 = vmatmul.mubr.f32.gmra.mrb[0].mxu0 %v1448
      %v1614 = vpop.f32.mrb[0].mxu0
      %v1615 = vadd.f32 0.0, %v1614
      %v1616 = vpop.f32.mrb[0].mxu0
      %1617 = vmatprep.mubr.f32.mxu0 0.0
      %1618 = vmatmul.mubr.f32.gmra.mrb[0].mxu0 %v1451
      %v1619 = vpop.f32.mrb[0].mxu0
      %v1620 = vadd.f32 0.0, %v1619
      %v1621 = vpop.f32.mrb[0].mxu0
      %1622 = vmatprep.mubr.f32.mxu0 0.0
      %1623 = vmatmul.mubr.f32.gmra.mrb[0].mxu0 %v1454
      %v1624 = vpop.f32.mrb[0].mxu0
      %v1625 = vadd.f32 0.0, %v1624
      %v1626 = vpop.f32.mrb[0].mxu0
      %1627 = vmatprep.mubr.f32.mxu0 0.0
      %1628 = vmatmul.mubr.f32.gmra.mrb[0].mxu0 %v1457
      %v1629 = vpop.f32.mrb[0].mxu0
      %v1630 = vadd.f32 0.0, %v1629
      %v1631 = vpop.f32.mrb[0].mxu0
      %1632 = vmatprep.mubr.f32.mxu0 0.0
      %1633 = vmatmul.mubr.f32.gmra.mrb[0].mxu0 %v1460
      %v1634 = vpop.f32.mrb[0].mxu0
      %v1635 = vadd.f32 0.0, %v1634
      %v1636 = vpop.f32.mrb[0].mxu0
      %1637 = vmatprep.mubr.f32.mxu0 0.0
      %1638 = vmatmul.mubr.f32.gmra.mrb[0].mxu0 %v1463
      %v1639 = vpop.f32.mrb[0].mxu0
      %v1640 = vadd.f32 0.0, %v1639
      %v1641 = vpop.f32.mrb[0].mxu0
      %1642 = vmatprep.mubr.f32.mxu0 0.0
      %1643 = vmatmul.mubr.f32.gmra.mrb[0].mxu0 %v1466
      %v1644 = vpop.f32.mrb[0].mxu0
      %v1645 = vadd.f32 0.0, %v1644
      %v1646 = vpop.f32.mrb[0].mxu0
      %1647 = vmatprep.mubr.f32.mxu0 0.0
      %1648 = vmatmul.mubr.f32.gmra.mrb[0].mxu0 %v1469
      %v1649 = vpop.f32.mrb[0].mxu0
      %v1650 = vadd.f32 0.0, %v1649
      %v1651 = vpop.f32.mrb[0].mxu0
      %1652 = vmatprep.mubr.f32.mxu0 0.0
      %1653 = vmatmul.mubr.f32.gmra.mrb[0].mxu0 %v1472
      %v1654 = vpop.f32.mrb[0].mxu0
      %v1655 = vadd.f32 0.0, %v1654
      %v1656 = vpop.f32.mrb[0].mxu0
      %1657 = vmatprep.mubr.f32.mxu0 0.0
      %1658 = vmatmul.mubr.f32.gmra.mrb[0].mxu0 %v1475
      %v1659 = vpop.f32.mrb[0].mxu0
      %v1660 = vadd.f32 0.0, %v1659
      %v1661 = vpop.f32.mrb[0].mxu0
      %1662 = vmatprep.mubr.f32.mxu0 0.0
      %1663 = vmatmul.mubr.f32.gmra.mrb[0].mxu0 %v1478
      %v1664 = vpop.f32.mrb[0].mxu0
      %v1665 = vadd.f32 0.0, %v1664
      %v1666 = vpop.f32.mrb[0].mxu0
      %1667 = vmatprep.mubr.f32.mxu0 0.0
      %1668 = vmatmul.mubr.f32.gmra.mrb[0].mxu0 %v1481
      %v1669 = vpop.f32.mrb[0].mxu0
      %v1670 = vadd.f32 0.0, %v1669
      %v1671 = vpop.f32.mrb[0].mxu0
      %1672 = vmatprep.mubr.f32.mxu0 0.0
      %1673 = vmatmul.mubr.f32.gmra.mrb[0].mxu0 %v1484
      %v1674 = vpop.f32.mrb[0].mxu0
      %v1675 = vadd.f32 0.0, %v1674
      %v1676 = vpop.f32.mrb[0].mxu0
      %1677 = vmatprep.mubr.f32.mxu0 0.0
      %1678 = vmatmul.mubr.f32.gmra.mrb[0].mxu0 %v1487
      %v1679 = vpop.f32.mrb[0].mxu0
      %v1680 = vadd.f32 0.0, %v1679
      %v1681 = vpop.f32.mrb[0].mxu0
      %1682 = vmatprep.mubr.f32.mxu0 0.0
      %1683 = vmatmul.mubr.f32.gmra.mrb[0].mxu0 %v1490
      %v1684 = vpop.f32.mrb[0].mxu0
      %v1685 = vadd.f32 0.0, %v1684
      %v1686 = vpop.f32.mrb[0].mxu0
      %1687 = vmatprep.mubr.f32.mxu0 0.0
      %1688 = vmatmul.mubr.f32.gmra.mrb[0].mxu0 %v1493
      %v1689 = vpop.f32.mrb[0].mxu0
      %v1690 = vadd.f32 0.0, %v1689
      %v1691 = vpop.f32.mrb[0].mxu0
      %1692 = vmatprep.mubr.f32.mxu0 0.0
      %1693 = vmatmul.mubr.f32.gmra.mrb[0].mxu0 %v1496
      %v1694 = vpop.f32.mrb[0].mxu0
      %v1695 = vadd.f32 0.0, %v1694
      %v1696 = vpop.f32.mrb[0].mxu0
      %1697 = vmatprep.mubr.f32.mxu0 0.0
      %1698 = vmatmul.mubr.f32.gmra.mrb[0].mxu0 %v1499
      %v1699 = vpop.f32.mrb[0].mxu0
      %v1700 = vadd.f32 0.0, %v1699
      %v1701 = vpop.f32.mrb[0].mxu0
      %1702 = vmatprep.mubr.f32.mxu0 0.0
      %1703 = vmatmul.mubr.f32.gmra.mrb[0].mxu0 %v1502
      %v1704 = vpop.f32.mrb[0].mxu0
      %v1705 = vadd.f32 0.0, %v1704
      %v1706 = vpop.f32.mrb[0].mxu0
      %1707 = vmatprep.mubr.f32.mxu0 0.0
      %1708 = vmatmul.mubr.f32.gmra.mrb[0].mxu0 %v1505
      %v1709 = vpop.f32.mrb[0].mxu0
      %v1710 = vadd.f32 0.0, %v1709
      %v1711 = vpop.f32.mrb[0].mxu0
      %1712 = vmatprep.mubr.f32.mxu0 0.0
      %1713 = vmatmul.mubr.f32.gmra.mrb[0].mxu0 %v1508
      %v1714 = vpop.f32.mrb[0].mxu0
      %v1715 = vadd.f32 0.0, %v1714
      %v1716 = vpop.f32.mrb[0].mxu0
      %1717 = vmatprep.mubr.f32.mxu0 0.0
      %1718 = vmatmul.mubr.f32.gmra.mrb[0].mxu0 %v1511
      %v1719 = vpop.f32.mrb[0].mxu0
      %v1720 = vadd.f32 0.0, %v1719
      %v1721 = vpop.f32.mrb[0].mxu0
      %1722 = vmatprep.mubr.f32.mxu0 0.0
      %1723 = vmatmul.mubr.f32.gmra.mrb[0].mxu0 %v1514
      %v1724 = vpop.f32.mrb[0].mxu0
      %v1725 = vadd.f32 0.0, %v1724
      %v1726 = vpop.f32.mrb[0].mxu0
      %1727 = vmatprep.mubr.f32.mxu0 0.0
      %1728 = vmatmul.mubr.f32.gmra.mrb[0].mxu0 %v1517
      %v1729 = vpop.f32.mrb[0].mxu0
      %v1730 = vadd.f32 0.0, %v1729
      %v1731 = vpop.f32.mrb[0].mxu0
      %1732 = vmatprep.mubr.f32.mxu0 0.0
      %1733 = vmatmul.mubr.f32.gmra.mrb[0].mxu0 %v1520
      %v1734 = vpop.f32.mrb[0].mxu0
      %v1735 = vadd.f32 0.0, %v1734
      %v1736 = vpop.f32.mrb[0].mxu0
      %1737 = vmatprep.mubr.f32.mxu0 0.0
      %1738 = vmatmul.mubr.f32.gmra.mrb[0].mxu0 %v1523
      %v1739 = vpop.f32.mrb[0].mxu0
      %v1740 = vadd.f32 0.0, %v1739
      %v1741 = vpop.f32.mrb[0].mxu0
      %1742 = vmatprep.mubr.f32.mxu0 0.0
      %1743 = vmatmul.mubr.f32.gmra.mrb[0].mxu0 %v1526
      %v1744 = vpop.f32.mrb[0].mxu0
      %v1745 = vadd.f32 0.0, %v1744
      %v1746 = vpop.f32.mrb[0].mxu0
      %1747 = vmatprep.mubr.f32.mxu0 0.0
      %1748 = vmatmul.mubr.f32.gmra.mrb[0].mxu0 %v1529
      %v1749 = vpop.f32.mrb[0].mxu0
      %v1750 = vadd.f32 0.0, %v1749
      %v1751 = vpop.f32.mrb[0].mxu0
      %1752 = vmatprep.mubr.f32.mxu0 0.0
      %1753 = vmatmul.mubr.f32.gmra.mrb[0].mxu0 %v1532
      %v1754 = vpop.f32.mrb[0].mxu0
      %v1755 = vadd.f32 0.0, %v1754
      %v1756 = vpop.f32.mrb[0].mxu0
      %1757 = vmatprep.mubr.f32.mxu0 0.0
      %1758 = vmatmul.mubr.f32.gmra.mrb[0].mxu0 %v1535
      %v1759 = vpop.f32.mrb[0].mxu0
      %v1760 = vadd.f32 0.0, %v1759
      %v1761 = vpop.f32.mrb[0].mxu0
      %1762 = vmatprep.mubr.f32.mxu0 0.0
      %1763 = vmatmul.mubr.f32.gmra.mrb[0].mxu0 %v1538
      %v1764 = vpop.f32.mrb[0].mxu0
      %v1765 = vadd.f32 0.0, %v1764
      %v1766 = vpop.f32.mrb[0].mxu0
      %1767 = vdwg.mxu0
      %v1768 = vadd.f32 %v1380, %v1610
      %v1769 = vadd.f32 %v1381, %v1615
      %v1770 = vadd.f32 %v1382, %v1620
      %v1771 = vadd.f32 %v1383, %v1625
      %v1772 = vadd.f32 %v1384, %v1630
      %v1773 = vadd.f32 %v1385, %v1635
      %v1774 = vadd.f32 %v1386, %v1640
      %v1775 = vadd.f32 %v1387, %v1645
      %v1776 = vadd.f32 %v1388, %v1650
      %v1777 = vadd.f32 %v1389, %v1655
      %v1778 = vadd.f32 %v1390, %v1660
      %v1779 = vadd.f32 %v1391, %v1665
      %v1780 = vadd.f32 %v1392, %v1670
      %v1781 = vadd.f32 %v1393, %v1675
      %v1782 = vadd.f32 %v1394, %v1680
      %v1783 = vadd.f32 %v1395, %v1685
      %v1784 = vadd.f32 %v1396, %v1690
      %v1785 = vadd.f32 %v1397, %v1695
      %v1786 = vadd.f32 %v1398, %v1700
      %v1787 = vadd.f32 %v1399, %v1705
      %v1788 = vadd.f32 %v1400, %v1710
      %v1789 = vadd.f32 %v1401, %v1715
      %v1790 = vadd.f32 %v1402, %v1720
      %v1791 = vadd.f32 %v1403, %v1725
      %v1792 = vadd.f32 %v1404, %v1730
      %v1793 = vadd.f32 %v1405, %v1735
      %v1794 = vadd.f32 %v1406, %v1740
      %v1795 = vadd.f32 %v1407, %v1745
      %v1796 = vadd.f32 %v1408, %v1750
      %v1797 = vadd.f32 %v1409, %v1755
      %v1798 = vadd.f32 %v1410, %v1760
      %v1799 = vadd.f32 %v1411, %v1765
      %v1800 = vld [vmem:[%s277 + $0x4] sm:$0xff]
      %v1801 = vld [vmem:[%s277 + $0xc] sm:$0xff]
      %v1802 = vld [vmem:[%s277 + $0x1c] sm:$0xff]
      %v1803 = vld [vmem:[%s277 + $0x24] sm:$0xff]
      %v1804 = vld [vmem:[%s277 + $0x34] sm:$0xff]
      %v1805 = vld [vmem:[%s277 + $0x3c] sm:$0xff]
      %v1806 = vld [vmem:[%s277 + $0x4c] sm:$0xff]
      %v1807 = vld [vmem:[%s277 + $0x54] sm:$0xff]
      %v1808 = vld [vmem:[%s277 + $0x64] sm:$0xff]
      %v1809 = vld [vmem:[%s277 + $0x6c] sm:$0xff]
      %v1810 = vld [vmem:[%s277 + $0x7c] sm:$0xff]
      %v1811 = vld [vmem:[%s277 + $0x84] sm:$0xff]
      %v1812 = vld [vmem:[%s277 + $0x94] sm:$0xff]
      %v1813 = vld [vmem:[%s277 + $0x9c] sm:$0xff]
      %v1814 = vld [vmem:[%s277 + $0xac] sm:$0xff]
      %v1815 = vld [vmem:[%s277 + $0xb4] sm:$0xff]
      %v1816 = vld [vmem:[%s277 + $0xc4] sm:$0xff]
      %v1817 = vld [vmem:[%s277 + $0xcc] sm:$0xff]
      %v1818 = vld [vmem:[%s277 + $0xdc] sm:$0xff]
      %v1819 = vld [vmem:[%s277 + $0xe4] sm:$0xff]
      %v1820 = vld [vmem:[%s277 + $0xf4] sm:$0xff]
      %v1821 = vld [vmem:[%s277 + $0xfc] sm:$0xff]
      %v1822 = vld [vmem:[%s277 + $0x10c] sm:$0xff]
      %v1823 = vld [vmem:[%s277 + $0x114] sm:$0xff]
      %v1824 = vld [vmem:[%s277 + $0x124] sm:$0xff]
      %v1825 = vld [vmem:[%s277 + $0x12c] sm:$0xff]
      %v1826 = vld [vmem:[%s277 + $0x13c] sm:$0xff]
      %v1827 = vld [vmem:[%s277 + $0x144] sm:$0xff]
      %v1828 = vld [vmem:[%s277 + $0x154] sm:$0xff]
      %v1829 = vld [vmem:[%s277 + $0x15c] sm:$0xff]
      %v1830 = vld [vmem:[%s277 + $0x16c] sm:$0xff]
      %v1831 = vld [vmem:[%s277 + $0x174] sm:$0xff]
      %v1833 = vsel %vm374, %v1800, 0
      %v1836 = vsel %vm374, %v1801, 0
      %v1839 = vsel %vm374, %v1802, 0
      %v1842 = vsel %vm374, %v1803, 0
      %v1845 = vsel %vm374, %v1804, 0
      %v1848 = vsel %vm374, %v1805, 0
      %v1851 = vsel %vm374, %v1806, 0
      %v1854 = vsel %vm374, %v1807, 0
      %v1857 = vsel %vm374, %v1808, 0
      %v1860 = vsel %vm374, %v1809, 0
      %v1863 = vsel %vm374, %v1810, 0
      %v1866 = vsel %vm374, %v1811, 0
      %v1869 = vsel %vm374, %v1812, 0
      %v1872 = vsel %vm374, %v1813, 0
      %v1875 = vsel %vm374, %v1814, 0
      %v1878 = vsel %vm374, %v1815, 0
      %v1881 = vsel %vm374, %v1816, 0
      %v1884 = vsel %vm374, %v1817, 0
      %v1887 = vsel %vm374, %v1818, 0
      %v1890 = vsel %vm374, %v1819, 0
      %v1893 = vsel %vm374, %v1820, 0
      %v1896 = vsel %vm374, %v1821, 0
      %v1899 = vsel %vm374, %v1822, 0
      %v1902 = vsel %vm374, %v1823, 0
      %v1905 = vsel %vm374, %v1824, 0
      %v1908 = vsel %vm374, %v1825, 0
      %v1911 = vsel %vm374, %v1826, 0
      %v1914 = vsel %vm374, %v1827, 0
      %v1917 = vsel %vm374, %v1828, 0
      %v1920 = vsel %vm374, %v1829, 0
      %v1923 = vsel %vm374, %v1830, 0
      %v1926 = vsel %vm374, %v1831, 0
      %v1929 = vsel %vm471, %v289, 0
      %1931 = vmatprep.subr.mxu0 0.0
      %1932 = vmatpush1.msra.mxu0 %v1929
      %1933 = vmatprep.subr.mxu0 0.0
      %1934 = vmatpush1.msra.mxu0 0.0
      %1935 = vmatprep.subr.mxu0 0.0
      %1936 = vmatpush1.msra.mxu0 0.0
      %1937 = vmatprep.subr.mxu0 0.0
      %1938 = vmatpush1.msra.mxu0 0.0
      %1939 = vmatprep.subr.mxu0 0.0
      %1940 = vmatpush1.msra.mxu0 0.0
      %1941 = vmatprep.subr.mxu0 0.0
      %1942 = vmatpush1.msra.mxu0 0.0
      %1943 = vmatprep.subr.mxu0 0.0
      %1944 = vmatpush1.msra.mxu0 0.0
      %1945 = vmatprep.subr.mxu0 0.0
      %1946 = vmatpush1.msra.mxu0 0.0
      %1947 = vmatprep.subr.mxu0 0.0
      %1948 = vmatpush1.msra.mxu0 0.0
      %1949 = vmatprep.subr.mxu0 0.0
      %1950 = vmatpush1.msra.mxu0 0.0
      %1951 = vmatprep.subr.mxu0 0.0
      %1952 = vmatpush1.msra.mxu0 0.0
      %1953 = vmatprep.subr.mxu0 0.0
      %1954 = vmatpush1.msra.mxu0 0.0
      %1955 = vmatprep.subr.mxu0 0.0
      %1956 = vmatpush1.msra.mxu0 0.0
      %1957 = vmatprep.subr.mxu0 0.0
      %1958 = vmatpush1.msra.mxu0 0.0
      %1959 = vmatprep.subr.mxu0 0.0
      %1960 = vmatpush1.msra.mxu0 0.0
      %1961 = vmatprep.subr.mxu0 0.0
      %1962 = vmatpush1.msra.mxu0 0.0
      %1963 = vmatprep.subr.mxu0 0.0
      %1964 = vmatpush1.msra.mxu0 0.0
      %1965 = vmatprep.subr.mxu0 0.0
      %1966 = vmatpush1.msra.mxu0 0.0
      %1967 = vmatprep.subr.mxu0 0.0
      %1968 = vmatpush1.msra.mxu0 0.0
      %1969 = vmatprep.subr.mxu0 0.0
      %1970 = vmatpush1.msra.mxu0 0.0
      %1971 = vmatprep.subr.mxu0 0.0
      %1972 = vmatpush1.msra.mxu0 0.0
      %1973 = vmatprep.subr.mxu0 0.0
      %1974 = vmatpush1.msra.mxu0 0.0
      %1975 = vmatprep.subr.mxu0 0.0
      %1976 = vmatpush1.msra.mxu0 0.0
      %1977 = vmatprep.subr.mxu0 0.0
      %1978 = vmatpush1.msra.mxu0 0.0
      %1979 = vmatprep.subr.mxu0 0.0
      %1980 = vmatpush1.msra.mxu0 0.0
      %1981 = vmatprep.subr.mxu0 0.0
      %1982 = vmatpush1.msra.mxu0 0.0
      %1983 = vmatprep.subr.mxu0 0.0
      %1984 = vmatpush1.msra.mxu0 0.0
      %1985 = vmatprep.subr.mxu0 0.0
      %1986 = vmatpush1.msra.mxu0 0.0
      %1987 = vmatprep.subr.mxu0 0.0
      %1988 = vmatpush1.msra.mxu0 0.0
      %1989 = vmatprep.subr.mxu0 0.0
      %1990 = vmatpush1.msra.mxu0 0.0
      %1991 = vmatprep.subr.mxu0 0.0
      %1992 = vmatpush1.msra.mxu0 0.0
      %1993 = vmatprep.subr.mxu0 0.0
      %1994 = vmatpush1.msra.mxu0 0.0
      %1995 = vmatprep.mubr.f32.mxu0 0.0
      %1996 = vmatmul.mubr.f32.gmra.mrb[0].mxu0 %v1833
      %v1997 = vpop.f32.mrb[0].mxu0
      %v1998 = vadd.f32 0.0, %v1997
      %v1999 = vpop.f32.mrb[0].mxu0
      %2000 = vmatprep.mubr.f32.mxu0 0.0
      %2001 = vmatmul.mubr.f32.gmra.mrb[0].mxu0 %v1836
      %v2002 = vpop.f32.mrb[0].mxu0
      %v2003 = vadd.f32 0.0, %v2002
      %v2004 = vpop.f32.mrb[0].mxu0
      %2005 = vmatprep.mubr.f32.mxu0 0.0
      %2006 = vmatmul.mubr.f32.gmra.mrb[0].mxu0 %v1839
      %v2007 = vpop.f32.mrb[0].mxu0
      %v2008 = vadd.f32 0.0, %v2007
      %v2009 = vpop.f32.mrb[0].mxu0
      %2010 = vmatprep.mubr.f32.mxu0 0.0
      %2011 = vmatmul.mubr.f32.gmra.mrb[0].mxu0 %v1842
      %v2012 = vpop.f32.mrb[0].mxu0
      %v2013 = vadd.f32 0.0, %v2012
      %v2014 = vpop.f32.mrb[0].mxu0
      %2015 = vmatprep.mubr.f32.mxu0 0.0
      %2016 = vmatmul.mubr.f32.gmra.mrb[0].mxu0 %v1845
      %v2017 = vpop.f32.mrb[0].mxu0
      %v2018 = vadd.f32 0.0, %v2017
      %v2019 = vpop.f32.mrb[0].mxu0
      %2020 = vmatprep.mubr.f32.mxu0 0.0
      %2021 = vmatmul.mubr.f32.gmra.mrb[0].mxu0 %v1848
      %v2022 = vpop.f32.mrb[0].mxu0
      %v2023 = vadd.f32 0.0, %v2022
      %v2024 = vpop.f32.mrb[0].mxu0
      %2025 = vmatprep.mubr.f32.mxu0 0.0
      %2026 = vmatmul.mubr.f32.gmra.mrb[0].mxu0 %v1851
      %v2027 = vpop.f32.mrb[0].mxu0
      %v2028 = vadd.f32 0.0, %v2027
      %v2029 = vpop.f32.mrb[0].mxu0
      %2030 = vmatprep.mubr.f32.mxu0 0.0
      %2031 = vmatmul.mubr.f32.gmra.mrb[0].mxu0 %v1854
      %v2032 = vpop.f32.mrb[0].mxu0
      %v2033 = vadd.f32 0.0, %v2032
      %v2034 = vpop.f32.mrb[0].mxu0
      %2035 = vmatprep.mubr.f32.mxu0 0.0
      %2036 = vmatmul.mubr.f32.gmra.mrb[0].mxu0 %v1857
      %v2037 = vpop.f32.mrb[0].mxu0
      %v2038 = vadd.f32 0.0, %v2037
      %v2039 = vpop.f32.mrb[0].mxu0
      %2040 = vmatprep.mubr.f32.mxu0 0.0
      %2041 = vmatmul.mubr.f32.gmra.mrb[0].mxu0 %v1860
      %v2042 = vpop.f32.mrb[0].mxu0
      %v2043 = vadd.f32 0.0, %v2042
      %v2044 = vpop.f32.mrb[0].mxu0
      %2045 = vmatprep.mubr.f32.mxu0 0.0
      %2046 = vmatmul.mubr.f32.gmra.mrb[0].mxu0 %v1863
      %v2047 = vpop.f32.mrb[0].mxu0
      %v2048 = vadd.f32 0.0, %v2047
      %v2049 = vpop.f32.mrb[0].mxu0
      %2050 = vmatprep.mubr.f32.mxu0 0.0
      %2051 = vmatmul.mubr.f32.gmra.mrb[0].mxu0 %v1866
      %v2052 = vpop.f32.mrb[0].mxu0
      %v2053 = vadd.f32 0.0, %v2052
      %v2054 = vpop.f32.mrb[0].mxu0
      %2055 = vmatprep.mubr.f32.mxu0 0.0
      %2056 = vmatmul.mubr.f32.gmra.mrb[0].mxu0 %v1869
      %v2057 = vpop.f32.mrb[0].mxu0
      %v2058 = vadd.f32 0.0, %v2057
      %v2059 = vpop.f32.mrb[0].mxu0
      %2060 = vmatprep.mubr.f32.mxu0 0.0
      %2061 = vmatmul.mubr.f32.gmra.mrb[0].mxu0 %v1872
      %v2062 = vpop.f32.mrb[0].mxu0
      %v2063 = vadd.f32 0.0, %v2062
      %v2064 = vpop.f32.mrb[0].mxu0
      %2065 = vmatprep.mubr.f32.mxu0 0.0
      %2066 = vmatmul.mubr.f32.gmra.mrb[0].mxu0 %v1875
      %v2067 = vpop.f32.mrb[0].mxu0
      %v2068 = vadd.f32 0.0, %v2067
      %v2069 = vpop.f32.mrb[0].mxu0
      %2070 = vmatprep.mubr.f32.mxu0 0.0
      %2071 = vmatmul.mubr.f32.gmra.mrb[0].mxu0 %v1878
      %v2072 = vpop.f32.mrb[0].mxu0
      %v2073 = vadd.f32 0.0, %v2072
      %v2074 = vpop.f32.mrb[0].mxu0
      %2075 = vmatprep.mubr.f32.mxu0 0.0
      %2076 = vmatmul.mubr.f32.gmra.mrb[0].mxu0 %v1881
      %v2077 = vpop.f32.mrb[0].mxu0
      %v2078 = vadd.f32 0.0, %v2077
      %v2079 = vpop.f32.mrb[0].mxu0
      %2080 = vmatprep.mubr.f32.mxu0 0.0
      %2081 = vmatmul.mubr.f32.gmra.mrb[0].mxu0 %v1884
      %v2082 = vpop.f32.mrb[0].mxu0
      %v2083 = vadd.f32 0.0, %v2082
      %v2084 = vpop.f32.mrb[0].mxu0
      %2085 = vmatprep.mubr.f32.mxu0 0.0
      %2086 = vmatmul.mubr.f32.gmra.mrb[0].mxu0 %v1887
      %v2087 = vpop.f32.mrb[0].mxu0
      %v2088 = vadd.f32 0.0, %v2087
      %v2089 = vpop.f32.mrb[0].mxu0
      %2090 = vmatprep.mubr.f32.mxu0 0.0
      %2091 = vmatmul.mubr.f32.gmra.mrb[0].mxu0 %v1890
      %v2092 = vpop.f32.mrb[0].mxu0
      %v2093 = vadd.f32 0.0, %v2092
      %v2094 = vpop.f32.mrb[0].mxu0
      %2095 = vmatprep.mubr.f32.mxu0 0.0
      %2096 = vmatmul.mubr.f32.gmra.mrb[0].mxu0 %v1893
      %v2097 = vpop.f32.mrb[0].mxu0
      %v2098 = vadd.f32 0.0, %v2097
      %v2099 = vpop.f32.mrb[0].mxu0
      %2100 = vmatprep.mubr.f32.mxu0 0.0
      %2101 = vmatmul.mubr.f32.gmra.mrb[0].mxu0 %v1896
      %v2102 = vpop.f32.mrb[0].mxu0
      %v2103 = vadd.f32 0.0, %v2102
      %v2104 = vpop.f32.mrb[0].mxu0
      %2105 = vmatprep.mubr.f32.mxu0 0.0
      %2106 = vmatmul.mubr.f32.gmra.mrb[0].mxu0 %v1899
      %v2107 = vpop.f32.mrb[0].mxu0
      %v2108 = vadd.f32 0.0, %v2107
      %v2109 = vpop.f32.mrb[0].mxu0
      %2110 = vmatprep.mubr.f32.mxu0 0.0
      %2111 = vmatmul.mubr.f32.gmra.mrb[0].mxu0 %v1902
      %v2112 = vpop.f32.mrb[0].mxu0
      %v2113 = vadd.f32 0.0, %v2112
      %v2114 = vpop.f32.mrb[0].mxu0
      %2115 = vmatprep.mubr.f32.mxu0 0.0
      %2116 = vmatmul.mubr.f32.gmra.mrb[0].mxu0 %v1905
      %v2117 = vpop.f32.mrb[0].mxu0
      %v2118 = vadd.f32 0.0, %v2117
      %v2119 = vpop.f32.mrb[0].mxu0
      %2120 = vmatprep.mubr.f32.mxu0 0.0
      %2121 = vmatmul.mubr.f32.gmra.mrb[0].mxu0 %v1908
      %v2122 = vpop.f32.mrb[0].mxu0
      %v2123 = vadd.f32 0.0, %v2122
      %v2124 = vpop.f32.mrb[0].mxu0
      %2125 = vmatprep.mubr.f32.mxu0 0.0
      %2126 = vmatmul.mubr.f32.gmra.mrb[0].mxu0 %v1911
      %v2127 = vpop.f32.mrb[0].mxu0
      %v2128 = vadd.f32 0.0, %v2127
      %v2129 = vpop.f32.mrb[0].mxu0
      %2130 = vmatprep.mubr.f32.mxu0 0.0
      %2131 = vmatmul.mubr.f32.gmra.mrb[0].mxu0 %v1914
      %v2132 = vpop.f32.mrb[0].mxu0
      %v2133 = vadd.f32 0.0, %v2132
      %v2134 = vpop.f32.mrb[0].mxu0
      %2135 = vmatprep.mubr.f32.mxu0 0.0
      %2136 = vmatmul.mubr.f32.gmra.mrb[0].mxu0 %v1917
      %v2137 = vpop.f32.mrb[0].mxu0
      %v2138 = vadd.f32 0.0, %v2137
      %v2139 = vpop.f32.mrb[0].mxu0
      %2140 = vmatprep.mubr.f32.mxu0 0.0
      %2141 = vmatmul.mubr.f32.gmra.mrb[0].mxu0 %v1920
      %v2142 = vpop.f32.mrb[0].mxu0
      %v2143 = vadd.f32 0.0, %v2142
      %v2144 = vpop.f32.mrb[0].mxu0
      %2145 = vmatprep.mubr.f32.mxu0 0.0
      %2146 = vmatmul.mubr.f32.gmra.mrb[0].mxu0 %v1923
      %v2147 = vpop.f32.mrb[0].mxu0
      %v2148 = vadd.f32 0.0, %v2147
      %v2149 = vpop.f32.mrb[0].mxu0
      %2150 = vmatprep.mubr.f32.mxu0 0.0
      %2151 = vmatmul.mubr.f32.gmra.mrb[0].mxu0 %v1926
      %v2152 = vpop.f32.mrb[0].mxu0
      %v2153 = vadd.f32 0.0, %v2152
      %v2154 = vpop.f32.mrb[0].mxu0
      %2155 = vdwg.mxu0
      %v2156 = vadd.f32 %v1768, %v1998
      %v2157 = vadd.f32 %v1769, %v2003
      %v2158 = vadd.f32 %v1770, %v2008
      %v2159 = vadd.f32 %v1771, %v2013
      %v2160 = vadd.f32 %v1772, %v2018
      %v2161 = vadd.f32 %v1773, %v2023
      %v2162 = vadd.f32 %v1774, %v2028
      %v2163 = vadd.f32 %v1775, %v2033
      %v2164 = vadd.f32 %v1776, %v2038
      %v2165 = vadd.f32 %v1777, %v2043
      %v2166 = vadd.f32 %v1778, %v2048
      %v2167 = vadd.f32 %v1779, %v2053
      %v2168 = vadd.f32 %v1780, %v2058
      %v2169 = vadd.f32 %v1781, %v2063
      %v2170 = vadd.f32 %v1782, %v2068
      %v2171 = vadd.f32 %v1783, %v2073
      %v2172 = vadd.f32 %v1784, %v2078
      %v2173 = vadd.f32 %v1785, %v2083
      %v2174 = vadd.f32 %v1786, %v2088
      %v2175 = vadd.f32 %v1787, %v2093
      %v2176 = vadd.f32 %v1788, %v2098
      %v2177 = vadd.f32 %v1789, %v2103
      %v2178 = vadd.f32 %v1790, %v2108
      %v2179 = vadd.f32 %v1791, %v2113
      %v2180 = vadd.f32 %v1792, %v2118
      %v2181 = vadd.f32 %v1793, %v2123
      %v2182 = vadd.f32 %v1794, %v2128
      %v2183 = vadd.f32 %v1795, %v2133
      %v2184 = vadd.f32 %v1796, %v2138
      %v2185 = vadd.f32 %v1797, %v2143
      %v2186 = vadd.f32 %v1798, %v2148
      %v2187 = vadd.f32 %v1799, %v2153
      %v2188 = vld [vmem:[%s2] sm:$0x1]
      %v2190 = vlaneseq
      %v2191 = vshrl.u32 %v2190, 7
      %v2192 = vsub.s32 0, %v2191
      %v2193 = vrot.slane %v2188, %v2192
      %v2195 = vadd.f32 %v2156, %v2193
      %v2196 = vadd.f32 %v2157, %v2193
      %v2197 = vadd.f32 %v2158, %v2193
      %v2198 = vadd.f32 %v2159, %v2193
      %v2199 = vadd.f32 %v2160, %v2193
      %v2200 = vadd.f32 %v2161, %v2193
      %v2201 = vadd.f32 %v2162, %v2193
      %v2202 = vadd.f32 %v2163, %v2193
      %v2203 = vadd.f32 %v2164, %v2193
      %v2204 = vadd.f32 %v2165, %v2193
      %v2205 = vadd.f32 %v2166, %v2193
      %v2206 = vadd.f32 %v2167, %v2193
      %v2207 = vadd.f32 %v2168, %v2193
      %v2208 = vadd.f32 %v2169, %v2193
      %v2209 = vadd.f32 %v2170, %v2193
      %v2210 = vadd.f32 %v2171, %v2193
      %v2211 = vadd.f32 %v2172, %v2193
      %v2212 = vadd.f32 %v2173, %v2193
      %v2213 = vadd.f32 %v2174, %v2193
      %v2214 = vadd.f32 %v2175, %v2193
      %v2215 = vadd.f32 %v2176, %v2193
      %v2216 = vadd.f32 %v2177, %v2193
      %v2217 = vadd.f32 %v2178, %v2193
      %v2218 = vadd.f32 %v2179, %v2193
      %v2219 = vadd.f32 %v2180, %v2193
      %v2220 = vadd.f32 %v2181, %v2193
      %v2221 = vadd.f32 %v2182, %v2193
      %v2222 = vadd.f32 %v2183, %v2193
      %v2223 = vadd.f32 %v2184, %v2193
      %v2224 = vadd.f32 %v2185, %v2193
      %v2225 = vadd.f32 %v2186, %v2193
      %v2226 = vadd.f32 %v2187, %v2193
      %v2227 = vmax.f32 %v2195, 0.0
      %v2228 = vmax.f32 %v2196, 0.0
      %v2229 = vmax.f32 %v2197, 0.0
      %v2230 = vmax.f32 %v2198, 0.0
      %v2231 = vmax.f32 %v2199, 0.0
      %v2232 = vmax.f32 %v2200, 0.0
      %v2233 = vmax.f32 %v2201, 0.0
      %v2234 = vmax.f32 %v2202, 0.0
      %v2235 = vmax.f32 %v2203, 0.0
      %v2236 = vmax.f32 %v2204, 0.0
      %v2237 = vmax.f32 %v2205, 0.0
      %v2238 = vmax.f32 %v2206, 0.0
      %v2239 = vmax.f32 %v2207, 0.0
      %v2240 = vmax.f32 %v2208, 0.0
      %v2241 = vmax.f32 %v2209, 0.0
      %v2242 = vmax.f32 %v2210, 0.0
      %v2243 = vmax.f32 %v2211, 0.0
      %v2244 = vmax.f32 %v2212, 0.0
      %v2245 = vmax.f32 %v2213, 0.0
      %v2246 = vmax.f32 %v2214, 0.0
      %v2247 = vmax.f32 %v2215, 0.0
      %v2248 = vmax.f32 %v2216, 0.0
      %v2249 = vmax.f32 %v2217, 0.0
      %v2250 = vmax.f32 %v2218, 0.0
      %v2251 = vmax.f32 %v2219, 0.0
      %v2252 = vmax.f32 %v2220, 0.0
      %v2253 = vmax.f32 %v2221, 0.0
      %v2254 = vmax.f32 %v2222, 0.0
      %v2255 = vmax.f32 %v2223, 0.0
      %v2256 = vmax.f32 %v2224, 0.0
      %v2257 = vmax.f32 %v2225, 0.0
      %v2258 = vmax.f32 %v2226, 0.0
      %vm2259 = vcmask 261120
      %2260 = vst.msk [vmem:[#allocation2] sm:$0xff] %vm2259, 0.0
      %2261 = vst.msk [vmem:[#allocation2 + $0x20] sm:$0xff] %vm2259, 0.0
      %2262 = vst.msk [vmem:[#allocation2 + $0x40] sm:$0xff] %vm2259, 0.0
      %2263 = vst.msk [vmem:[#allocation2 + $0x60] sm:$0xff] %vm2259, 0.0
      %2264 = vst.msk [vmem:[#allocation2 + $0x80] sm:$0xff] %vm2259, 0.0
      %2265 = vst.msk [vmem:[#allocation2 + $0xa0] sm:$0xff] %vm2259, 0.0
      %2266 = vst.msk [vmem:[#allocation2 + $0xc0] sm:$0xff] %vm2259, 0.0
      %2267 = vst.msk [vmem:[#allocation2 + $0xe0] sm:$0xff] %vm2259, 0.0
      %2268 = vst.msk [vmem:[#allocation2 + $0x100] sm:$0xff] %vm2259, 0.0
      %2269 = vst.msk [vmem:[#allocation2 + $0x120] sm:$0xff] %vm2259, 0.0
      %2270 = vst.msk [vmem:[#allocation2 + $0x140] sm:$0xff] %vm2259, 0.0
      %2271 = vst.msk [vmem:[#allocation2 + $0x160] sm:$0xff] %vm2259, 0.0
      %2272 = vst.msk [vmem:[#allocation2 + $0x180] sm:$0xff] %vm2259, 0.0
      %2273 = vst.msk [vmem:[#allocation2 + $0x1a0] sm:$0xff] %vm2259, 0.0
      %2274 = vst.msk [vmem:[#allocation2 + $0x1c0] sm:$0xff] %vm2259, 0.0
      %2275 = vst.msk [vmem:[#allocation2 + $0x1e0] sm:$0xff] %vm2259, 0.0
      %2276 = vst.msk [vmem:[#allocation2 + $0x18] sm:$0xff] %vm2259, 0.0
      %2277 = vst.msk [vmem:[#allocation2 + $0x38] sm:$0xff] %vm2259, 0.0
      %2278 = vst.msk [vmem:[#allocation2 + $0x58] sm:$0xff] %vm2259, 0.0
      %2279 = vst.msk [vmem:[#allocation2 + $0x78] sm:$0xff] %vm2259, 0.0
      %2280 = vst.msk [vmem:[#allocation2 + $0x98] sm:$0xff] %vm2259, 0.0
      %2281 = vst.msk [vmem:[#allocation2 + $0xb8] sm:$0xff] %vm2259, 0.0
      %2282 = vst.msk [vmem:[#allocation2 + $0xd8] sm:$0xff] %vm2259, 0.0
      %2283 = vst.msk [vmem:[#allocation2 + $0xf8] sm:$0xff] %vm2259, 0.0
      %2284 = vst.msk [vmem:[#allocation2 + $0x118] sm:$0xff] %vm2259, 0.0
      %2285 = vst.msk [vmem:[#allocation2 + $0x138] sm:$0xff] %vm2259, 0.0
      %2286 = vst.msk [vmem:[#allocation2 + $0x158] sm:$0xff] %vm2259, 0.0
      %2287 = vst.msk [vmem:[#allocation2 + $0x178] sm:$0xff] %vm2259, 0.0
      %2288 = vst.msk [vmem:[#allocation2 + $0x198] sm:$0xff] %vm2259, 0.0
      %2289 = vst.msk [vmem:[#allocation2 + $0x1b8] sm:$0xff] %vm2259, 0.0
      %2290 = vst.msk [vmem:[#allocation2 + $0x1d8] sm:$0xff] %vm2259, 0.0
      %2291 = vst.msk [vmem:[#allocation2 + $0x1f8] sm:$0xff] %vm2259, 0.0
      %2292 = vst.msk [vmem:[#allocation2 + $0x8] sm:$0xff] %vm2259, %v2227
      %2293 = vst.msk [vmem:[#allocation2 + $0x10] sm:$0xff] %vm2259, %v2228
      %2294 = vst.msk [vmem:[#allocation2 + $0x28] sm:$0xff] %vm2259, %v2229
      %2295 = vst.msk [vmem:[#allocation2 + $0x30] sm:$0xff] %vm2259, %v2230
      %2296 = vst.msk [vmem:[#allocation2 + $0x48] sm:$0xff] %vm2259, %v2231
      %2297 = vst.msk [vmem:[#allocation2 + $0x50] sm:$0xff] %vm2259, %v2232
      %2298 = vst.msk [vmem:[#allocation2 + $0x68] sm:$0xff] %vm2259, %v2233
      %2299 = vst.msk [vmem:[#allocation2 + $0x70] sm:$0xff] %vm2259, %v2234
      %2300 = vst.msk [vmem:[#allocation2 + $0x88] sm:$0xff] %vm2259, %v2235
      %2301 = vst.msk [vmem:[#allocation2 + $0x90] sm:$0xff] %vm2259, %v2236
      %2302 = vst.msk [vmem:[#allocation2 + $0xa8] sm:$0xff] %vm2259, %v2237
      %2303 = vst.msk [vmem:[#allocation2 + $0xb0] sm:$0xff] %vm2259, %v2238
      %2304 = vst.msk [vmem:[#allocation2 + $0xc8] sm:$0xff] %vm2259, %v2239
      %2305 = vst.msk [vmem:[#allocation2 + $0xd0] sm:$0xff] %vm2259, %v2240
      %2306 = vst.msk [vmem:[#allocation2 + $0xe8] sm:$0xff] %vm2259, %v2241
      %2307 = vst.msk [vmem:[#allocation2 + $0xf0] sm:$0xff] %vm2259, %v2242
      %2308 = vst.msk [vmem:[#allocation2 + $0x108] sm:$0xff] %vm2259, %v2243
      %2309 = vst.msk [vmem:[#allocation2 + $0x110] sm:$0xff] %vm2259, %v2244
      %2310 = vst.msk [vmem:[#allocation2 + $0x128] sm:$0xff] %vm2259, %v2245
      %2311 = vst.msk [vmem:[#allocation2 + $0x130] sm:$0xff] %vm2259, %v2246
      %2312 = vst.msk [vmem:[#allocation2 + $0x148] sm:$0xff] %vm2259, %v2247
      %2313 = vst.msk [vmem:[#allocation2 + $0x150] sm:$0xff] %vm2259, %v2248
      %2314 = vst.msk [vmem:[#allocation2 + $0x168] sm:$0xff] %vm2259, %v2249
      %2315 = vst.msk [vmem:[#allocation2 + $0x170] sm:$0xff] %vm2259, %v2250
      %2316 = vst.msk [vmem:[#allocation2 + $0x188] sm:$0xff] %vm2259, %v2251
      %2317 = vst.msk [vmem:[#allocation2 + $0x190] sm:$0xff] %vm2259, %v2252
      %2318 = vst.msk [vmem:[#allocation2 + $0x1a8] sm:$0xff] %vm2259, %v2253
      %2319 = vst.msk [vmem:[#allocation2 + $0x1b0] sm:$0xff] %vm2259, %v2254
      %2320 = vst.msk [vmem:[#allocation2 + $0x1c8] sm:$0xff] %vm2259, %v2255
      %2321 = vst.msk [vmem:[#allocation2 + $0x1d0] sm:$0xff] %vm2259, %v2256
      %2322 = vst.msk [vmem:[#allocation2 + $0x1e8] sm:$0xff] %vm2259, %v2257
      %2323 = vst.msk [vmem:[#allocation2 + $0x1f0] sm:$0xff] %vm2259, %v2258
      %v2324 = vld [vmem:[%s4] sm:$0x1]
      %v2326 = vlaneseq
      %v2327 = vshrl.u32 %v2326, 7
      %v2328 = vsub.s32 0, %v2327
      %v2329 = vrot.slane %v2324, %v2328
      %v2331 = vadd.f32 %v2227, %v2329
      %v2332 = vadd.f32 %v2228, %v2329
      %v2333 = vadd.f32 %v2229, %v2329
      %v2334 = vadd.f32 %v2230, %v2329
      %v2335 = vadd.f32 %v2231, %v2329
      %v2336 = vadd.f32 %v2232, %v2329
      %v2337 = vadd.f32 %v2233, %v2329
      %v2338 = vadd.f32 %v2234, %v2329
      %v2339 = vadd.f32 %v2235, %v2329
      %v2340 = vadd.f32 %v2236, %v2329
      %v2341 = vadd.f32 %v2237, %v2329
      %v2342 = vadd.f32 %v2238, %v2329
      %v2343 = vadd.f32 %v2239, %v2329
      %v2344 = vadd.f32 %v2240, %v2329
      %v2345 = vadd.f32 %v2241, %v2329
      %v2346 = vadd.f32 %v2242, %v2329
      %v2347 = vadd.f32 %v2243, %v2329
      %v2348 = vadd.f32 %v2244, %v2329
      %v2349 = vadd.f32 %v2245, %v2329
      %v2350 = vadd.f32 %v2246, %v2329
      %v2351 = vadd.f32 %v2247, %v2329
      %v2352 = vadd.f32 %v2248, %v2329
      %v2353 = vadd.f32 %v2249, %v2329
      %v2354 = vadd.f32 %v2250, %v2329
      %v2355 = vadd.f32 %v2251, %v2329
      %v2356 = vadd.f32 %v2252, %v2329
      %v2357 = vadd.f32 %v2253, %v2329
      %v2358 = vadd.f32 %v2254, %v2329
      %v2359 = vadd.f32 %v2255, %v2329
      %v2360 = vadd.f32 %v2256, %v2329
      %v2361 = vadd.f32 %v2257, %v2329
      %v2362 = vadd.f32 %v2258, %v2329
      %v2363 = vld [vmem:[#allocation2 + $0x6] sm:$0xff]
      %v2364 = vld [vmem:[#allocation2 + $0xe] sm:$0xff]
      %v2365 = vld [vmem:[#allocation2 + $0x26] sm:$0xff]
      %v2366 = vld [vmem:[#allocation2 + $0x2e] sm:$0xff]
      %v2367 = vld [vmem:[#allocation2 + $0x46] sm:$0xff]
      %v2368 = vld [vmem:[#allocation2 + $0x4e] sm:$0xff]
      %v2369 = vld [vmem:[#allocation2 + $0x66] sm:$0xff]
      %v2370 = vld [vmem:[#allocation2 + $0x6e] sm:$0xff]
      %v2371 = vld [vmem:[#allocation2 + $0x86] sm:$0xff]
      %v2372 = vld [vmem:[#allocation2 + $0x8e] sm:$0xff]
      %v2373 = vld [vmem:[#allocation2 + $0xa6] sm:$0xff]
      %v2374 = vld [vmem:[#allocation2 + $0xae] sm:$0xff]
      %v2375 = vld [vmem:[#allocation2 + $0xc6] sm:$0xff]
      %v2376 = vld [vmem:[#allocation2 + $0xce] sm:$0xff]
      %v2377 = vld [vmem:[#allocation2 + $0xe6] sm:$0xff]
      %v2378 = vld [vmem:[#allocation2 + $0xee] sm:$0xff]
      %v2379 = vld [vmem:[#allocation2 + $0x106] sm:$0xff]
      %v2380 = vld [vmem:[#allocation2 + $0x10e] sm:$0xff]
      %v2381 = vld [vmem:[#allocation2 + $0x126] sm:$0xff]
      %v2382 = vld [vmem:[#allocation2 + $0x12e] sm:$0xff]
      %v2383 = vld [vmem:[#allocation2 + $0x146] sm:$0xff]
      %v2384 = vld [vmem:[#allocation2 + $0x14e] sm:$0xff]
      %v2385 = vld [vmem:[#allocation2 + $0x166] sm:$0xff]
      %v2386 = vld [vmem:[#allocation2 + $0x16e] sm:$0xff]
      %v2387 = vld [vmem:[#allocation2 + $0x186] sm:$0xff]
      %v2388 = vld [vmem:[#allocation2 + $0x18e] sm:$0xff]
      %v2389 = vld [vmem:[#allocation2 + $0x1a6] sm:$0xff]
      %v2390 = vld [vmem:[#allocation2 + $0x1ae] sm:$0xff]
      %v2391 = vld [vmem:[#allocation2 + $0x1c6] sm:$0xff]
      %v2392 = vld [vmem:[#allocation2 + $0x1ce] sm:$0xff]
      %v2393 = vld [vmem:[#allocation2 + $0x1e6] sm:$0xff]
      %v2394 = vld [vmem:[#allocation2 + $0x1ee] sm:$0xff]
      %v2396 = vsel %vm2259, %v2363, 0
      %v2399 = vsel %vm2259, %v2364, 0
      %v2402 = vsel %vm2259, %v2365, 0
      %v2405 = vsel %vm2259, %v2366, 0
      %v2408 = vsel %vm2259, %v2367, 0
      %v2411 = vsel %vm2259, %v2368, 0
      %v2414 = vsel %vm2259, %v2369, 0
      %v2417 = vsel %vm2259, %v2370, 0
      %v2420 = vsel %vm2259, %v2371, 0
      %v2423 = vsel %vm2259, %v2372, 0
      %v2426 = vsel %vm2259, %v2373, 0
      %v2429 = vsel %vm2259, %v2374, 0
      %v2432 = vsel %vm2259, %v2375, 0
      %v2435 = vsel %vm2259, %v2376, 0
      %v2438 = vsel %vm2259, %v2377, 0
      %v2441 = vsel %vm2259, %v2378, 0
      %v2444 = vsel %vm2259, %v2379, 0
      %v2447 = vsel %vm2259, %v2380, 0
      %v2450 = vsel %vm2259, %v2381, 0
      %v2453 = vsel %vm2259, %v2382, 0
      %v2456 = vsel %vm2259, %v2383, 0
      %v2459 = vsel %vm2259, %v2384, 0
      %v2462 = vsel %vm2259, %v2385, 0
      %v2465 = vsel %vm2259, %v2386, 0
      %v2468 = vsel %vm2259, %v2387, 0
      %v2471 = vsel %vm2259, %v2388, 0
      %v2474 = vsel %vm2259, %v2389, 0
      %v2477 = vsel %vm2259, %v2390, 0
      %v2480 = vsel %vm2259, %v2391, 0
      %v2483 = vsel %vm2259, %v2392, 0
      %v2486 = vsel %vm2259, %v2393, 0
      %v2489 = vsel %vm2259, %v2394, 0
      %2491 = vmatprep.subr.mxu0 0.0
      %2492 = vmatpush1.msra.mxu0 %v290
      %2493 = vmatprep.subr.mxu0 0.0
      %2494 = vmatpush1.msra.mxu0 %v291
      %2495 = vmatprep.subr.mxu0 0.0
      %2496 = vmatpush1.msra.mxu0 %v292
      %2497 = vmatprep.subr.mxu0 0.0
      %2498 = vmatpush1.msra.mxu0 %v293
      %2499 = vmatprep.subr.mxu0 0.0
      %2500 = vmatpush1.msra.mxu0 0.0
      %2501 = vmatprep.subr.mxu0 0.0
      %2502 = vmatpush1.msra.mxu0 0.0
      %2503 = vmatprep.subr.mxu0 0.0
      %2504 = vmatpush1.msra.mxu0 0.0
      %2505 = vmatprep.subr.mxu0 0.0
      %2506 = vmatpush1.msra.mxu0 0.0
      %2507 = vmatprep.subr.mxu0 0.0
      %2508 = vmatpush1.msra.mxu0 0.0
      %2509 = vmatprep.subr.mxu0 0.0
      %2510 = vmatpush1.msra.mxu0 0.0
      %2511 = vmatprep.subr.mxu0 0.0
      %2512 = vmatpush1.msra.mxu0 0.0
      %2513 = vmatprep.subr.mxu0 0.0
      %2514 = vmatpush1.msra.mxu0 0.0
      %2515 = vmatprep.subr.mxu0 0.0
      %2516 = vmatpush1.msra.mxu0 0.0
      %2517 = vmatprep.subr.mxu0 0.0
      %2518 = vmatpush1.msra.mxu0 0.0
      %2519 = vmatprep.subr.mxu0 0.0
      %2520 = vmatpush1.msra.mxu0 0.0
      %2521 = vmatprep.subr.mxu0 0.0
      %2522 = vmatpush1.msra.mxu0 0.0
      %2523 = vmatprep.subr.mxu0 0.0
      %2524 = vmatpush1.msra.mxu0 0.0
      %2525 = vmatprep.subr.mxu0 0.0
      %2526 = vmatpush1.msra.mxu0 0.0
      %2527 = vmatprep.subr.mxu0 0.0
      %2528 = vmatpush1.msra.mxu0 0.0
      %2529 = vmatprep.subr.mxu0 0.0
      %2530 = vmatpush1.msra.mxu0 0.0
      %2531 = vmatprep.subr.mxu0 0.0
      %2532 = vmatpush1.msra.mxu0 0.0
      %2533 = vmatprep.subr.mxu0 0.0
      %2534 = vmatpush1.msra.mxu0 0.0
      %2535 = vmatprep.subr.mxu0 0.0
      %2536 = vmatpush1.msra.mxu0 0.0
      %2537 = vmatprep.subr.mxu0 0.0
      %2538 = vmatpush1.msra.mxu0 0.0
      %2539 = vmatprep.subr.mxu0 0.0
      %2540 = vmatpush1.msra.mxu0 0.0
      %2541 = vmatprep.subr.mxu0 0.0
      %2542 = vmatpush1.msra.mxu0 0.0
      %2543 = vmatprep.subr.mxu0 0.0
      %2544 = vmatpush1.msra.mxu0 0.0
      %2545 = vmatprep.subr.mxu0 0.0
      %2546 = vmatpush1.msra.mxu0 0.0
      %2547 = vmatprep.subr.mxu0 0.0
      %2548 = vmatpush1.msra.mxu0 0.0
      %2549 = vmatprep.subr.mxu0 0.0
      %2550 = vmatpush1.msra.mxu0 0.0
      %2551 = vmatprep.subr.mxu0 0.0
      %2552 = vmatpush1.msra.mxu0 0.0
      %2553 = vmatprep.subr.mxu0 0.0
      %2554 = vmatpush1.msra.mxu0 0.0
      %2555 = vmatprep.mubr.f32.mxu0 0.0
      %2556 = vmatmul.mubr.f32.gmra.mrb[0].mxu0 %v2396
      %v2557 = vpop.f32.mrb[0].mxu0
      %v2558 = vadd.f32 0.0, %v2557
      %v2559 = vpop.f32.mrb[0].mxu0
      %2560 = vmatprep.mubr.f32.mxu0 0.0
      %2561 = vmatmul.mubr.f32.gmra.mrb[0].mxu0 %v2399
      %v2562 = vpop.f32.mrb[0].mxu0
      %v2563 = vadd.f32 0.0, %v2562
      %v2564 = vpop.f32.mrb[0].mxu0
      %2565 = vmatprep.mubr.f32.mxu0 0.0
      %2566 = vmatmul.mubr.f32.gmra.mrb[0].mxu0 %v2402
      %v2567 = vpop.f32.mrb[0].mxu0
      %v2568 = vadd.f32 0.0, %v2567
      %v2569 = vpop.f32.mrb[0].mxu0
      %2570 = vmatprep.mubr.f32.mxu0 0.0
      %2571 = vmatmul.mubr.f32.gmra.mrb[0].mxu0 %v2405
      %v2572 = vpop.f32.mrb[0].mxu0
      %v2573 = vadd.f32 0.0, %v2572
      %v2574 = vpop.f32.mrb[0].mxu0
      %2575 = vmatprep.mubr.f32.mxu0 0.0
      %2576 = vmatmul.mubr.f32.gmra.mrb[0].mxu0 %v2408
      %v2577 = vpop.f32.mrb[0].mxu0
      %v2578 = vadd.f32 0.0, %v2577
      %v2579 = vpop.f32.mrb[0].mxu0
      %2580 = vmatprep.mubr.f32.mxu0 0.0
      %2581 = vmatmul.mubr.f32.gmra.mrb[0].mxu0 %v2411
      %v2582 = vpop.f32.mrb[0].mxu0
      %v2583 = vadd.f32 0.0, %v2582
      %v2584 = vpop.f32.mrb[0].mxu0
      %2585 = vmatprep.mubr.f32.mxu0 0.0
      %2586 = vmatmul.mubr.f32.gmra.mrb[0].mxu0 %v2414
      %v2587 = vpop.f32.mrb[0].mxu0
      %v2588 = vadd.f32 0.0, %v2587
      %v2589 = vpop.f32.mrb[0].mxu0
      %2590 = vmatprep.mubr.f32.mxu0 0.0
      %2591 = vmatmul.mubr.f32.gmra.mrb[0].mxu0 %v2417
      %v2592 = vpop.f32.mrb[0].mxu0
      %v2593 = vadd.f32 0.0, %v2592
      %v2594 = vpop.f32.mrb[0].mxu0
      %2595 = vmatprep.mubr.f32.mxu0 0.0
      %2596 = vmatmul.mubr.f32.gmra.mrb[0].mxu0 %v2420
      %v2597 = vpop.f32.mrb[0].mxu0
      %v2598 = vadd.f32 0.0, %v2597
      %v2599 = vpop.f32.mrb[0].mxu0
      %2600 = vmatprep.mubr.f32.mxu0 0.0
      %2601 = vmatmul.mubr.f32.gmra.mrb[0].mxu0 %v2423
      %v2602 = vpop.f32.mrb[0].mxu0
      %v2603 = vadd.f32 0.0, %v2602
      %v2604 = vpop.f32.mrb[0].mxu0
      %2605 = vmatprep.mubr.f32.mxu0 0.0
      %2606 = vmatmul.mubr.f32.gmra.mrb[0].mxu0 %v2426
      %v2607 = vpop.f32.mrb[0].mxu0
      %v2608 = vadd.f32 0.0, %v2607
      %v2609 = vpop.f32.mrb[0].mxu0
      %2610 = vmatprep.mubr.f32.mxu0 0.0
      %2611 = vmatmul.mubr.f32.gmra.mrb[0].mxu0 %v2429
      %v2612 = vpop.f32.mrb[0].mxu0
      %v2613 = vadd.f32 0.0, %v2612
      %v2614 = vpop.f32.mrb[0].mxu0
      %2615 = vmatprep.mubr.f32.mxu0 0.0
      %2616 = vmatmul.mubr.f32.gmra.mrb[0].mxu0 %v2432
      %v2617 = vpop.f32.mrb[0].mxu0
      %v2618 = vadd.f32 0.0, %v2617
      %v2619 = vpop.f32.mrb[0].mxu0
      %2620 = vmatprep.mubr.f32.mxu0 0.0
      %2621 = vmatmul.mubr.f32.gmra.mrb[0].mxu0 %v2435
      %v2622 = vpop.f32.mrb[0].mxu0
      %v2623 = vadd.f32 0.0, %v2622
      %v2624 = vpop.f32.mrb[0].mxu0
      %2625 = vmatprep.mubr.f32.mxu0 0.0
      %2626 = vmatmul.mubr.f32.gmra.mrb[0].mxu0 %v2438
      %v2627 = vpop.f32.mrb[0].mxu0
      %v2628 = vadd.f32 0.0, %v2627
      %v2629 = vpop.f32.mrb[0].mxu0
      %2630 = vmatprep.mubr.f32.mxu0 0.0
      %2631 = vmatmul.mubr.f32.gmra.mrb[0].mxu0 %v2441
      %v2632 = vpop.f32.mrb[0].mxu0
      %v2633 = vadd.f32 0.0, %v2632
      %v2634 = vpop.f32.mrb[0].mxu0
      %2635 = vmatprep.mubr.f32.mxu0 0.0
      %2636 = vmatmul.mubr.f32.gmra.mrb[0].mxu0 %v2444
      %v2637 = vpop.f32.mrb[0].mxu0
      %v2638 = vadd.f32 0.0, %v2637
      %v2639 = vpop.f32.mrb[0].mxu0
      %2640 = vmatprep.mubr.f32.mxu0 0.0
      %2641 = vmatmul.mubr.f32.gmra.mrb[0].mxu0 %v2447
      %v2642 = vpop.f32.mrb[0].mxu0
      %v2643 = vadd.f32 0.0, %v2642
      %v2644 = vpop.f32.mrb[0].mxu0
      %2645 = vmatprep.mubr.f32.mxu0 0.0
      %2646 = vmatmul.mubr.f32.gmra.mrb[0].mxu0 %v2450
      %v2647 = vpop.f32.mrb[0].mxu0
      %v2648 = vadd.f32 0.0, %v2647
      %v2649 = vpop.f32.mrb[0].mxu0
      %2650 = vmatprep.mubr.f32.mxu0 0.0
      %2651 = vmatmul.mubr.f32.gmra.mrb[0].mxu0 %v2453
      %v2652 = vpop.f32.mrb[0].mxu0
      %v2653 = vadd.f32 0.0, %v2652
      %v2654 = vpop.f32.mrb[0].mxu0
      %2655 = vmatprep.mubr.f32.mxu0 0.0
      %2656 = vmatmul.mubr.f32.gmra.mrb[0].mxu0 %v2456
      %v2657 = vpop.f32.mrb[0].mxu0
      %v2658 = vadd.f32 0.0, %v2657
      %v2659 = vpop.f32.mrb[0].mxu0
      %2660 = vmatprep.mubr.f32.mxu0 0.0
      %2661 = vmatmul.mubr.f32.gmra.mrb[0].mxu0 %v2459
      %v2662 = vpop.f32.mrb[0].mxu0
      %v2663 = vadd.f32 0.0, %v2662
      %v2664 = vpop.f32.mrb[0].mxu0
      %2665 = vmatprep.mubr.f32.mxu0 0.0
      %2666 = vmatmul.mubr.f32.gmra.mrb[0].mxu0 %v2462
      %v2667 = vpop.f32.mrb[0].mxu0
      %v2668 = vadd.f32 0.0, %v2667
      %v2669 = vpop.f32.mrb[0].mxu0
      %2670 = vmatprep.mubr.f32.mxu0 0.0
      %2671 = vmatmul.mubr.f32.gmra.mrb[0].mxu0 %v2465
      %v2672 = vpop.f32.mrb[0].mxu0
      %v2673 = vadd.f32 0.0, %v2672
      %v2674 = vpop.f32.mrb[0].mxu0
      %2675 = vmatprep.mubr.f32.mxu0 0.0
      %2676 = vmatmul.mubr.f32.gmra.mrb[0].mxu0 %v2468
      %v2677 = vpop.f32.mrb[0].mxu0
      %v2678 = vadd.f32 0.0, %v2677
      %v2679 = vpop.f32.mrb[0].mxu0
      %2680 = vmatprep.mubr.f32.mxu0 0.0
      %2681 = vmatmul.mubr.f32.gmra.mrb[0].mxu0 %v2471
      %v2682 = vpop.f32.mrb[0].mxu0
      %v2683 = vadd.f32 0.0, %v2682
      %v2684 = vpop.f32.mrb[0].mxu0
      %2685 = vmatprep.mubr.f32.mxu0 0.0
      %2686 = vmatmul.mubr.f32.gmra.mrb[0].mxu0 %v2474
      %v2687 = vpop.f32.mrb[0].mxu0
      %v2688 = vadd.f32 0.0, %v2687
      %v2689 = vpop.f32.mrb[0].mxu0
      %2690 = vmatprep.mubr.f32.mxu0 0.0
      %2691 = vmatmul.mubr.f32.gmra.mrb[0].mxu0 %v2477
      %v2692 = vpop.f32.mrb[0].mxu0
      %v2693 = vadd.f32 0.0, %v2692
      %v2694 = vpop.f32.mrb[0].mxu0
      %2695 = vmatprep.mubr.f32.mxu0 0.0
      %2696 = vmatmul.mubr.f32.gmra.mrb[0].mxu0 %v2480
      %v2697 = vpop.f32.mrb[0].mxu0
      %v2698 = vadd.f32 0.0, %v2697
      %v2699 = vpop.f32.mrb[0].mxu0
      %2700 = vmatprep.mubr.f32.mxu0 0.0
      %2701 = vmatmul.mubr.f32.gmra.mrb[0].mxu0 %v2483
      %v2702 = vpop.f32.mrb[0].mxu0
      %v2703 = vadd.f32 0.0, %v2702
      %v2704 = vpop.f32.mrb[0].mxu0
      %2705 = vmatprep.mubr.f32.mxu0 0.0
      %2706 = vmatmul.mubr.f32.gmra.mrb[0].mxu0 %v2486
      %v2707 = vpop.f32.mrb[0].mxu0
      %v2708 = vadd.f32 0.0, %v2707
      %v2709 = vpop.f32.mrb[0].mxu0
      %2710 = vmatprep.mubr.f32.mxu0 0.0
      %2711 = vmatmul.mubr.f32.gmra.mrb[0].mxu0 %v2489
      %v2712 = vpop.f32.mrb[0].mxu0
      %v2713 = vadd.f32 0.0, %v2712
      %v2714 = vpop.f32.mrb[0].mxu0
      %2715 = vdwg.mxu0
      %v2716 = vadd.f32 %v2331, %v2558
      %v2717 = vadd.f32 %v2332, %v2563
      %v2718 = vadd.f32 %v2333, %v2568
      %v2719 = vadd.f32 %v2334, %v2573
      %v2720 = vadd.f32 %v2335, %v2578
      %v2721 = vadd.f32 %v2336, %v2583
      %v2722 = vadd.f32 %v2337, %v2588
      %v2723 = vadd.f32 %v2338, %v2593
      %v2724 = vadd.f32 %v2339, %v2598
      %v2725 = vadd.f32 %v2340, %v2603
      %v2726 = vadd.f32 %v2341, %v2608
      %v2727 = vadd.f32 %v2342, %v2613
      %v2728 = vadd.f32 %v2343, %v2618
      %v2729 = vadd.f32 %v2344, %v2623
      %v2730 = vadd.f32 %v2345, %v2628
      %v2731 = vadd.f32 %v2346, %v2633
      %v2732 = vadd.f32 %v2347, %v2638
      %v2733 = vadd.f32 %v2348, %v2643
      %v2734 = vadd.f32 %v2349, %v2648
      %v2735 = vadd.f32 %v2350, %v2653
      %v2736 = vadd.f32 %v2351, %v2658
      %v2737 = vadd.f32 %v2352, %v2663
      %v2738 = vadd.f32 %v2353, %v2668
      %v2739 = vadd.f32 %v2354, %v2673
      %v2740 = vadd.f32 %v2355, %v2678
      %v2741 = vadd.f32 %v2356, %v2683
      %v2742 = vadd.f32 %v2357, %v2688
      %v2743 = vadd.f32 %v2358, %v2693
      %v2744 = vadd.f32 %v2359, %v2698
      %v2745 = vadd.f32 %v2360, %v2703
      %v2746 = vadd.f32 %v2361, %v2708
      %v2747 = vadd.f32 %v2362, %v2713
      %v2748 = vld [vmem:[#allocation2 + $0x7] sm:$0xff]
      %v2749 = vld [vmem:[#allocation2 + $0xf] sm:$0xff]
      %v2750 = vld [vmem:[#allocation2 + $0x27] sm:$0xff]
      %v2751 = vld [vmem:[#allocation2 + $0x2f] sm:$0xff]
      %v2752 = vld [vmem:[#allocation2 + $0x47] sm:$0xff]
      %v2753 = vld [vmem:[#allocation2 + $0x4f] sm:$0xff]
      %v2754 = vld [vmem:[#allocation2 + $0x67] sm:$0xff]
      %v2755 = vld [vmem:[#allocation2 + $0x6f] sm:$0xff]
      %v2756 = vld [vmem:[#allocation2 + $0x87] sm:$0xff]
      %v2757 = vld [vmem:[#allocation2 + $0x8f] sm:$0xff]
      %v2758 = vld [vmem:[#allocation2 + $0xa7] sm:$0xff]
      %v2759 = vld [vmem:[#allocation2 + $0xaf] sm:$0xff]
      %v2760 = vld [vmem:[#allocation2 + $0xc7] sm:$0xff]
      %v2761 = vld [vmem:[#allocation2 + $0xcf] sm:$0xff]
      %v2762 = vld [vmem:[#allocation2 + $0xe7] sm:$0xff]
      %v2763 = vld [vmem:[#allocation2 + $0xef] sm:$0xff]
      %v2764 = vld [vmem:[#allocation2 + $0x107] sm:$0xff]
      %v2765 = vld [vmem:[#allocation2 + $0x10f] sm:$0xff]
      %v2766 = vld [vmem:[#allocation2 + $0x127] sm:$0xff]
      %v2767 = vld [vmem:[#allocation2 + $0x12f] sm:$0xff]
      %v2768 = vld [vmem:[#allocation2 + $0x147] sm:$0xff]
      %v2769 = vld [vmem:[#allocation2 + $0x14f] sm:$0xff]
      %v2770 = vld [vmem:[#allocation2 + $0x167] sm:$0xff]
      %v2771 = vld [vmem:[#allocation2 + $0x16f] sm:$0xff]
      %v2772 = vld [vmem:[#allocation2 + $0x187] sm:$0xff]
      %v2773 = vld [vmem:[#allocation2 + $0x18f] sm:$0xff]
      %v2774 = vld [vmem:[#allocation2 + $0x1a7] sm:$0xff]
      %v2775 = vld [vmem:[#allocation2 + $0x1af] sm:$0xff]
      %v2776 = vld [vmem:[#allocation2 + $0x1c7] sm:$0xff]
      %v2777 = vld [vmem:[#allocation2 + $0x1cf] sm:$0xff]
      %v2778 = vld [vmem:[#allocation2 + $0x1e7] sm:$0xff]
      %v2779 = vld [vmem:[#allocation2 + $0x1ef] sm:$0xff]
      %v2781 = vsel %vm2259, %v2748, 0
      %v2784 = vsel %vm2259, %v2749, 0
      %v2787 = vsel %vm2259, %v2750, 0
      %v2790 = vsel %vm2259, %v2751, 0
      %v2793 = vsel %vm2259, %v2752, 0
      %v2796 = vsel %vm2259, %v2753, 0
      %v2799 = vsel %vm2259, %v2754, 0
      %v2802 = vsel %vm2259, %v2755, 0
      %v2805 = vsel %vm2259, %v2756, 0
      %v2808 = vsel %vm2259, %v2757, 0
      %v2811 = vsel %vm2259, %v2758, 0
      %v2814 = vsel %vm2259, %v2759, 0
      %v2817 = vsel %vm2259, %v2760, 0
      %v2820 = vsel %vm2259, %v2761, 0
      %v2823 = vsel %vm2259, %v2762, 0
      %v2826 = vsel %vm2259, %v2763, 0
      %v2829 = vsel %vm2259, %v2764, 0
      %v2832 = vsel %vm2259, %v2765, 0
      %v2835 = vsel %vm2259, %v2766, 0
      %v2838 = vsel %vm2259, %v2767, 0
      %v2841 = vsel %vm2259, %v2768, 0
      %v2844 = vsel %vm2259, %v2769, 0
      %v2847 = vsel %vm2259, %v2770, 0
      %v2850 = vsel %vm2259, %v2771, 0
      %v2853 = vsel %vm2259, %v2772, 0
      %v2856 = vsel %vm2259, %v2773, 0
      %v2859 = vsel %vm2259, %v2774, 0
      %v2862 = vsel %vm2259, %v2775, 0
      %v2865 = vsel %vm2259, %v2776, 0
      %v2868 = vsel %vm2259, %v2777, 0
      %v2871 = vsel %vm2259, %v2778, 0
      %v2874 = vsel %vm2259, %v2779, 0
      %2876 = vmatprep.subr.mxu0 0.0
      %2877 = vmatpush1.msra.mxu0 %v294
      %2878 = vmatprep.subr.mxu0 0.0
      %2879 = vmatpush1.msra.mxu0 %v295
      %2880 = vmatprep.subr.mxu0 0.0
      %2881 = vmatpush1.msra.mxu0 %v296
      %2882 = vmatprep.subr.mxu0 0.0
      %2883 = vmatpush1.msra.mxu0 %v297
      %2884 = vmatprep.subr.mxu0 0.0
      %2885 = vmatpush1.msra.mxu0 0.0
      %2886 = vmatprep.subr.mxu0 0.0
      %2887 = vmatpush1.msra.mxu0 0.0
      %2888 = vmatprep.subr.mxu0 0.0
      %2889 = vmatpush1.msra.mxu0 0.0
      %2890 = vmatprep.subr.mxu0 0.0
      %2891 = vmatpush1.msra.mxu0 0.0
      %2892 = vmatprep.subr.mxu0 0.0
      %2893 = vmatpush1.msra.mxu0 0.0
      %2894 = vmatprep.subr.mxu0 0.0
      %2895 = vmatpush1.msra.mxu0 0.0
      %2896 = vmatprep.subr.mxu0 0.0
      %2897 = vmatpush1.msra.mxu0 0.0
      %2898 = vmatprep.subr.mxu0 0.0
      %2899 = vmatpush1.msra.mxu0 0.0
      %2900 = vmatprep.subr.mxu0 0.0
      %2901 = vmatpush1.msra.mxu0 0.0
      %2902 = vmatprep.subr.mxu0 0.0
      %2903 = vmatpush1.msra.mxu0 0.0
      %2904 = vmatprep.subr.mxu0 0.0
      %2905 = vmatpush1.msra.mxu0 0.0
      %2906 = vmatprep.subr.mxu0 0.0
      %2907 = vmatpush1.msra.mxu0 0.0
      %2908 = vmatprep.subr.mxu0 0.0
      %2909 = vmatpush1.msra.mxu0 0.0
      %2910 = vmatprep.subr.mxu0 0.0
      %2911 = vmatpush1.msra.mxu0 0.0
      %2912 = vmatprep.subr.mxu0 0.0
      %2913 = vmatpush1.msra.mxu0 0.0
      %2914 = vmatprep.subr.mxu0 0.0
      %2915 = vmatpush1.msra.mxu0 0.0
      %2916 = vmatprep.subr.mxu0 0.0
      %2917 = vmatpush1.msra.mxu0 0.0
      %2918 = vmatprep.subr.mxu0 0.0
      %2919 = vmatpush1.msra.mxu0 0.0
      %2920 = vmatprep.subr.mxu0 0.0
      %2921 = vmatpush1.msra.mxu0 0.0
      %2922 = vmatprep.subr.mxu0 0.0
      %2923 = vmatpush1.msra.mxu0 0.0
      %2924 = vmatprep.subr.mxu0 0.0
      %2925 = vmatpush1.msra.mxu0 0.0
      %2926 = vmatprep.subr.mxu0 0.0
      %2927 = vmatpush1.msra.mxu0 0.0
      %2928 = vmatprep.subr.mxu0 0.0
      %2929 = vmatpush1.msra.mxu0 0.0
      %2930 = vmatprep.subr.mxu0 0.0
      %2931 = vmatpush1.msra.mxu0 0.0
      %2932 = vmatprep.subr.mxu0 0.0
      %2933 = vmatpush1.msra.mxu0 0.0
      %2934 = vmatprep.subr.mxu0 0.0
      %2935 = vmatpush1.msra.mxu0 0.0
      %2936 = vmatprep.subr.mxu0 0.0
      %2937 = vmatpush1.msra.mxu0 0.0
      %2938 = vmatprep.subr.mxu0 0.0
      %2939 = vmatpush1.msra.mxu0 0.0
      %2940 = vmatprep.mubr.f32.mxu0 0.0
      %2941 = vmatmul.mubr.f32.gmra.mrb[0].mxu0 %v2781
      %v2942 = vpop.f32.mrb[0].mxu0
      %v2943 = vadd.f32 0.0, %v2942
      %v2944 = vpop.f32.mrb[0].mxu0
      %2945 = vmatprep.mubr.f32.mxu0 0.0
      %2946 = vmatmul.mubr.f32.gmra.mrb[0].mxu0 %v2784
      %v2947 = vpop.f32.mrb[0].mxu0
      %v2948 = vadd.f32 0.0, %v2947
      %v2949 = vpop.f32.mrb[0].mxu0
      %2950 = vmatprep.mubr.f32.mxu0 0.0
      %2951 = vmatmul.mubr.f32.gmra.mrb[0].mxu0 %v2787
      %v2952 = vpop.f32.mrb[0].mxu0
      %v2953 = vadd.f32 0.0, %v2952
      %v2954 = vpop.f32.mrb[0].mxu0
      %2955 = vmatprep.mubr.f32.mxu0 0.0
      %2956 = vmatmul.mubr.f32.gmra.mrb[0].mxu0 %v2790
      %v2957 = vpop.f32.mrb[0].mxu0
      %v2958 = vadd.f32 0.0, %v2957
      %v2959 = vpop.f32.mrb[0].mxu0
      %2960 = vmatprep.mubr.f32.mxu0 0.0
      %2961 = vmatmul.mubr.f32.gmra.mrb[0].mxu0 %v2793
      %v2962 = vpop.f32.mrb[0].mxu0
      %v2963 = vadd.f32 0.0, %v2962
      %v2964 = vpop.f32.mrb[0].mxu0
      %2965 = vmatprep.mubr.f32.mxu0 0.0
      %2966 = vmatmul.mubr.f32.gmra.mrb[0].mxu0 %v2796
      %v2967 = vpop.f32.mrb[0].mxu0
      %v2968 = vadd.f32 0.0, %v2967
      %v2969 = vpop.f32.mrb[0].mxu0
      %2970 = vmatprep.mubr.f32.mxu0 0.0
      %2971 = vmatmul.mubr.f32.gmra.mrb[0].mxu0 %v2799
      %v2972 = vpop.f32.mrb[0].mxu0
      %v2973 = vadd.f32 0.0, %v2972
      %v2974 = vpop.f32.mrb[0].mxu0
      %2975 = vmatprep.mubr.f32.mxu0 0.0
      %2976 = vmatmul.mubr.f32.gmra.mrb[0].mxu0 %v2802
      %v2977 = vpop.f32.mrb[0].mxu0
      %v2978 = vadd.f32 0.0, %v2977
      %v2979 = vpop.f32.mrb[0].mxu0
      %2980 = vmatprep.mubr.f32.mxu0 0.0
      %2981 = vmatmul.mubr.f32.gmra.mrb[0].mxu0 %v2805
      %v2982 = vpop.f32.mrb[0].mxu0
      %v2983 = vadd.f32 0.0, %v2982
      %v2984 = vpop.f32.mrb[0].mxu0
      %2985 = vmatprep.mubr.f32.mxu0 0.0
      %2986 = vmatmul.mubr.f32.gmra.mrb[0].mxu0 %v2808
      %v2987 = vpop.f32.mrb[0].mxu0
      %v2988 = vadd.f32 0.0, %v2987
      %v2989 = vpop.f32.mrb[0].mxu0
      %2990 = vmatprep.mubr.f32.mxu0 0.0
      %2991 = vmatmul.mubr.f32.gmra.mrb[0].mxu0 %v2811
      %v2992 = vpop.f32.mrb[0].mxu0
      %v2993 = vadd.f32 0.0, %v2992
      %v2994 = vpop.f32.mrb[0].mxu0
      %2995 = vmatprep.mubr.f32.mxu0 0.0
      %2996 = vmatmul.mubr.f32.gmra.mrb[0].mxu0 %v2814
      %v2997 = vpop.f32.mrb[0].mxu0
      %v2998 = vadd.f32 0.0, %v2997
      %v2999 = vpop.f32.mrb[0].mxu0
      %3000 = vmatprep.mubr.f32.mxu0 0.0
      %3001 = vmatmul.mubr.f32.gmra.mrb[0].mxu0 %v2817
      %v3002 = vpop.f32.mrb[0].mxu0
      %v3003 = vadd.f32 0.0, %v3002
      %v3004 = vpop.f32.mrb[0].mxu0
      %3005 = vmatprep.mubr.f32.mxu0 0.0
      %3006 = vmatmul.mubr.f32.gmra.mrb[0].mxu0 %v2820
      %v3007 = vpop.f32.mrb[0].mxu0
      %v3008 = vadd.f32 0.0, %v3007
      %v3009 = vpop.f32.mrb[0].mxu0
      %3010 = vmatprep.mubr.f32.mxu0 0.0
      %3011 = vmatmul.mubr.f32.gmra.mrb[0].mxu0 %v2823
      %v3012 = vpop.f32.mrb[0].mxu0
      %v3013 = vadd.f32 0.0, %v3012
      %v3014 = vpop.f32.mrb[0].mxu0
      %3015 = vmatprep.mubr.f32.mxu0 0.0
      %3016 = vmatmul.mubr.f32.gmra.mrb[0].mxu0 %v2826
      %v3017 = vpop.f32.mrb[0].mxu0
      %v3018 = vadd.f32 0.0, %v3017
      %v3019 = vpop.f32.mrb[0].mxu0
      %3020 = vmatprep.mubr.f32.mxu0 0.0
      %3021 = vmatmul.mubr.f32.gmra.mrb[0].mxu0 %v2829
      %v3022 = vpop.f32.mrb[0].mxu0
      %v3023 = vadd.f32 0.0, %v3022
      %v3024 = vpop.f32.mrb[0].mxu0
      %3025 = vmatprep.mubr.f32.mxu0 0.0
      %3026 = vmatmul.mubr.f32.gmra.mrb[0].mxu0 %v2832
      %v3027 = vpop.f32.mrb[0].mxu0
      %v3028 = vadd.f32 0.0, %v3027
      %v3029 = vpop.f32.mrb[0].mxu0
      %3030 = vmatprep.mubr.f32.mxu0 0.0
      %3031 = vmatmul.mubr.f32.gmra.mrb[0].mxu0 %v2835
      %v3032 = vpop.f32.mrb[0].mxu0
      %v3033 = vadd.f32 0.0, %v3032
      %v3034 = vpop.f32.mrb[0].mxu0
      %3035 = vmatprep.mubr.f32.mxu0 0.0
      %3036 = vmatmul.mubr.f32.gmra.mrb[0].mxu0 %v2838
      %v3037 = vpop.f32.mrb[0].mxu0
      %v3038 = vadd.f32 0.0, %v3037
      %v3039 = vpop.f32.mrb[0].mxu0
      %3040 = vmatprep.mubr.f32.mxu0 0.0
      %3041 = vmatmul.mubr.f32.gmra.mrb[0].mxu0 %v2841
      %v3042 = vpop.f32.mrb[0].mxu0
      %v3043 = vadd.f32 0.0, %v3042
      %v3044 = vpop.f32.mrb[0].mxu0
      %3045 = vmatprep.mubr.f32.mxu0 0.0
      %3046 = vmatmul.mubr.f32.gmra.mrb[0].mxu0 %v2844
      %v3047 = vpop.f32.mrb[0].mxu0
      %v3048 = vadd.f32 0.0, %v3047
      %v3049 = vpop.f32.mrb[0].mxu0
      %3050 = vmatprep.mubr.f32.mxu0 0.0
      %3051 = vmatmul.mubr.f32.gmra.mrb[0].mxu0 %v2847
      %v3052 = vpop.f32.mrb[0].mxu0
      %v3053 = vadd.f32 0.0, %v3052
      %v3054 = vpop.f32.mrb[0].mxu0
      %3055 = vmatprep.mubr.f32.mxu0 0.0
      %3056 = vmatmul.mubr.f32.gmra.mrb[0].mxu0 %v2850
      %v3057 = vpop.f32.mrb[0].mxu0
      %v3058 = vadd.f32 0.0, %v3057
      %v3059 = vpop.f32.mrb[0].mxu0
      %3060 = vmatprep.mubr.f32.mxu0 0.0
      %3061 = vmatmul.mubr.f32.gmra.mrb[0].mxu0 %v2853
      %v3062 = vpop.f32.mrb[0].mxu0
      %v3063 = vadd.f32 0.0, %v3062
      %v3064 = vpop.f32.mrb[0].mxu0
      %3065 = vmatprep.mubr.f32.mxu0 0.0
      %3066 = vmatmul.mubr.f32.gmra.mrb[0].mxu0 %v2856
      %v3067 = vpop.f32.mrb[0].mxu0
      %v3068 = vadd.f32 0.0, %v3067
      %v3069 = vpop.f32.mrb[0].mxu0
      %3070 = vmatprep.mubr.f32.mxu0 0.0
      %3071 = vmatmul.mubr.f32.gmra.mrb[0].mxu0 %v2859
      %v3072 = vpop.f32.mrb[0].mxu0
      %v3073 = vadd.f32 0.0, %v3072
      %v3074 = vpop.f32.mrb[0].mxu0
      %3075 = vmatprep.mubr.f32.mxu0 0.0
      %3076 = vmatmul.mubr.f32.gmra.mrb[0].mxu0 %v2862
      %v3077 = vpop.f32.mrb[0].mxu0
      %v3078 = vadd.f32 0.0, %v3077
      %v3079 = vpop.f32.mrb[0].mxu0
      %3080 = vmatprep.mubr.f32.mxu0 0.0
      %3081 = vmatmul.mubr.f32.gmra.mrb[0].mxu0 %v2865
      %v3082 = vpop.f32.mrb[0].mxu0
      %v3083 = vadd.f32 0.0, %v3082
      %v3084 = vpop.f32.mrb[0].mxu0
      %3085 = vmatprep.mubr.f32.mxu0 0.0
      %3086 = vmatmul.mubr.f32.gmra.mrb[0].mxu0 %v2868
      %v3087 = vpop.f32.mrb[0].mxu0
      %v3088 = vadd.f32 0.0, %v3087
      %v3089 = vpop.f32.mrb[0].mxu0
      %3090 = vmatprep.mubr.f32.mxu0 0.0
      %3091 = vmatmul.mubr.f32.gmra.mrb[0].mxu0 %v2871
      %v3092 = vpop.f32.mrb[0].mxu0
      %v3093 = vadd.f32 0.0, %v3092
      %v3094 = vpop.f32.mrb[0].mxu0
      %3095 = vmatprep.mubr.f32.mxu0 0.0
      %3096 = vmatmul.mubr.f32.gmra.mrb[0].mxu0 %v2874
      %v3097 = vpop.f32.mrb[0].mxu0
      %v3098 = vadd.f32 0.0, %v3097
      %v3099 = vpop.f32.mrb[0].mxu0
      %3100 = vdwg.mxu0
      %v3101 = vadd.f32 %v2716, %v2943
      %v3102 = vadd.f32 %v2717, %v2948
      %v3103 = vadd.f32 %v2718, %v2953
      %v3104 = vadd.f32 %v2719, %v2958
      %v3105 = vadd.f32 %v2720, %v2963
      %v3106 = vadd.f32 %v2721, %v2968
      %v3107 = vadd.f32 %v2722, %v2973
      %v3108 = vadd.f32 %v2723, %v2978
      %v3109 = vadd.f32 %v2724, %v2983
      %v3110 = vadd.f32 %v2725, %v2988
      %v3111 = vadd.f32 %v2726, %v2993
      %v3112 = vadd.f32 %v2727, %v2998
      %v3113 = vadd.f32 %v2728, %v3003
      %v3114 = vadd.f32 %v2729, %v3008
      %v3115 = vadd.f32 %v2730, %v3013
      %v3116 = vadd.f32 %v2731, %v3018
      %v3117 = vadd.f32 %v2732, %v3023
      %v3118 = vadd.f32 %v2733, %v3028
      %v3119 = vadd.f32 %v2734, %v3033
      %v3120 = vadd.f32 %v2735, %v3038
      %v3121 = vadd.f32 %v2736, %v3043
      %v3122 = vadd.f32 %v2737, %v3048
      %v3123 = vadd.f32 %v2738, %v3053
      %v3124 = vadd.f32 %v2739, %v3058
      %v3125 = vadd.f32 %v2740, %v3063
      %v3126 = vadd.f32 %v2741, %v3068
      %v3127 = vadd.f32 %v2742, %v3073
      %v3128 = vadd.f32 %v2743, %v3078
      %v3129 = vadd.f32 %v2744, %v3083
      %v3130 = vadd.f32 %v2745, %v3088
      %v3131 = vadd.f32 %v2746, %v3093
      %v3132 = vadd.f32 %v2747, %v3098
      %v3133 = vld [vmem:[#allocation2 + $0x8] sm:$0xff]
      %v3134 = vld [vmem:[#allocation2 + $0x10] sm:$0xff]
      %v3135 = vld [vmem:[#allocation2 + $0x28] sm:$0xff]
      %v3136 = vld [vmem:[#allocation2 + $0x30] sm:$0xff]
      %v3137 = vld [vmem:[#allocation2 + $0x48] sm:$0xff]
      %v3138 = vld [vmem:[#allocation2 + $0x50] sm:$0xff]
      %v3139 = vld [vmem:[#allocation2 + $0x68] sm:$0xff]
      %v3140 = vld [vmem:[#allocation2 + $0x70] sm:$0xff]
      %v3141 = vld [vmem:[#allocation2 + $0x88] sm:$0xff]
      %v3142 = vld [vmem:[#allocation2 + $0x90] sm:$0xff]
      %v3143 = vld [vmem:[#allocation2 + $0xa8] sm:$0xff]
      %v3144 = vld [vmem:[#allocation2 + $0xb0] sm:$0xff]
      %v3145 = vld [vmem:[#allocation2 + $0xc8] sm:$0xff]
      %v3146 = vld [vmem:[#allocation2 + $0xd0] sm:$0xff]
      %v3147 = vld [vmem:[#allocation2 + $0xe8] sm:$0xff]
      %v3148 = vld [vmem:[#allocation2 + $0xf0] sm:$0xff]
      %v3149 = vld [vmem:[#allocation2 + $0x108] sm:$0xff]
      %v3150 = vld [vmem:[#allocation2 + $0x110] sm:$0xff]
      %v3151 = vld [vmem:[#allocation2 + $0x128] sm:$0xff]
      %v3152 = vld [vmem:[#allocation2 + $0x130] sm:$0xff]
      %v3153 = vld [vmem:[#allocation2 + $0x148] sm:$0xff]
      %v3154 = vld [vmem:[#allocation2 + $0x150] sm:$0xff]
      %v3155 = vld [vmem:[#allocation2 + $0x168] sm:$0xff]
      %v3156 = vld [vmem:[#allocation2 + $0x170] sm:$0xff]
      %v3157 = vld [vmem:[#allocation2 + $0x188] sm:$0xff]
      %v3158 = vld [vmem:[#allocation2 + $0x190] sm:$0xff]
      %v3159 = vld [vmem:[#allocation2 + $0x1a8] sm:$0xff]
      %v3160 = vld [vmem:[#allocation2 + $0x1b0] sm:$0xff]
      %v3161 = vld [vmem:[#allocation2 + $0x1c8] sm:$0xff]
      %v3162 = vld [vmem:[#allocation2 + $0x1d0] sm:$0xff]
      %v3163 = vld [vmem:[#allocation2 + $0x1e8] sm:$0xff]
      %v3164 = vld [vmem:[#allocation2 + $0x1f0] sm:$0xff]
      %v3166 = vsel %vm2259, %v3133, 0
      %v3169 = vsel %vm2259, %v3134, 0
      %v3172 = vsel %vm2259, %v3135, 0
      %v3175 = vsel %vm2259, %v3136, 0
      %v3178 = vsel %vm2259, %v3137, 0
      %v3181 = vsel %vm2259, %v3138, 0
      %v3184 = vsel %vm2259, %v3139, 0
      %v3187 = vsel %vm2259, %v3140, 0
      %v3190 = vsel %vm2259, %v3141, 0
      %v3193 = vsel %vm2259, %v3142, 0
      %v3196 = vsel %vm2259, %v3143, 0
      %v3199 = vsel %vm2259, %v3144, 0
      %v3202 = vsel %vm2259, %v3145, 0
      %v3205 = vsel %vm2259, %v3146, 0
      %v3208 = vsel %vm2259, %v3147, 0
      %v3211 = vsel %vm2259, %v3148, 0
      %v3214 = vsel %vm2259, %v3149, 0
      %v3217 = vsel %vm2259, %v3150, 0
      %v3220 = vsel %vm2259, %v3151, 0
      %v3223 = vsel %vm2259, %v3152, 0
      %v3226 = vsel %vm2259, %v3153, 0
      %v3229 = vsel %vm2259, %v3154, 0
      %v3232 = vsel %vm2259, %v3155, 0
      %v3235 = vsel %vm2259, %v3156, 0
      %v3238 = vsel %vm2259, %v3157, 0
      %v3241 = vsel %vm2259, %v3158, 0
      %v3244 = vsel %vm2259, %v3159, 0
      %v3247 = vsel %vm2259, %v3160, 0
      %v3250 = vsel %vm2259, %v3161, 0
      %v3253 = vsel %vm2259, %v3162, 0
      %v3256 = vsel %vm2259, %v3163, 0
      %v3259 = vsel %vm2259, %v3164, 0
      %3261 = vmatprep.subr.mxu0 0.0
      %3262 = vmatpush1.msra.mxu0 %v298
      %3263 = vmatprep.subr.mxu0 0.0
      %3264 = vmatpush1.msra.mxu0 %v299
      %3265 = vmatprep.subr.mxu0 0.0
      %3266 = vmatpush1.msra.mxu0 %v300
      %3267 = vmatprep.subr.mxu0 0.0
      %3268 = vmatpush1.msra.mxu0 %v301
      %3269 = vmatprep.subr.mxu0 0.0
      %3270 = vmatpush1.msra.mxu0 0.0
      %3271 = vmatprep.subr.mxu0 0.0
      %3272 = vmatpush1.msra.mxu0 0.0
      %3273 = vmatprep.subr.mxu0 0.0
      %3274 = vmatpush1.msra.mxu0 0.0
      %3275 = vmatprep.subr.mxu0 0.0
      %3276 = vmatpush1.msra.mxu0 0.0
      %3277 = vmatprep.subr.mxu0 0.0
      %3278 = vmatpush1.msra.mxu0 0.0
      %3279 = vmatprep.subr.mxu0 0.0
      %3280 = vmatpush1.msra.mxu0 0.0
      %3281 = vmatprep.subr.mxu0 0.0
      %3282 = vmatpush1.msra.mxu0 0.0
      %3283 = vmatprep.subr.mxu0 0.0
      %3284 = vmatpush1.msra.mxu0 0.0
      %3285 = vmatprep.subr.mxu0 0.0
      %3286 = vmatpush1.msra.mxu0 0.0
      %3287 = vmatprep.subr.mxu0 0.0
      %3288 = vmatpush1.msra.mxu0 0.0
      %3289 = vmatprep.subr.mxu0 0.0
      %3290 = vmatpush1.msra.mxu0 0.0
      %3291 = vmatprep.subr.mxu0 0.0
      %3292 = vmatpush1.msra.mxu0 0.0
      %3293 = vmatprep.subr.mxu0 0.0
      %3294 = vmatpush1.msra.mxu0 0.0
      %3295 = vmatprep.subr.mxu0 0.0
      %3296 = vmatpush1.msra.mxu0 0.0
      %3297 = vmatprep.subr.mxu0 0.0
      %3298 = vmatpush1.msra.mxu0 0.0
      %3299 = vmatprep.subr.mxu0 0.0
      %3300 = vmatpush1.msra.mxu0 0.0
      %3301 = vmatprep.subr.mxu0 0.0
      %3302 = vmatpush1.msra.mxu0 0.0
      %3303 = vmatprep.subr.mxu0 0.0
      %3304 = vmatpush1.msra.mxu0 0.0
      %3305 = vmatprep.subr.mxu0 0.0
      %3306 = vmatpush1.msra.mxu0 0.0
      %3307 = vmatprep.subr.mxu0 0.0
      %3308 = vmatpush1.msra.mxu0 0.0
      %3309 = vmatprep.subr.mxu0 0.0
      %3310 = vmatpush1.msra.mxu0 0.0
      %3311 = vmatprep.subr.mxu0 0.0
      %3312 = vmatpush1.msra.mxu0 0.0
      %3313 = vmatprep.subr.mxu0 0.0
      %3314 = vmatpush1.msra.mxu0 0.0
      %3315 = vmatprep.subr.mxu0 0.0
      %3316 = vmatpush1.msra.mxu0 0.0
      %3317 = vmatprep.subr.mxu0 0.0
      %3318 = vmatpush1.msra.mxu0 0.0
      %3319 = vmatprep.subr.mxu0 0.0
      %3320 = vmatpush1.msra.mxu0 0.0
      %3321 = vmatprep.subr.mxu0 0.0
      %3322 = vmatpush1.msra.mxu0 0.0
      %3323 = vmatprep.subr.mxu0 0.0
      %3324 = vmatpush1.msra.mxu0 0.0
      %3325 = vmatprep.mubr.f32.mxu0 0.0
      %3326 = vmatmul.mubr.f32.gmra.mrb[0].mxu0 %v3166
      %v3327 = vpop.f32.mrb[0].mxu0
      %v3328 = vadd.f32 0.0, %v3327
      %v3329 = vpop.f32.mrb[0].mxu0
      %3330 = vmatprep.mubr.f32.mxu0 0.0
      %3331 = vmatmul.mubr.f32.gmra.mrb[0].mxu0 %v3169
      %v3332 = vpop.f32.mrb[0].mxu0
      %v3333 = vadd.f32 0.0, %v3332
      %v3334 = vpop.f32.mrb[0].mxu0
      %3335 = vmatprep.mubr.f32.mxu0 0.0
      %3336 = vmatmul.mubr.f32.gmra.mrb[0].mxu0 %v3172
      %v3337 = vpop.f32.mrb[0].mxu0
      %v3338 = vadd.f32 0.0, %v3337
      %v3339 = vpop.f32.mrb[0].mxu0
      %3340 = vmatprep.mubr.f32.mxu0 0.0
      %3341 = vmatmul.mubr.f32.gmra.mrb[0].mxu0 %v3175
      %v3342 = vpop.f32.mrb[0].mxu0
      %v3343 = vadd.f32 0.0, %v3342
      %v3344 = vpop.f32.mrb[0].mxu0
      %3345 = vmatprep.mubr.f32.mxu0 0.0
      %3346 = vmatmul.mubr.f32.gmra.mrb[0].mxu0 %v3178
      %v3347 = vpop.f32.mrb[0].mxu0
      %v3348 = vadd.f32 0.0, %v3347
      %v3349 = vpop.f32.mrb[0].mxu0
      %3350 = vmatprep.mubr.f32.mxu0 0.0
      %3351 = vmatmul.mubr.f32.gmra.mrb[0].mxu0 %v3181
      %v3352 = vpop.f32.mrb[0].mxu0
      %v3353 = vadd.f32 0.0, %v3352
      %v3354 = vpop.f32.mrb[0].mxu0
      %3355 = vmatprep.mubr.f32.mxu0 0.0
      %3356 = vmatmul.mubr.f32.gmra.mrb[0].mxu0 %v3184
      %v3357 = vpop.f32.mrb[0].mxu0
      %v3358 = vadd.f32 0.0, %v3357
      %v3359 = vpop.f32.mrb[0].mxu0
      %3360 = vmatprep.mubr.f32.mxu0 0.0
      %3361 = vmatmul.mubr.f32.gmra.mrb[0].mxu0 %v3187
      %v3362 = vpop.f32.mrb[0].mxu0
      %v3363 = vadd.f32 0.0, %v3362
      %v3364 = vpop.f32.mrb[0].mxu0
      %3365 = vmatprep.mubr.f32.mxu0 0.0
      %3366 = vmatmul.mubr.f32.gmra.mrb[0].mxu0 %v3190
      %v3367 = vpop.f32.mrb[0].mxu0
      %v3368 = vadd.f32 0.0, %v3367
      %v3369 = vpop.f32.mrb[0].mxu0
      %3370 = vmatprep.mubr.f32.mxu0 0.0
      %3371 = vmatmul.mubr.f32.gmra.mrb[0].mxu0 %v3193
      %v3372 = vpop.f32.mrb[0].mxu0
      %v3373 = vadd.f32 0.0, %v3372
      %v3374 = vpop.f32.mrb[0].mxu0
      %3375 = vmatprep.mubr.f32.mxu0 0.0
      %3376 = vmatmul.mubr.f32.gmra.mrb[0].mxu0 %v3196
      %v3377 = vpop.f32.mrb[0].mxu0
      %v3378 = vadd.f32 0.0, %v3377
      %v3379 = vpop.f32.mrb[0].mxu0
      %3380 = vmatprep.mubr.f32.mxu0 0.0
      %3381 = vmatmul.mubr.f32.gmra.mrb[0].mxu0 %v3199
      %v3382 = vpop.f32.mrb[0].mxu0
      %v3383 = vadd.f32 0.0, %v3382
      %v3384 = vpop.f32.mrb[0].mxu0
      %3385 = vmatprep.mubr.f32.mxu0 0.0
      %3386 = vmatmul.mubr.f32.gmra.mrb[0].mxu0 %v3202
      %v3387 = vpop.f32.mrb[0].mxu0
      %v3388 = vadd.f32 0.0, %v3387
      %v3389 = vpop.f32.mrb[0].mxu0
      %3390 = vmatprep.mubr.f32.mxu0 0.0
      %3391 = vmatmul.mubr.f32.gmra.mrb[0].mxu0 %v3205
      %v3392 = vpop.f32.mrb[0].mxu0
      %v3393 = vadd.f32 0.0, %v3392
      %v3394 = vpop.f32.mrb[0].mxu0
      %3395 = vmatprep.mubr.f32.mxu0 0.0
      %3396 = vmatmul.mubr.f32.gmra.mrb[0].mxu0 %v3208
      %v3397 = vpop.f32.mrb[0].mxu0
      %v3398 = vadd.f32 0.0, %v3397
      %v3399 = vpop.f32.mrb[0].mxu0
      %3400 = vmatprep.mubr.f32.mxu0 0.0
      %3401 = vmatmul.mubr.f32.gmra.mrb[0].mxu0 %v3211
      %v3402 = vpop.f32.mrb[0].mxu0
      %v3403 = vadd.f32 0.0, %v3402
      %v3404 = vpop.f32.mrb[0].mxu0
      %3405 = vmatprep.mubr.f32.mxu0 0.0
      %3406 = vmatmul.mubr.f32.gmra.mrb[0].mxu0 %v3214
      %v3407 = vpop.f32.mrb[0].mxu0
      %v3408 = vadd.f32 0.0, %v3407
      %v3409 = vpop.f32.mrb[0].mxu0
      %3410 = vmatprep.mubr.f32.mxu0 0.0
      %3411 = vmatmul.mubr.f32.gmra.mrb[0].mxu0 %v3217
      %v3412 = vpop.f32.mrb[0].mxu0
      %v3413 = vadd.f32 0.0, %v3412
      %v3414 = vpop.f32.mrb[0].mxu0
      %3415 = vmatprep.mubr.f32.mxu0 0.0
      %3416 = vmatmul.mubr.f32.gmra.mrb[0].mxu0 %v3220
      %v3417 = vpop.f32.mrb[0].mxu0
      %v3418 = vadd.f32 0.0, %v3417
      %v3419 = vpop.f32.mrb[0].mxu0
      %3420 = vmatprep.mubr.f32.mxu0 0.0
      %3421 = vmatmul.mubr.f32.gmra.mrb[0].mxu0 %v3223
      %v3422 = vpop.f32.mrb[0].mxu0
      %v3423 = vadd.f32 0.0, %v3422
      %v3424 = vpop.f32.mrb[0].mxu0
      %3425 = vmatprep.mubr.f32.mxu0 0.0
      %3426 = vmatmul.mubr.f32.gmra.mrb[0].mxu0 %v3226
      %v3427 = vpop.f32.mrb[0].mxu0
      %v3428 = vadd.f32 0.0, %v3427
      %v3429 = vpop.f32.mrb[0].mxu0
      %3430 = vmatprep.mubr.f32.mxu0 0.0
      %3431 = vmatmul.mubr.f32.gmra.mrb[0].mxu0 %v3229
      %v3432 = vpop.f32.mrb[0].mxu0
      %v3433 = vadd.f32 0.0, %v3432
      %v3434 = vpop.f32.mrb[0].mxu0
      %3435 = vmatprep.mubr.f32.mxu0 0.0
      %3436 = vmatmul.mubr.f32.gmra.mrb[0].mxu0 %v3232
      %v3437 = vpop.f32.mrb[0].mxu0
      %v3438 = vadd.f32 0.0, %v3437
      %v3439 = vpop.f32.mrb[0].mxu0
      %3440 = vmatprep.mubr.f32.mxu0 0.0
      %3441 = vmatmul.mubr.f32.gmra.mrb[0].mxu0 %v3235
      %v3442 = vpop.f32.mrb[0].mxu0
      %v3443 = vadd.f32 0.0, %v3442
      %v3444 = vpop.f32.mrb[0].mxu0
      %3445 = vmatprep.mubr.f32.mxu0 0.0
      %3446 = vmatmul.mubr.f32.gmra.mrb[0].mxu0 %v3238
      %v3447 = vpop.f32.mrb[0].mxu0
      %v3448 = vadd.f32 0.0, %v3447
      %v3449 = vpop.f32.mrb[0].mxu0
      %3450 = vmatprep.mubr.f32.mxu0 0.0
      %3451 = vmatmul.mubr.f32.gmra.mrb[0].mxu0 %v3241
      %v3452 = vpop.f32.mrb[0].mxu0
      %v3453 = vadd.f32 0.0, %v3452
      %v3454 = vpop.f32.mrb[0].mxu0
      %3455 = vmatprep.mubr.f32.mxu0 0.0
      %3456 = vmatmul.mubr.f32.gmra.mrb[0].mxu0 %v3244
      %v3457 = vpop.f32.mrb[0].mxu0
      %v3458 = vadd.f32 0.0, %v3457
      %v3459 = vpop.f32.mrb[0].mxu0
      %3460 = vmatprep.mubr.f32.mxu0 0.0
      %3461 = vmatmul.mubr.f32.gmra.mrb[0].mxu0 %v3247
      %v3462 = vpop.f32.mrb[0].mxu0
      %v3463 = vadd.f32 0.0, %v3462
      %v3464 = vpop.f32.mrb[0].mxu0
      %3465 = vmatprep.mubr.f32.mxu0 0.0
      %3466 = vmatmul.mubr.f32.gmra.mrb[0].mxu0 %v3250
      %v3467 = vpop.f32.mrb[0].mxu0
      %v3468 = vadd.f32 0.0, %v3467
      %v3469 = vpop.f32.mrb[0].mxu0
      %3470 = vmatprep.mubr.f32.mxu0 0.0
      %3471 = vmatmul.mubr.f32.gmra.mrb[0].mxu0 %v3253
      %v3472 = vpop.f32.mrb[0].mxu0
      %v3473 = vadd.f32 0.0, %v3472
      %v3474 = vpop.f32.mrb[0].mxu0
      %3475 = vmatprep.mubr.f32.mxu0 0.0
      %3476 = vmatmul.mubr.f32.gmra.mrb[0].mxu0 %v3256
      %v3477 = vpop.f32.mrb[0].mxu0
      %v3478 = vadd.f32 0.0, %v3477
      %v3479 = vpop.f32.mrb[0].mxu0
      %3480 = vmatprep.mubr.f32.mxu0 0.0
      %3481 = vmatmul.mubr.f32.gmra.mrb[0].mxu0 %v3259
      %v3482 = vpop.f32.mrb[0].mxu0
      %v3483 = vadd.f32 0.0, %v3482
      %v3484 = vpop.f32.mrb[0].mxu0
      %3485 = vdwg.mxu0
      %v3486 = vadd.f32 %v3101, %v3328
      %v3487 = vadd.f32 %v3102, %v3333
      %v3488 = vadd.f32 %v3103, %v3338
      %v3489 = vadd.f32 %v3104, %v3343
      %v3490 = vadd.f32 %v3105, %v3348
      %v3491 = vadd.f32 %v3106, %v3353
      %v3492 = vadd.f32 %v3107, %v3358
      %v3493 = vadd.f32 %v3108, %v3363
      %v3494 = vadd.f32 %v3109, %v3368
      %v3495 = vadd.f32 %v3110, %v3373
      %v3496 = vadd.f32 %v3111, %v3378
      %v3497 = vadd.f32 %v3112, %v3383
      %v3498 = vadd.f32 %v3113, %v3388
      %v3499 = vadd.f32 %v3114, %v3393
      %v3500 = vadd.f32 %v3115, %v3398
      %v3501 = vadd.f32 %v3116, %v3403
      %v3502 = vadd.f32 %v3117, %v3408
      %v3503 = vadd.f32 %v3118, %v3413
      %v3504 = vadd.f32 %v3119, %v3418
      %v3505 = vadd.f32 %v3120, %v3423
      %v3506 = vadd.f32 %v3121, %v3428
      %v3507 = vadd.f32 %v3122, %v3433
      %v3508 = vadd.f32 %v3123, %v3438
      %v3509 = vadd.f32 %v3124, %v3443
      %v3510 = vadd.f32 %v3125, %v3448
      %v3511 = vadd.f32 %v3126, %v3453
      %v3512 = vadd.f32 %v3127, %v3458
      %v3513 = vadd.f32 %v3128, %v3463
      %v3514 = vadd.f32 %v3129, %v3468
      %v3515 = vadd.f32 %v3130, %v3473
      %v3516 = vadd.f32 %v3131, %v3478
      %v3517 = vadd.f32 %v3132, %v3483
      %v3518 = vld [vmem:[#allocation2 + $0x9] sm:$0xff]
      %v3519 = vld [vmem:[#allocation2 + $0x11] sm:$0xff]
      %v3520 = vld [vmem:[#allocation2 + $0x29] sm:$0xff]
      %v3521 = vld [vmem:[#allocation2 + $0x31] sm:$0xff]
      %v3522 = vld [vmem:[#allocation2 + $0x49] sm:$0xff]
      %v3523 = vld [vmem:[#allocation2 + $0x51] sm:$0xff]
      %v3524 = vld [vmem:[#allocation2 + $0x69] sm:$0xff]
      %v3525 = vld [vmem:[#allocation2 + $0x71] sm:$0xff]
      %v3526 = vld [vmem:[#allocation2 + $0x89] sm:$0xff]
      %v3527 = vld [vmem:[#allocation2 + $0x91] sm:$0xff]
      %v3528 = vld [vmem:[#allocation2 + $0xa9] sm:$0xff]
      %v3529 = vld [vmem:[#allocation2 + $0xb1] sm:$0xff]
      %v3530 = vld [vmem:[#allocation2 + $0xc9] sm:$0xff]
      %v3531 = vld [vmem:[#allocation2 + $0xd1] sm:$0xff]
      %v3532 = vld [vmem:[#allocation2 + $0xe9] sm:$0xff]
      %v3533 = vld [vmem:[#allocation2 + $0xf1] sm:$0xff]
      %v3534 = vld [vmem:[#allocation2 + $0x109] sm:$0xff]
      %v3535 = vld [vmem:[#allocation2 + $0x111] sm:$0xff]
      %v3536 = vld [vmem:[#allocation2 + $0x129] sm:$0xff]
      %v3537 = vld [vmem:[#allocation2 + $0x131] sm:$0xff]
      %v3538 = vld [vmem:[#allocation2 + $0x149] sm:$0xff]
      %v3539 = vld [vmem:[#allocation2 + $0x151] sm:$0xff]
      %v3540 = vld [vmem:[#allocation2 + $0x169] sm:$0xff]
      %v3541 = vld [vmem:[#allocation2 + $0x171] sm:$0xff]
      %v3542 = vld [vmem:[#allocation2 + $0x189] sm:$0xff]
      %v3543 = vld [vmem:[#allocation2 + $0x191] sm:$0xff]
      %v3544 = vld [vmem:[#allocation2 + $0x1a9] sm:$0xff]
      %v3545 = vld [vmem:[#allocation2 + $0x1b1] sm:$0xff]
      %v3546 = vld [vmem:[#allocation2 + $0x1c9] sm:$0xff]
      %v3547 = vld [vmem:[#allocation2 + $0x1d1] sm:$0xff]
      %v3548 = vld [vmem:[#allocation2 + $0x1e9] sm:$0xff]
      %v3549 = vld [vmem:[#allocation2 + $0x1f1] sm:$0xff]
      %v3551 = vsel %vm2259, %v3518, 0
      %v3554 = vsel %vm2259, %v3519, 0
      %v3557 = vsel %vm2259, %v3520, 0
      %v3560 = vsel %vm2259, %v3521, 0
      %v3563 = vsel %vm2259, %v3522, 0
      %v3566 = vsel %vm2259, %v3523, 0
      %v3569 = vsel %vm2259, %v3524, 0
      %v3572 = vsel %vm2259, %v3525, 0
      %v3575 = vsel %vm2259, %v3526, 0
      %v3578 = vsel %vm2259, %v3527, 0
      %v3581 = vsel %vm2259, %v3528, 0
      %v3584 = vsel %vm2259, %v3529, 0
      %v3587 = vsel %vm2259, %v3530, 0
      %v3590 = vsel %vm2259, %v3531, 0
      %v3593 = vsel %vm2259, %v3532, 0
      %v3596 = vsel %vm2259, %v3533, 0
      %v3599 = vsel %vm2259, %v3534, 0
      %v3602 = vsel %vm2259, %v3535, 0
      %v3605 = vsel %vm2259, %v3536, 0
      %v3608 = vsel %vm2259, %v3537, 0
      %v3611 = vsel %vm2259, %v3538, 0
      %v3614 = vsel %vm2259, %v3539, 0
      %v3617 = vsel %vm2259, %v3540, 0
      %v3620 = vsel %vm2259, %v3541, 0
      %v3623 = vsel %vm2259, %v3542, 0
      %v3626 = vsel %vm2259, %v3543, 0
      %v3629 = vsel %vm2259, %v3544, 0
      %v3632 = vsel %vm2259, %v3545, 0
      %v3635 = vsel %vm2259, %v3546, 0
      %v3638 = vsel %vm2259, %v3547, 0
      %v3641 = vsel %vm2259, %v3548, 0
      %v3644 = vsel %vm2259, %v3549, 0
      %3646 = vmatprep.subr.mxu0 0.0
      %3647 = vmatpush1.msra.mxu0 %v302
      %3648 = vmatprep.subr.mxu0 0.0
      %3649 = vmatpush1.msra.mxu0 %v303
      %3650 = vmatprep.subr.mxu0 0.0
      %3651 = vmatpush1.msra.mxu0 %v304
      %3652 = vmatprep.subr.mxu0 0.0
      %3653 = vmatpush1.msra.mxu0 %v305
      %3654 = vmatprep.subr.mxu0 0.0
      %3655 = vmatpush1.msra.mxu0 0.0
      %3656 = vmatprep.subr.mxu0 0.0
      %3657 = vmatpush1.msra.mxu0 0.0
      %3658 = vmatprep.subr.mxu0 0.0
      %3659 = vmatpush1.msra.mxu0 0.0
      %3660 = vmatprep.subr.mxu0 0.0
      %3661 = vmatpush1.msra.mxu0 0.0
      %3662 = vmatprep.subr.mxu0 0.0
      %3663 = vmatpush1.msra.mxu0 0.0
      %3664 = vmatprep.subr.mxu0 0.0
      %3665 = vmatpush1.msra.mxu0 0.0
      %3666 = vmatprep.subr.mxu0 0.0
      %3667 = vmatpush1.msra.mxu0 0.0
      %3668 = vmatprep.subr.mxu0 0.0
      %3669 = vmatpush1.msra.mxu0 0.0
      %3670 = vmatprep.subr.mxu0 0.0
      %3671 = vmatpush1.msra.mxu0 0.0
      %3672 = vmatprep.subr.mxu0 0.0
      %3673 = vmatpush1.msra.mxu0 0.0
      %3674 = vmatprep.subr.mxu0 0.0
      %3675 = vmatpush1.msra.mxu0 0.0
      %3676 = vmatprep.subr.mxu0 0.0
      %3677 = vmatpush1.msra.mxu0 0.0
      %3678 = vmatprep.subr.mxu0 0.0
      %3679 = vmatpush1.msra.mxu0 0.0
      %3680 = vmatprep.subr.mxu0 0.0
      %3681 = vmatpush1.msra.mxu0 0.0
      %3682 = vmatprep.subr.mxu0 0.0
      %3683 = vmatpush1.msra.mxu0 0.0
      %3684 = vmatprep.subr.mxu0 0.0
      %3685 = vmatpush1.msra.mxu0 0.0
      %3686 = vmatprep.subr.mxu0 0.0
      %3687 = vmatpush1.msra.mxu0 0.0
      %3688 = vmatprep.subr.mxu0 0.0
      %3689 = vmatpush1.msra.mxu0 0.0
      %3690 = vmatprep.subr.mxu0 0.0
      %3691 = vmatpush1.msra.mxu0 0.0
      %3692 = vmatprep.subr.mxu0 0.0
      %3693 = vmatpush1.msra.mxu0 0.0
      %3694 = vmatprep.subr.mxu0 0.0
      %3695 = vmatpush1.msra.mxu0 0.0
      %3696 = vmatprep.subr.mxu0 0.0
      %3697 = vmatpush1.msra.mxu0 0.0
      %3698 = vmatprep.subr.mxu0 0.0
      %3699 = vmatpush1.msra.mxu0 0.0
      %3700 = vmatprep.subr.mxu0 0.0
      %3701 = vmatpush1.msra.mxu0 0.0
      %3702 = vmatprep.subr.mxu0 0.0
      %3703 = vmatpush1.msra.mxu0 0.0
      %3704 = vmatprep.subr.mxu0 0.0
      %3705 = vmatpush1.msra.mxu0 0.0
      %3706 = vmatprep.subr.mxu0 0.0
      %3707 = vmatpush1.msra.mxu0 0.0
      %3708 = vmatprep.subr.mxu0 0.0
      %3709 = vmatpush1.msra.mxu0 0.0
      %3710 = vmatprep.mubr.f32.mxu0 0.0
      %3711 = vmatmul.mubr.f32.gmra.mrb[0].mxu0 %v3551
      %v3712 = vpop.f32.mrb[0].mxu0
      %v3713 = vadd.f32 0.0, %v3712
      %v3714 = vpop.f32.mrb[0].mxu0
      %3715 = vmatprep.mubr.f32.mxu0 0.0
      %3716 = vmatmul.mubr.f32.gmra.mrb[0].mxu0 %v3554
      %v3717 = vpop.f32.mrb[0].mxu0
      %v3718 = vadd.f32 0.0, %v3717
      %v3719 = vpop.f32.mrb[0].mxu0
      %3720 = vmatprep.mubr.f32.mxu0 0.0
      %3721 = vmatmul.mubr.f32.gmra.mrb[0].mxu0 %v3557
      %v3722 = vpop.f32.mrb[0].mxu0
      %v3723 = vadd.f32 0.0, %v3722
      %v3724 = vpop.f32.mrb[0].mxu0
      %3725 = vmatprep.mubr.f32.mxu0 0.0
      %3726 = vmatmul.mubr.f32.gmra.mrb[0].mxu0 %v3560
      %v3727 = vpop.f32.mrb[0].mxu0
      %v3728 = vadd.f32 0.0, %v3727
      %v3729 = vpop.f32.mrb[0].mxu0
      %3730 = vmatprep.mubr.f32.mxu0 0.0
      %3731 = vmatmul.mubr.f32.gmra.mrb[0].mxu0 %v3563
      %v3732 = vpop.f32.mrb[0].mxu0
      %v3733 = vadd.f32 0.0, %v3732
      %v3734 = vpop.f32.mrb[0].mxu0
      %3735 = vmatprep.mubr.f32.mxu0 0.0
      %3736 = vmatmul.mubr.f32.gmra.mrb[0].mxu0 %v3566
      %v3737 = vpop.f32.mrb[0].mxu0
      %v3738 = vadd.f32 0.0, %v3737
      %v3739 = vpop.f32.mrb[0].mxu0
      %3740 = vmatprep.mubr.f32.mxu0 0.0
      %3741 = vmatmul.mubr.f32.gmra.mrb[0].mxu0 %v3569
      %v3742 = vpop.f32.mrb[0].mxu0
      %v3743 = vadd.f32 0.0, %v3742
      %v3744 = vpop.f32.mrb[0].mxu0
      %3745 = vmatprep.mubr.f32.mxu0 0.0
      %3746 = vmatmul.mubr.f32.gmra.mrb[0].mxu0 %v3572
      %v3747 = vpop.f32.mrb[0].mxu0
      %v3748 = vadd.f32 0.0, %v3747
      %v3749 = vpop.f32.mrb[0].mxu0
      %3750 = vmatprep.mubr.f32.mxu0 0.0
      %3751 = vmatmul.mubr.f32.gmra.mrb[0].mxu0 %v3575
      %v3752 = vpop.f32.mrb[0].mxu0
      %v3753 = vadd.f32 0.0, %v3752
      %v3754 = vpop.f32.mrb[0].mxu0
      %3755 = vmatprep.mubr.f32.mxu0 0.0
      %3756 = vmatmul.mubr.f32.gmra.mrb[0].mxu0 %v3578
      %v3757 = vpop.f32.mrb[0].mxu0
      %v3758 = vadd.f32 0.0, %v3757
      %v3759 = vpop.f32.mrb[0].mxu0
      %3760 = vmatprep.mubr.f32.mxu0 0.0
      %3761 = vmatmul.mubr.f32.gmra.mrb[0].mxu0 %v3581
      %v3762 = vpop.f32.mrb[0].mxu0
      %v3763 = vadd.f32 0.0, %v3762
      %v3764 = vpop.f32.mrb[0].mxu0
      %3765 = vmatprep.mubr.f32.mxu0 0.0
      %3766 = vmatmul.mubr.f32.gmra.mrb[0].mxu0 %v3584
      %v3767 = vpop.f32.mrb[0].mxu0
      %v3768 = vadd.f32 0.0, %v3767
      %v3769 = vpop.f32.mrb[0].mxu0
      %3770 = vmatprep.mubr.f32.mxu0 0.0
      %3771 = vmatmul.mubr.f32.gmra.mrb[0].mxu0 %v3587
      %v3772 = vpop.f32.mrb[0].mxu0
      %v3773 = vadd.f32 0.0, %v3772
      %v3774 = vpop.f32.mrb[0].mxu0
      %3775 = vmatprep.mubr.f32.mxu0 0.0
      %3776 = vmatmul.mubr.f32.gmra.mrb[0].mxu0 %v3590
      %v3777 = vpop.f32.mrb[0].mxu0
      %v3778 = vadd.f32 0.0, %v3777
      %v3779 = vpop.f32.mrb[0].mxu0
      %3780 = vmatprep.mubr.f32.mxu0 0.0
      %3781 = vmatmul.mubr.f32.gmra.mrb[0].mxu0 %v3593
      %v3782 = vpop.f32.mrb[0].mxu0
      %v3783 = vadd.f32 0.0, %v3782
      %v3784 = vpop.f32.mrb[0].mxu0
      %3785 = vmatprep.mubr.f32.mxu0 0.0
      %3786 = vmatmul.mubr.f32.gmra.mrb[0].mxu0 %v3596
      %v3787 = vpop.f32.mrb[0].mxu0
      %v3788 = vadd.f32 0.0, %v3787
      %v3789 = vpop.f32.mrb[0].mxu0
      %3790 = vmatprep.mubr.f32.mxu0 0.0
      %3791 = vmatmul.mubr.f32.gmra.mrb[0].mxu0 %v3599
      %v3792 = vpop.f32.mrb[0].mxu0
      %v3793 = vadd.f32 0.0, %v3792
      %v3794 = vpop.f32.mrb[0].mxu0
      %3795 = vmatprep.mubr.f32.mxu0 0.0
      %3796 = vmatmul.mubr.f32.gmra.mrb[0].mxu0 %v3602
      %v3797 = vpop.f32.mrb[0].mxu0
      %v3798 = vadd.f32 0.0, %v3797
      %v3799 = vpop.f32.mrb[0].mxu0
      %3800 = vmatprep.mubr.f32.mxu0 0.0
      %3801 = vmatmul.mubr.f32.gmra.mrb[0].mxu0 %v3605
      %v3802 = vpop.f32.mrb[0].mxu0
      %v3803 = vadd.f32 0.0, %v3802
      %v3804 = vpop.f32.mrb[0].mxu0
      %3805 = vmatprep.mubr.f32.mxu0 0.0
      %3806 = vmatmul.mubr.f32.gmra.mrb[0].mxu0 %v3608
      %v3807 = vpop.f32.mrb[0].mxu0
      %v3808 = vadd.f32 0.0, %v3807
      %v3809 = vpop.f32.mrb[0].mxu0
      %3810 = vmatprep.mubr.f32.mxu0 0.0
      %3811 = vmatmul.mubr.f32.gmra.mrb[0].mxu0 %v3611
      %v3812 = vpop.f32.mrb[0].mxu0
      %v3813 = vadd.f32 0.0, %v3812
      %v3814 = vpop.f32.mrb[0].mxu0
      %3815 = vmatprep.mubr.f32.mxu0 0.0
      %3816 = vmatmul.mubr.f32.gmra.mrb[0].mxu0 %v3614
      %v3817 = vpop.f32.mrb[0].mxu0
      %v3818 = vadd.f32 0.0, %v3817
      %v3819 = vpop.f32.mrb[0].mxu0
      %3820 = vmatprep.mubr.f32.mxu0 0.0
      %3821 = vmatmul.mubr.f32.gmra.mrb[0].mxu0 %v3617
      %v3822 = vpop.f32.mrb[0].mxu0
      %v3823 = vadd.f32 0.0, %v3822
      %v3824 = vpop.f32.mrb[0].mxu0
      %3825 = vmatprep.mubr.f32.mxu0 0.0
      %3826 = vmatmul.mubr.f32.gmra.mrb[0].mxu0 %v3620
      %v3827 = vpop.f32.mrb[0].mxu0
      %v3828 = vadd.f32 0.0, %v3827
      %v3829 = vpop.f32.mrb[0].mxu0
      %3830 = vmatprep.mubr.f32.mxu0 0.0
      %3831 = vmatmul.mubr.f32.gmra.mrb[0].mxu0 %v3623
      %v3832 = vpop.f32.mrb[0].mxu0
      %v3833 = vadd.f32 0.0, %v3832
      %v3834 = vpop.f32.mrb[0].mxu0
      %3835 = vmatprep.mubr.f32.mxu0 0.0
      %3836 = vmatmul.mubr.f32.gmra.mrb[0].mxu0 %v3626
      %v3837 = vpop.f32.mrb[0].mxu0
      %v3838 = vadd.f32 0.0, %v3837
      %v3839 = vpop.f32.mrb[0].mxu0
      %3840 = vmatprep.mubr.f32.mxu0 0.0
      %3841 = vmatmul.mubr.f32.gmra.mrb[0].mxu0 %v3629
      %v3842 = vpop.f32.mrb[0].mxu0
      %v3843 = vadd.f32 0.0, %v3842
      %v3844 = vpop.f32.mrb[0].mxu0
      %3845 = vmatprep.mubr.f32.mxu0 0.0
      %3846 = vmatmul.mubr.f32.gmra.mrb[0].mxu0 %v3632
      %v3847 = vpop.f32.mrb[0].mxu0
      %v3848 = vadd.f32 0.0, %v3847
      %v3849 = vpop.f32.mrb[0].mxu0
      %3850 = vmatprep.mubr.f32.mxu0 0.0
      %3851 = vmatmul.mubr.f32.gmra.mrb[0].mxu0 %v3635
      %v3852 = vpop.f32.mrb[0].mxu0
      %v3853 = vadd.f32 0.0, %v3852
      %v3854 = vpop.f32.mrb[0].mxu0
      %3855 = vmatprep.mubr.f32.mxu0 0.0
      %3856 = vmatmul.mubr.f32.gmra.mrb[0].mxu0 %v3638
      %v3857 = vpop.f32.mrb[0].mxu0
      %v3858 = vadd.f32 0.0, %v3857
      %v3859 = vpop.f32.mrb[0].mxu0
      %3860 = vmatprep.mubr.f32.mxu0 0.0
      %3861 = vmatmul.mubr.f32.gmra.mrb[0].mxu0 %v3641
      %v3862 = vpop.f32.mrb[0].mxu0
      %v3863 = vadd.f32 0.0, %v3862
      %v3864 = vpop.f32.mrb[0].mxu0
      %3865 = vmatprep.mubr.f32.mxu0 0.0
      %3866 = vmatmul.mubr.f32.gmra.mrb[0].mxu0 %v3644
      %v3867 = vpop.f32.mrb[0].mxu0
      %v3868 = vadd.f32 0.0, %v3867
      %v3869 = vpop.f32.mrb[0].mxu0
      %3870 = vdwg.mxu0
      %v3871 = vadd.f32 %v3486, %v3713
      %v3872 = vadd.f32 %v3487, %v3718
      %v3873 = vadd.f32 %v3488, %v3723
      %v3874 = vadd.f32 %v3489, %v3728
      %v3875 = vadd.f32 %v3490, %v3733
      %v3876 = vadd.f32 %v3491, %v3738
      %v3877 = vadd.f32 %v3492, %v3743
      %v3878 = vadd.f32 %v3493, %v3748
      %v3879 = vadd.f32 %v3494, %v3753
      %v3880 = vadd.f32 %v3495, %v3758
      %v3881 = vadd.f32 %v3496, %v3763
      %v3882 = vadd.f32 %v3497, %v3768
      %v3883 = vadd.f32 %v3498, %v3773
      %v3884 = vadd.f32 %v3499, %v3778
      %v3885 = vadd.f32 %v3500, %v3783
      %v3886 = vadd.f32 %v3501, %v3788
      %v3887 = vadd.f32 %v3502, %v3793
      %v3888 = vadd.f32 %v3503, %v3798
      %v3889 = vadd.f32 %v3504, %v3803
      %v3890 = vadd.f32 %v3505, %v3808
      %v3891 = vadd.f32 %v3506, %v3813
      %v3892 = vadd.f32 %v3507, %v3818
      %v3893 = vadd.f32 %v3508, %v3823
      %v3894 = vadd.f32 %v3509, %v3828
      %v3895 = vadd.f32 %v3510, %v3833
      %v3896 = vadd.f32 %v3511, %v3838
      %v3897 = vadd.f32 %v3512, %v3843
      %v3898 = vadd.f32 %v3513, %v3848
      %v3899 = vadd.f32 %v3514, %v3853
      %v3900 = vadd.f32 %v3515, %v3858
      %v3901 = vadd.f32 %v3516, %v3863
      %v3902 = vadd.f32 %v3517, %v3868
      %v3903 = vld [vmem:[#allocation2 + $0xa] sm:$0xff]
      %v3904 = vld [vmem:[#allocation2 + $0x12] sm:$0xff]
      %v3905 = vld [vmem:[#allocation2 + $0x2a] sm:$0xff]
      %v3906 = vld [vmem:[#allocation2 + $0x32] sm:$0xff]
      %v3907 = vld [vmem:[#allocation2 + $0x4a] sm:$0xff]
      %v3908 = vld [vmem:[#allocation2 + $0x52] sm:$0xff]
      %v3909 = vld [vmem:[#allocation2 + $0x6a] sm:$0xff]
      %v3910 = vld [vmem:[#allocation2 + $0x72] sm:$0xff]
      %v3911 = vld [vmem:[#allocation2 + $0x8a] sm:$0xff]
      %v3912 = vld [vmem:[#allocation2 + $0x92] sm:$0xff]
      %v3913 = vld [vmem:[#allocation2 + $0xaa] sm:$0xff]
      %v3914 = vld [vmem:[#allocation2 + $0xb2] sm:$0xff]
      %v3915 = vld [vmem:[#allocation2 + $0xca] sm:$0xff]
      %v3916 = vld [vmem:[#allocation2 + $0xd2] sm:$0xff]
      %v3917 = vld [vmem:[#allocation2 + $0xea] sm:$0xff]
      %v3918 = vld [vmem:[#allocation2 + $0xf2] sm:$0xff]
      %v3919 = vld [vmem:[#allocation2 + $0x10a] sm:$0xff]
      %v3920 = vld [vmem:[#allocation2 + $0x112] sm:$0xff]
      %v3921 = vld [vmem:[#allocation2 + $0x12a] sm:$0xff]
      %v3922 = vld [vmem:[#allocation2 + $0x132] sm:$0xff]
      %v3923 = vld [vmem:[#allocation2 + $0x14a] sm:$0xff]
      %v3924 = vld [vmem:[#allocation2 + $0x152] sm:$0xff]
      %v3925 = vld [vmem:[#allocation2 + $0x16a] sm:$0xff]
      %v3926 = vld [vmem:[#allocation2 + $0x172] sm:$0xff]
      %v3927 = vld [vmem:[#allocation2 + $0x18a] sm:$0xff]
      %v3928 = vld [vmem:[#allocation2 + $0x192] sm:$0xff]
      %v3929 = vld [vmem:[#allocation2 + $0x1aa] sm:$0xff]
      %v3930 = vld [vmem:[#allocation2 + $0x1b2] sm:$0xff]
      %v3931 = vld [vmem:[#allocation2 + $0x1ca] sm:$0xff]
      %v3932 = vld [vmem:[#allocation2 + $0x1d2] sm:$0xff]
      %v3933 = vld [vmem:[#allocation2 + $0x1ea] sm:$0xff]
      %v3934 = vld [vmem:[#allocation2 + $0x1f2] sm:$0xff]
      %v3936 = vsel %vm2259, %v3903, 0
      %v3939 = vsel %vm2259, %v3904, 0
      %v3942 = vsel %vm2259, %v3905, 0
      %v3945 = vsel %vm2259, %v3906, 0
      %v3948 = vsel %vm2259, %v3907, 0
      %v3951 = vsel %vm2259, %v3908, 0
      %v3954 = vsel %vm2259, %v3909, 0
      %v3957 = vsel %vm2259, %v3910, 0
      %v3960 = vsel %vm2259, %v3911, 0
      %v3963 = vsel %vm2259, %v3912, 0
      %v3966 = vsel %vm2259, %v3913, 0
      %v3969 = vsel %vm2259, %v3914, 0
      %v3972 = vsel %vm2259, %v3915, 0
      %v3975 = vsel %vm2259, %v3916, 0
      %v3978 = vsel %vm2259, %v3917, 0
      %v3981 = vsel %vm2259, %v3918, 0
      %v3984 = vsel %vm2259, %v3919, 0
      %v3987 = vsel %vm2259, %v3920, 0
      %v3990 = vsel %vm2259, %v3921, 0
      %v3993 = vsel %vm2259, %v3922, 0
      %v3996 = vsel %vm2259, %v3923, 0
      %v3999 = vsel %vm2259, %v3924, 0
      %v4002 = vsel %vm2259, %v3925, 0
      %v4005 = vsel %vm2259, %v3926, 0
      %v4008 = vsel %vm2259, %v3927, 0
      %v4011 = vsel %vm2259, %v3928, 0
      %v4014 = vsel %vm2259, %v3929, 0
      %v4017 = vsel %vm2259, %v3930, 0
      %v4020 = vsel %vm2259, %v3931, 0
      %v4023 = vsel %vm2259, %v3932, 0
      %v4026 = vsel %vm2259, %v3933, 0
      %v4029 = vsel %vm2259, %v3934, 0
      %4031 = vmatprep.subr.mxu0 0.0
      %4032 = vmatpush1.msra.mxu0 %v306
      %4033 = vmatprep.subr.mxu0 0.0
      %4034 = vmatpush1.msra.mxu0 %v307
      %4035 = vmatprep.subr.mxu0 0.0
      %4036 = vmatpush1.msra.mxu0 %v308
      %4037 = vmatprep.subr.mxu0 0.0
      %4038 = vmatpush1.msra.mxu0 %v309
      %4039 = vmatprep.subr.mxu0 0.0
      %4040 = vmatpush1.msra.mxu0 0.0
      %4041 = vmatprep.subr.mxu0 0.0
      %4042 = vmatpush1.msra.mxu0 0.0
      %4043 = vmatprep.subr.mxu0 0.0
      %4044 = vmatpush1.msra.mxu0 0.0
      %4045 = vmatprep.subr.mxu0 0.0
      %4046 = vmatpush1.msra.mxu0 0.0
      %4047 = vmatprep.subr.mxu0 0.0
      %4048 = vmatpush1.msra.mxu0 0.0
      %4049 = vmatprep.subr.mxu0 0.0
      %4050 = vmatpush1.msra.mxu0 0.0
      %4051 = vmatprep.subr.mxu0 0.0
      %4052 = vmatpush1.msra.mxu0 0.0
      %4053 = vmatprep.subr.mxu0 0.0
      %4054 = vmatpush1.msra.mxu0 0.0
      %4055 = vmatprep.subr.mxu0 0.0
      %4056 = vmatpush1.msra.mxu0 0.0
      %4057 = vmatprep.subr.mxu0 0.0
      %4058 = vmatpush1.msra.mxu0 0.0
      %4059 = vmatprep.subr.mxu0 0.0
      %4060 = vmatpush1.msra.mxu0 0.0
      %4061 = vmatprep.subr.mxu0 0.0
      %4062 = vmatpush1.msra.mxu0 0.0
      %4063 = vmatprep.subr.mxu0 0.0
      %4064 = vmatpush1.msra.mxu0 0.0
      %4065 = vmatprep.subr.mxu0 0.0
      %4066 = vmatpush1.msra.mxu0 0.0
      %4067 = vmatprep.subr.mxu0 0.0
      %4068 = vmatpush1.msra.mxu0 0.0
      %4069 = vmatprep.subr.mxu0 0.0
      %4070 = vmatpush1.msra.mxu0 0.0
      %4071 = vmatprep.subr.mxu0 0.0
      %4072 = vmatpush1.msra.mxu0 0.0
      %4073 = vmatprep.subr.mxu0 0.0
      %4074 = vmatpush1.msra.mxu0 0.0
      %4075 = vmatprep.subr.mxu0 0.0
      %4076 = vmatpush1.msra.mxu0 0.0
      %4077 = vmatprep.subr.mxu0 0.0
      %4078 = vmatpush1.msra.mxu0 0.0
      %4079 = vmatprep.subr.mxu0 0.0
      %4080 = vmatpush1.msra.mxu0 0.0
      %4081 = vmatprep.subr.mxu0 0.0
      %4082 = vmatpush1.msra.mxu0 0.0
      %4083 = vmatprep.subr.mxu0 0.0
      %4084 = vmatpush1.msra.mxu0 0.0
      %4085 = vmatprep.subr.mxu0 0.0
      %4086 = vmatpush1.msra.mxu0 0.0
      %4087 = vmatprep.subr.mxu0 0.0
      %4088 = vmatpush1.msra.mxu0 0.0
      %4089 = vmatprep.subr.mxu0 0.0
      %4090 = vmatpush1.msra.mxu0 0.0
      %4091 = vmatprep.subr.mxu0 0.0
      %4092 = vmatpush1.msra.mxu0 0.0
      %4093 = vmatprep.subr.mxu0 0.0
      %4094 = vmatpush1.msra.mxu0 0.0
      %4095 = vmatprep.mubr.f32.mxu0 0.0
      %4096 = vmatmul.mubr.f32.gmra.mrb[0].mxu0 %v3936
      %v4097 = vpop.f32.mrb[0].mxu0
      %v4098 = vadd.f32 0.0, %v4097
      %v4099 = vpop.f32.mrb[0].mxu0
      %4100 = vmatprep.mubr.f32.mxu0 0.0
      %4101 = vmatmul.mubr.f32.gmra.mrb[0].mxu0 %v3939
      %v4102 = vpop.f32.mrb[0].mxu0
      %v4103 = vadd.f32 0.0, %v4102
      %v4104 = vpop.f32.mrb[0].mxu0
      %4105 = vmatprep.mubr.f32.mxu0 0.0
      %4106 = vmatmul.mubr.f32.gmra.mrb[0].mxu0 %v3942
      %v4107 = vpop.f32.mrb[0].mxu0
      %v4108 = vadd.f32 0.0, %v4107
      %v4109 = vpop.f32.mrb[0].mxu0
      %4110 = vmatprep.mubr.f32.mxu0 0.0
      %4111 = vmatmul.mubr.f32.gmra.mrb[0].mxu0 %v3945
      %v4112 = vpop.f32.mrb[0].mxu0
      %v4113 = vadd.f32 0.0, %v4112
      %v4114 = vpop.f32.mrb[0].mxu0
      %4115 = vmatprep.mubr.f32.mxu0 0.0
      %4116 = vmatmul.mubr.f32.gmra.mrb[0].mxu0 %v3948
      %v4117 = vpop.f32.mrb[0].mxu0
      %v4118 = vadd.f32 0.0, %v4117
      %v4119 = vpop.f32.mrb[0].mxu0
      %4120 = vmatprep.mubr.f32.mxu0 0.0
      %4121 = vmatmul.mubr.f32.gmra.mrb[0].mxu0 %v3951
      %v4122 = vpop.f32.mrb[0].mxu0
      %v4123 = vadd.f32 0.0, %v4122
      %v4124 = vpop.f32.mrb[0].mxu0
      %4125 = vmatprep.mubr.f32.mxu0 0.0
      %4126 = vmatmul.mubr.f32.gmra.mrb[0].mxu0 %v3954
      %v4127 = vpop.f32.mrb[0].mxu0
      %v4128 = vadd.f32 0.0, %v4127
      %v4129 = vpop.f32.mrb[0].mxu0
      %4130 = vmatprep.mubr.f32.mxu0 0.0
      %4131 = vmatmul.mubr.f32.gmra.mrb[0].mxu0 %v3957
      %v4132 = vpop.f32.mrb[0].mxu0
      %v4133 = vadd.f32 0.0, %v4132
      %v4134 = vpop.f32.mrb[0].mxu0
      %4135 = vmatprep.mubr.f32.mxu0 0.0
      %4136 = vmatmul.mubr.f32.gmra.mrb[0].mxu0 %v3960
      %v4137 = vpop.f32.mrb[0].mxu0
      %v4138 = vadd.f32 0.0, %v4137
      %v4139 = vpop.f32.mrb[0].mxu0
      %4140 = vmatprep.mubr.f32.mxu0 0.0
      %4141 = vmatmul.mubr.f32.gmra.mrb[0].mxu0 %v3963
      %v4142 = vpop.f32.mrb[0].mxu0
      %v4143 = vadd.f32 0.0, %v4142
      %v4144 = vpop.f32.mrb[0].mxu0
      %4145 = vmatprep.mubr.f32.mxu0 0.0
      %4146 = vmatmul.mubr.f32.gmra.mrb[0].mxu0 %v3966
      %v4147 = vpop.f32.mrb[0].mxu0
      %v4148 = vadd.f32 0.0, %v4147
      %v4149 = vpop.f32.mrb[0].mxu0
      %4150 = vmatprep.mubr.f32.mxu0 0.0
      %4151 = vmatmul.mubr.f32.gmra.mrb[0].mxu0 %v3969
      %v4152 = vpop.f32.mrb[0].mxu0
      %v4153 = vadd.f32 0.0, %v4152
      %v4154 = vpop.f32.mrb[0].mxu0
      %4155 = vmatprep.mubr.f32.mxu0 0.0
      %4156 = vmatmul.mubr.f32.gmra.mrb[0].mxu0 %v3972
      %v4157 = vpop.f32.mrb[0].mxu0
      %v4158 = vadd.f32 0.0, %v4157
      %v4159 = vpop.f32.mrb[0].mxu0
      %4160 = vmatprep.mubr.f32.mxu0 0.0
      %4161 = vmatmul.mubr.f32.gmra.mrb[0].mxu0 %v3975
      %v4162 = vpop.f32.mrb[0].mxu0
      %v4163 = vadd.f32 0.0, %v4162
      %v4164 = vpop.f32.mrb[0].mxu0
      %4165 = vmatprep.mubr.f32.mxu0 0.0
      %4166 = vmatmul.mubr.f32.gmra.mrb[0].mxu0 %v3978
      %v4167 = vpop.f32.mrb[0].mxu0
      %v4168 = vadd.f32 0.0, %v4167
      %v4169 = vpop.f32.mrb[0].mxu0
      %4170 = vmatprep.mubr.f32.mxu0 0.0
      %4171 = vmatmul.mubr.f32.gmra.mrb[0].mxu0 %v3981
      %v4172 = vpop.f32.mrb[0].mxu0
      %v4173 = vadd.f32 0.0, %v4172
      %v4174 = vpop.f32.mrb[0].mxu0
      %4175 = vmatprep.mubr.f32.mxu0 0.0
      %4176 = vmatmul.mubr.f32.gmra.mrb[0].mxu0 %v3984
      %v4177 = vpop.f32.mrb[0].mxu0
      %v4178 = vadd.f32 0.0, %v4177
      %v4179 = vpop.f32.mrb[0].mxu0
      %4180 = vmatprep.mubr.f32.mxu0 0.0
      %4181 = vmatmul.mubr.f32.gmra.mrb[0].mxu0 %v3987
      %v4182 = vpop.f32.mrb[0].mxu0
      %v4183 = vadd.f32 0.0, %v4182
      %v4184 = vpop.f32.mrb[0].mxu0
      %4185 = vmatprep.mubr.f32.mxu0 0.0
      %4186 = vmatmul.mubr.f32.gmra.mrb[0].mxu0 %v3990
      %v4187 = vpop.f32.mrb[0].mxu0
      %v4188 = vadd.f32 0.0, %v4187
      %v4189 = vpop.f32.mrb[0].mxu0
      %4190 = vmatprep.mubr.f32.mxu0 0.0
      %4191 = vmatmul.mubr.f32.gmra.mrb[0].mxu0 %v3993
      %v4192 = vpop.f32.mrb[0].mxu0
      %v4193 = vadd.f32 0.0, %v4192
      %v4194 = vpop.f32.mrb[0].mxu0
      %4195 = vmatprep.mubr.f32.mxu0 0.0
      %4196 = vmatmul.mubr.f32.gmra.mrb[0].mxu0 %v3996
      %v4197 = vpop.f32.mrb[0].mxu0
      %v4198 = vadd.f32 0.0, %v4197
      %v4199 = vpop.f32.mrb[0].mxu0
      %4200 = vmatprep.mubr.f32.mxu0 0.0
      %4201 = vmatmul.mubr.f32.gmra.mrb[0].mxu0 %v3999
      %v4202 = vpop.f32.mrb[0].mxu0
      %v4203 = vadd.f32 0.0, %v4202
      %v4204 = vpop.f32.mrb[0].mxu0
      %4205 = vmatprep.mubr.f32.mxu0 0.0
      %4206 = vmatmul.mubr.f32.gmra.mrb[0].mxu0 %v4002
      %v4207 = vpop.f32.mrb[0].mxu0
      %v4208 = vadd.f32 0.0, %v4207
      %v4209 = vpop.f32.mrb[0].mxu0
      %4210 = vmatprep.mubr.f32.mxu0 0.0
      %4211 = vmatmul.mubr.f32.gmra.mrb[0].mxu0 %v4005
      %v4212 = vpop.f32.mrb[0].mxu0
      %v4213 = vadd.f32 0.0, %v4212
      %v4214 = vpop.f32.mrb[0].mxu0
      %4215 = vmatprep.mubr.f32.mxu0 0.0
      %4216 = vmatmul.mubr.f32.gmra.mrb[0].mxu0 %v4008
      %v4217 = vpop.f32.mrb[0].mxu0
      %v4218 = vadd.f32 0.0, %v4217
      %v4219 = vpop.f32.mrb[0].mxu0
      %4220 = vmatprep.mubr.f32.mxu0 0.0
      %4221 = vmatmul.mubr.f32.gmra.mrb[0].mxu0 %v4011
      %v4222 = vpop.f32.mrb[0].mxu0
      %v4223 = vadd.f32 0.0, %v4222
      %v4224 = vpop.f32.mrb[0].mxu0
      %4225 = vmatprep.mubr.f32.mxu0 0.0
      %4226 = vmatmul.mubr.f32.gmra.mrb[0].mxu0 %v4014
      %v4227 = vpop.f32.mrb[0].mxu0
      %v4228 = vadd.f32 0.0, %v4227
      %v4229 = vpop.f32.mrb[0].mxu0
      %4230 = vmatprep.mubr.f32.mxu0 0.0
      %4231 = vmatmul.mubr.f32.gmra.mrb[0].mxu0 %v4017
      %v4232 = vpop.f32.mrb[0].mxu0
      %v4233 = vadd.f32 0.0, %v4232
      %v4234 = vpop.f32.mrb[0].mxu0
      %4235 = vmatprep.mubr.f32.mxu0 0.0
      %4236 = vmatmul.mubr.f32.gmra.mrb[0].mxu0 %v4020
      %v4237 = vpop.f32.mrb[0].mxu0
      %v4238 = vadd.f32 0.0, %v4237
      %v4239 = vpop.f32.mrb[0].mxu0
      %4240 = vmatprep.mubr.f32.mxu0 0.0
      %4241 = vmatmul.mubr.f32.gmra.mrb[0].mxu0 %v4023
      %v4242 = vpop.f32.mrb[0].mxu0
      %v4243 = vadd.f32 0.0, %v4242
      %v4244 = vpop.f32.mrb[0].mxu0
      %4245 = vmatprep.mubr.f32.mxu0 0.0
      %4246 = vmatmul.mubr.f32.gmra.mrb[0].mxu0 %v4026
      %v4247 = vpop.f32.mrb[0].mxu0
      %v4248 = vadd.f32 0.0, %v4247
      %v4249 = vpop.f32.mrb[0].mxu0
      %4250 = vmatprep.mubr.f32.mxu0 0.0
      %4251 = vmatmul.mubr.f32.gmra.mrb[0].mxu0 %v4029
      %v4252 = vpop.f32.mrb[0].mxu0
      %v4253 = vadd.f32 0.0, %v4252
      %v4254 = vpop.f32.mrb[0].mxu0
      %4255 = vdwg.mxu0
      %v4256 = vadd.f32 %v3871, %v4098
      %v4257 = vadd.f32 %v3872, %v4103
      %v4258 = vadd.f32 %v3873, %v4108
      %v4259 = vadd.f32 %v3874, %v4113
      %v4260 = vadd.f32 %v3875, %v4118
      %v4261 = vadd.f32 %v3876, %v4123
      %v4262 = vadd.f32 %v3877, %v4128
      %v4263 = vadd.f32 %v3878, %v4133
      %v4264 = vadd.f32 %v3879, %v4138
      %v4265 = vadd.f32 %v3880, %v4143
      %v4266 = vadd.f32 %v3881, %v4148
      %v4267 = vadd.f32 %v3882, %v4153
      %v4268 = vadd.f32 %v3883, %v4158
      %v4269 = vadd.f32 %v3884, %v4163
      %v4270 = vadd.f32 %v3885, %v4168
      %v4271 = vadd.f32 %v3886, %v4173
      %v4272 = vadd.f32 %v3887, %v4178
      %v4273 = vadd.f32 %v3888, %v4183
      %v4274 = vadd.f32 %v3889, %v4188
      %v4275 = vadd.f32 %v3890, %v4193
      %v4276 = vadd.f32 %v3891, %v4198
      %v4277 = vadd.f32 %v3892, %v4203
      %v4278 = vadd.f32 %v3893, %v4208
      %v4279 = vadd.f32 %v3894, %v4213
      %v4280 = vadd.f32 %v3895, %v4218
      %v4281 = vadd.f32 %v3896, %v4223
      %v4282 = vadd.f32 %v3897, %v4228
      %v4283 = vadd.f32 %v3898, %v4233
      %v4284 = vadd.f32 %v3899, %v4238
      %v4285 = vadd.f32 %v3900, %v4243
      %v4286 = vadd.f32 %v3901, %v4248
      %v4287 = vadd.f32 %v3902, %v4253
      %v4288 = vmax.f32 %v4256, 0.0
      %v4289 = vmax.f32 %v4257, 0.0
      %v4290 = vmax.f32 %v4258, 0.0
      %v4291 = vmax.f32 %v4259, 0.0
      %v4292 = vmax.f32 %v4260, 0.0
      %v4293 = vmax.f32 %v4261, 0.0
      %v4294 = vmax.f32 %v4262, 0.0
      %v4295 = vmax.f32 %v4263, 0.0
      %v4296 = vmax.f32 %v4264, 0.0
      %v4297 = vmax.f32 %v4265, 0.0
      %v4298 = vmax.f32 %v4266, 0.0
      %v4299 = vmax.f32 %v4267, 0.0
      %v4300 = vmax.f32 %v4268, 0.0
      %v4301 = vmax.f32 %v4269, 0.0
      %v4302 = vmax.f32 %v4270, 0.0
      %v4303 = vmax.f32 %v4271, 0.0
      %v4304 = vmax.f32 %v4272, 0.0
      %v4305 = vmax.f32 %v4273, 0.0
      %v4306 = vmax.f32 %v4274, 0.0
      %v4307 = vmax.f32 %v4275, 0.0
      %v4308 = vmax.f32 %v4276, 0.0
      %v4309 = vmax.f32 %v4277, 0.0
      %v4310 = vmax.f32 %v4278, 0.0
      %v4311 = vmax.f32 %v4279, 0.0
      %v4312 = vmax.f32 %v4280, 0.0
      %v4313 = vmax.f32 %v4281, 0.0
      %v4314 = vmax.f32 %v4282, 0.0
      %v4315 = vmax.f32 %v4283, 0.0
      %v4316 = vmax.f32 %v4284, 0.0
      %v4317 = vmax.f32 %v4285, 0.0
      %v4318 = vmax.f32 %v4286, 0.0
      %v4319 = vmax.f32 %v4287, 0.0
      %v4320 = vld [vmem:[%s5] sm:$0xff]
      %v4321 = vld [vmem:[%s5 + $0x8] sm:$0xff]
      %v4322 = vld [vmem:[%s5 + $0x10] sm:$0xff]
      %v4323 = vld [vmem:[%s5 + $0x18] sm:$0xff]
      %v4325 = vsel %vm2259, %v4288, 0
      %v4328 = vsel %vm2259, %v4289, 0
      %v4331 = vsel %vm2259, %v4290, 0
      %v4334 = vsel %vm2259, %v4291, 0
      %v4337 = vsel %vm2259, %v4292, 0
      %v4340 = vsel %vm2259, %v4293, 0
      %v4343 = vsel %vm2259, %v4294, 0
      %v4346 = vsel %vm2259, %v4295, 0
      %v4349 = vsel %vm2259, %v4296, 0
      %v4352 = vsel %vm2259, %v4297, 0
      %v4355 = vsel %vm2259, %v4298, 0
      %v4358 = vsel %vm2259, %v4299, 0
      %v4361 = vsel %vm2259, %v4300, 0
      %v4364 = vsel %vm2259, %v4301, 0
      %v4367 = vsel %vm2259, %v4302, 0
      %v4370 = vsel %vm2259, %v4303, 0
      %v4373 = vsel %vm2259, %v4304, 0
      %v4376 = vsel %vm2259, %v4305, 0
      %v4379 = vsel %vm2259, %v4306, 0
      %v4382 = vsel %vm2259, %v4307, 0
      %v4385 = vsel %vm2259, %v4308, 0
      %v4388 = vsel %vm2259, %v4309, 0
      %v4391 = vsel %vm2259, %v4310, 0
      %v4394 = vsel %vm2259, %v4311, 0
      %v4397 = vsel %vm2259, %v4312, 0
      %v4400 = vsel %vm2259, %v4313, 0
      %v4403 = vsel %vm2259, %v4314, 0
      %v4406 = vsel %vm2259, %v4315, 0
      %v4409 = vsel %vm2259, %v4316, 0
      %v4412 = vsel %vm2259, %v4317, 0
      %v4415 = vsel %vm2259, %v4318, 0
      %v4418 = vsel %vm2259, %v4319, 0
      %4420 = vmatprep.subr.mxu0 0.0
      %4421 = vmatpush1.msra.mxu0 %v4320
      %4422 = vmatprep.subr.mxu0 0.0
      %4423 = vmatpush1.msra.mxu0 %v4321
      %4424 = vmatprep.subr.mxu0 0.0
      %4425 = vmatpush1.msra.mxu0 %v4322
      %4426 = vmatprep.subr.mxu0 0.0
      %4427 = vmatpush1.msra.mxu0 %v4323
      %4428 = vmatprep.subr.mxu0 0.0
      %4429 = vmatpush1.msra.mxu0 0.0
      %4430 = vmatprep.subr.mxu0 0.0
      %4431 = vmatpush1.msra.mxu0 0.0
      %4432 = vmatprep.subr.mxu0 0.0
      %4433 = vmatpush1.msra.mxu0 0.0
      %4434 = vmatprep.subr.mxu0 0.0
      %4435 = vmatpush1.msra.mxu0 0.0
      %4436 = vmatprep.subr.mxu0 0.0
      %4437 = vmatpush1.msra.mxu0 0.0
      %4438 = vmatprep.subr.mxu0 0.0
      %4439 = vmatpush1.msra.mxu0 0.0
      %4440 = vmatprep.subr.mxu0 0.0
      %4441 = vmatpush1.msra.mxu0 0.0
      %4442 = vmatprep.subr.mxu0 0.0
      %4443 = vmatpush1.msra.mxu0 0.0
      %4444 = vmatprep.subr.mxu0 0.0
      %4445 = vmatpush1.msra.mxu0 0.0
      %4446 = vmatprep.subr.mxu0 0.0
      %4447 = vmatpush1.msra.mxu0 0.0
      %4448 = vmatprep.subr.mxu0 0.0
      %4449 = vmatpush1.msra.mxu0 0.0
      %4450 = vmatprep.subr.mxu0 0.0
      %4451 = vmatpush1.msra.mxu0 0.0
      %4452 = vmatprep.subr.mxu0 0.0
      %4453 = vmatpush1.msra.mxu0 0.0
      %4454 = vmatprep.subr.mxu0 0.0
      %4455 = vmatpush1.msra.mxu0 0.0
      %4456 = vmatprep.subr.mxu0 0.0
      %4457 = vmatpush1.msra.mxu0 0.0
      %4458 = vmatprep.subr.mxu0 0.0
      %4459 = vmatpush1.msra.mxu0 0.0
      %4460 = vmatprep.subr.mxu0 0.0
      %4461 = vmatpush1.msra.mxu0 0.0
      %4462 = vmatprep.subr.mxu0 0.0
      %4463 = vmatpush1.msra.mxu0 0.0
      %4464 = vmatprep.subr.mxu0 0.0
      %4465 = vmatpush1.msra.mxu0 0.0
      %4466 = vmatprep.subr.mxu0 0.0
      %4467 = vmatpush1.msra.mxu0 0.0
      %4468 = vmatprep.subr.mxu0 0.0
      %4469 = vmatpush1.msra.mxu0 0.0
      %4470 = vmatprep.subr.mxu0 0.0
      %4471 = vmatpush1.msra.mxu0 0.0
      %4472 = vmatprep.subr.mxu0 0.0
      %4473 = vmatpush1.msra.mxu0 0.0
      %4474 = vmatprep.subr.mxu0 0.0
      %4475 = vmatpush1.msra.mxu0 0.0
      %4476 = vmatprep.subr.mxu0 0.0
      %4477 = vmatpush1.msra.mxu0 0.0
      %4478 = vmatprep.subr.mxu0 0.0
      %4479 = vmatpush1.msra.mxu0 0.0
      %4480 = vmatprep.subr.mxu0 0.0
      %4481 = vmatpush1.msra.mxu0 0.0
      %4482 = vmatprep.subr.mxu0 0.0
      %4483 = vmatpush1.msra.mxu0 0.0
      %4484 = vmatprep.mubr.f32.mxu0 0.0
      %4485 = vmatmul.mubr.f32.gmra.mrb[0].mxu0 %v4325
      %v4486 = vpop.f32.mrb[0].mxu0
      %v4487 = vadd.f32 0.0, %v4486
      %v4488 = vpop.f32.mrb[0].mxu0
      %4489 = vmatprep.mubr.f32.mxu0 0.0
      %4490 = vmatmul.mubr.f32.gmra.mrb[0].mxu0 %v4328
      %v4491 = vpop.f32.mrb[0].mxu0
      %v4492 = vadd.f32 0.0, %v4491
      %v4493 = vpop.f32.mrb[0].mxu0
      %4494 = vmatprep.mubr.f32.mxu0 0.0
      %4495 = vmatmul.mubr.f32.gmra.mrb[0].mxu0 %v4331
      %v4496 = vpop.f32.mrb[0].mxu0
      %v4497 = vadd.f32 0.0, %v4496
      %v4498 = vpop.f32.mrb[0].mxu0
      %4499 = vmatprep.mubr.f32.mxu0 0.0
      %4500 = vmatmul.mubr.f32.gmra.mrb[0].mxu0 %v4334
      %v4501 = vpop.f32.mrb[0].mxu0
      %v4502 = vadd.f32 0.0, %v4501
      %v4503 = vpop.f32.mrb[0].mxu0
      %4504 = vmatprep.mubr.f32.mxu0 0.0
      %4505 = vmatmul.mubr.f32.gmra.mrb[0].mxu0 %v4337
      %v4506 = vpop.f32.mrb[0].mxu0
      %v4507 = vadd.f32 0.0, %v4506
      %v4508 = vpop.f32.mrb[0].mxu0
      %4509 = vmatprep.mubr.f32.mxu0 0.0
      %4510 = vmatmul.mubr.f32.gmra.mrb[0].mxu0 %v4340
      %v4511 = vpop.f32.mrb[0].mxu0
      %v4512 = vadd.f32 0.0, %v4511
      %v4513 = vpop.f32.mrb[0].mxu0
      %4514 = vmatprep.mubr.f32.mxu0 0.0
      %4515 = vmatmul.mubr.f32.gmra.mrb[0].mxu0 %v4343
      %v4516 = vpop.f32.mrb[0].mxu0
      %v4517 = vadd.f32 0.0, %v4516
      %v4518 = vpop.f32.mrb[0].mxu0
      %4519 = vmatprep.mubr.f32.mxu0 0.0
      %4520 = vmatmul.mubr.f32.gmra.mrb[0].mxu0 %v4346
      %v4521 = vpop.f32.mrb[0].mxu0
      %v4522 = vadd.f32 0.0, %v4521
      %v4523 = vpop.f32.mrb[0].mxu0
      %4524 = vmatprep.mubr.f32.mxu0 0.0
      %4525 = vmatmul.mubr.f32.gmra.mrb[0].mxu0 %v4349
      %v4526 = vpop.f32.mrb[0].mxu0
      %v4527 = vadd.f32 0.0, %v4526
      %v4528 = vpop.f32.mrb[0].mxu0
      %4529 = vmatprep.mubr.f32.mxu0 0.0
      %4530 = vmatmul.mubr.f32.gmra.mrb[0].mxu0 %v4352
      %v4531 = vpop.f32.mrb[0].mxu0
      %v4532 = vadd.f32 0.0, %v4531
      %v4533 = vpop.f32.mrb[0].mxu0
      %4534 = vmatprep.mubr.f32.mxu0 0.0
      %4535 = vmatmul.mubr.f32.gmra.mrb[0].mxu0 %v4355
      %v4536 = vpop.f32.mrb[0].mxu0
      %v4537 = vadd.f32 0.0, %v4536
      %v4538 = vpop.f32.mrb[0].mxu0
      %4539 = vmatprep.mubr.f32.mxu0 0.0
      %4540 = vmatmul.mubr.f32.gmra.mrb[0].mxu0 %v4358
      %v4541 = vpop.f32.mrb[0].mxu0
      %v4542 = vadd.f32 0.0, %v4541
      %v4543 = vpop.f32.mrb[0].mxu0
      %4544 = vmatprep.mubr.f32.mxu0 0.0
      %4545 = vmatmul.mubr.f32.gmra.mrb[0].mxu0 %v4361
      %v4546 = vpop.f32.mrb[0].mxu0
      %v4547 = vadd.f32 0.0, %v4546
      %v4548 = vpop.f32.mrb[0].mxu0
      %4549 = vmatprep.mubr.f32.mxu0 0.0
      %4550 = vmatmul.mubr.f32.gmra.mrb[0].mxu0 %v4364
      %v4551 = vpop.f32.mrb[0].mxu0
      %v4552 = vadd.f32 0.0, %v4551
      %v4553 = vpop.f32.mrb[0].mxu0
      %4554 = vmatprep.mubr.f32.mxu0 0.0
      %4555 = vmatmul.mubr.f32.gmra.mrb[0].mxu0 %v4367
      %v4556 = vpop.f32.mrb[0].mxu0
      %v4557 = vadd.f32 0.0, %v4556
      %v4558 = vpop.f32.mrb[0].mxu0
      %4559 = vmatprep.mubr.f32.mxu0 0.0
      %4560 = vmatmul.mubr.f32.gmra.mrb[0].mxu0 %v4370
      %v4561 = vpop.f32.mrb[0].mxu0
      %v4562 = vadd.f32 0.0, %v4561
      %v4563 = vpop.f32.mrb[0].mxu0
      %4564 = vmatprep.mubr.f32.mxu0 0.0
      %4565 = vmatmul.mubr.f32.gmra.mrb[0].mxu0 %v4373
      %v4566 = vpop.f32.mrb[0].mxu0
      %v4567 = vadd.f32 0.0, %v4566
      %v4568 = vpop.f32.mrb[0].mxu0
      %4569 = vmatprep.mubr.f32.mxu0 0.0
      %4570 = vmatmul.mubr.f32.gmra.mrb[0].mxu0 %v4376
      %v4571 = vpop.f32.mrb[0].mxu0
      %v4572 = vadd.f32 0.0, %v4571
      %v4573 = vpop.f32.mrb[0].mxu0
      %4574 = vmatprep.mubr.f32.mxu0 0.0
      %4575 = vmatmul.mubr.f32.gmra.mrb[0].mxu0 %v4379
      %v4576 = vpop.f32.mrb[0].mxu0
      %v4577 = vadd.f32 0.0, %v4576
      %v4578 = vpop.f32.mrb[0].mxu0
      %4579 = vmatprep.mubr.f32.mxu0 0.0
      %4580 = vmatmul.mubr.f32.gmra.mrb[0].mxu0 %v4382
      %v4581 = vpop.f32.mrb[0].mxu0
      %v4582 = vadd.f32 0.0, %v4581
      %v4583 = vpop.f32.mrb[0].mxu0
      %4584 = vmatprep.mubr.f32.mxu0 0.0
      %4585 = vmatmul.mubr.f32.gmra.mrb[0].mxu0 %v4385
      %v4586 = vpop.f32.mrb[0].mxu0
      %v4587 = vadd.f32 0.0, %v4586
      %v4588 = vpop.f32.mrb[0].mxu0
      %4589 = vmatprep.mubr.f32.mxu0 0.0
      %4590 = vmatmul.mubr.f32.gmra.mrb[0].mxu0 %v4388
      %v4591 = vpop.f32.mrb[0].mxu0
      %v4592 = vadd.f32 0.0, %v4591
      %v4593 = vpop.f32.mrb[0].mxu0
      %4594 = vmatprep.mubr.f32.mxu0 0.0
      %4595 = vmatmul.mubr.f32.gmra.mrb[0].mxu0 %v4391
      %v4596 = vpop.f32.mrb[0].mxu0
      %v4597 = vadd.f32 0.0, %v4596
      %v4598 = vpop.f32.mrb[0].mxu0
      %4599 = vmatprep.mubr.f32.mxu0 0.0
      %4600 = vmatmul.mubr.f32.gmra.mrb[0].mxu0 %v4394
      %v4601 = vpop.f32.mrb[0].mxu0
      %v4602 = vadd.f32 0.0, %v4601
      %v4603 = vpop.f32.mrb[0].mxu0
      %4604 = vmatprep.mubr.f32.mxu0 0.0
      %4605 = vmatmul.mubr.f32.gmra.mrb[0].mxu0 %v4397
      %v4606 = vpop.f32.mrb[0].mxu0
      %v4607 = vadd.f32 0.0, %v4606
      %v4608 = vpop.f32.mrb[0].mxu0
      %4609 = vmatprep.mubr.f32.mxu0 0.0
      %4610 = vmatmul.mubr.f32.gmra.mrb[0].mxu0 %v4400
      %v4611 = vpop.f32.mrb[0].mxu0
      %v4612 = vadd.f32 0.0, %v4611
      %v4613 = vpop.f32.mrb[0].mxu0
      %4614 = vmatprep.mubr.f32.mxu0 0.0
      %4615 = vmatmul.mubr.f32.gmra.mrb[0].mxu0 %v4403
      %v4616 = vpop.f32.mrb[0].mxu0
      %v4617 = vadd.f32 0.0, %v4616
      %v4618 = vpop.f32.mrb[0].mxu0
      %4619 = vmatprep.mubr.f32.mxu0 0.0
      %4620 = vmatmul.mubr.f32.gmra.mrb[0].mxu0 %v4406
      %v4621 = vpop.f32.mrb[0].mxu0
      %v4622 = vadd.f32 0.0, %v4621
      %v4623 = vpop.f32.mrb[0].mxu0
      %4624 = vmatprep.mubr.f32.mxu0 0.0
      %4625 = vmatmul.mubr.f32.gmra.mrb[0].mxu0 %v4409
      %v4626 = vpop.f32.mrb[0].mxu0
      %v4627 = vadd.f32 0.0, %v4626
      %v4628 = vpop.f32.mrb[0].mxu0
      %4629 = vmatprep.mubr.f32.mxu0 0.0
      %4630 = vmatmul.mubr.f32.gmra.mrb[0].mxu0 %v4412
      %v4631 = vpop.f32.mrb[0].mxu0
      %v4632 = vadd.f32 0.0, %v4631
      %v4633 = vpop.f32.mrb[0].mxu0
      %4634 = vmatprep.mubr.f32.mxu0 0.0
      %4635 = vmatmul.mubr.f32.gmra.mrb[0].mxu0 %v4415
      %v4636 = vpop.f32.mrb[0].mxu0
      %v4637 = vadd.f32 0.0, %v4636
      %v4638 = vpop.f32.mrb[0].mxu0
      %4639 = vmatprep.mubr.f32.mxu0 0.0
      %4640 = vmatmul.mubr.f32.gmra.mrb[0].mxu0 %v4418
      %v4641 = vpop.f32.mrb[0].mxu0
      %v4642 = vadd.f32 0.0, %v4641
      %v4643 = vpop.f32.mrb[0].mxu0
      %4644 = vdwg.mxu0
      %v4645 = vsel %vm374, %v4487, 0.0
      %v4646 = vsel %vm374, %v4492, 0.0
      %v4647 = vadd.f32 %v4645, %v4646
      %v4648 = vrot.slane %v4647, 4
      %v4649 = vadd.f32 %v4647, %v4648
      %v4650 = vrot.slane %v4649, 2
      %v4651 = vadd.f32 %v4649, %v4650
      %v4652 = vrot.slane %v4651, 1
      %v4653 = vadd.f32 %v4651, %v4652
      %v4654 = vsel %vm374, %v4497, 0.0
      %v4655 = vsel %vm374, %v4502, 0.0
      %v4656 = vadd.f32 %v4654, %v4655
      %v4657 = vrot.slane %v4656, 4
      %v4658 = vadd.f32 %v4656, %v4657
      %v4659 = vrot.slane %v4658, 2
      %v4660 = vadd.f32 %v4658, %v4659
      %v4661 = vrot.slane %v4660, 1
      %v4662 = vadd.f32 %v4660, %v4661
      %v4663 = vsel %vm374, %v4507, 0.0
      %v4664 = vsel %vm374, %v4512, 0.0
      %v4665 = vadd.f32 %v4663, %v4664
      %v4666 = vrot.slane %v4665, 4
      %v4667 = vadd.f32 %v4665, %v4666
      %v4668 = vrot.slane %v4667, 2
      %v4669 = vadd.f32 %v4667, %v4668
      %v4670 = vrot.slane %v4669, 1
      %v4671 = vadd.f32 %v4669, %v4670
      %v4672 = vsel %vm374, %v4517, 0.0
      %v4673 = vsel %vm374, %v4522, 0.0
      %v4674 = vadd.f32 %v4672, %v4673
      %v4675 = vrot.slane %v4674, 4
      %v4676 = vadd.f32 %v4674, %v4675
      %v4677 = vrot.slane %v4676, 2
      %v4678 = vadd.f32 %v4676, %v4677
      %v4679 = vrot.slane %v4678, 1
      %v4680 = vadd.f32 %v4678, %v4679
      %v4681 = vsel %vm374, %v4527, 0.0
      %v4682 = vsel %vm374, %v4532, 0.0
      %v4683 = vadd.f32 %v4681, %v4682
      %v4684 = vrot.slane %v4683, 4
      %v4685 = vadd.f32 %v4683, %v4684
      %v4686 = vrot.slane %v4685, 2
      %v4687 = vadd.f32 %v4685, %v4686
      %v4688 = vrot.slane %v4687, 1
      %v4689 = vadd.f32 %v4687, %v4688
      %v4690 = vsel %vm374, %v4537, 0.0
      %v4691 = vsel %vm374, %v4542, 0.0
      %v4692 = vadd.f32 %v4690, %v4691
      %v4693 = vrot.slane %v4692, 4
      %v4694 = vadd.f32 %v4692, %v4693
      %v4695 = vrot.slane %v4694, 2
      %v4696 = vadd.f32 %v4694, %v4695
      %v4697 = vrot.slane %v4696, 1
      %v4698 = vadd.f32 %v4696, %v4697
      %v4699 = vsel %vm374, %v4547, 0.0
      %v4700 = vsel %vm374, %v4552, 0.0
      %v4701 = vadd.f32 %v4699, %v4700
      %v4702 = vrot.slane %v4701, 4
      %v4703 = vadd.f32 %v4701, %v4702
      %v4704 = vrot.slane %v4703, 2
      %v4705 = vadd.f32 %v4703, %v4704
      %v4706 = vrot.slane %v4705, 1
      %v4707 = vadd.f32 %v4705, %v4706
      %v4708 = vsel %vm374, %v4557, 0.0
      %v4709 = vsel %vm374, %v4562, 0.0
      %v4710 = vadd.f32 %v4708, %v4709
      %v4711 = vrot.slane %v4710, 4
      %v4712 = vadd.f32 %v4710, %v4711
      %v4713 = vrot.slane %v4712, 2
      %v4714 = vadd.f32 %v4712, %v4713
      %v4715 = vrot.slane %v4714, 1
      %v4716 = vadd.f32 %v4714, %v4715
      %v4717 = vsel %vm374, %v4567, 0.0
      %v4718 = vsel %vm374, %v4572, 0.0
      %v4719 = vadd.f32 %v4717, %v4718
      %v4720 = vrot.slane %v4719, 4
      %v4721 = vadd.f32 %v4719, %v4720
      %v4722 = vrot.slane %v4721, 2
      %v4723 = vadd.f32 %v4721, %v4722
      %v4724 = vrot.slane %v4723, 1
      %v4725 = vadd.f32 %v4723, %v4724
      %v4726 = vsel %vm374, %v4577, 0.0
      %v4727 = vsel %vm374, %v4582, 0.0
      %v4728 = vadd.f32 %v4726, %v4727
      %v4729 = vrot.slane %v4728, 4
      %v4730 = vadd.f32 %v4728, %v4729
      %v4731 = vrot.slane %v4730, 2
      %v4732 = vadd.f32 %v4730, %v4731
      %v4733 = vrot.slane %v4732, 1
      %v4734 = vadd.f32 %v4732, %v4733
      %v4735 = vsel %vm374, %v4587, 0.0
      %v4736 = vsel %vm374, %v4592, 0.0
      %v4737 = vadd.f32 %v4735, %v4736
      %v4738 = vrot.slane %v4737, 4
      %v4739 = vadd.f32 %v4737, %v4738
      %v4740 = vrot.slane %v4739, 2
      %v4741 = vadd.f32 %v4739, %v4740
      %v4742 = vrot.slane %v4741, 1
      %v4743 = vadd.f32 %v4741, %v4742
      %v4744 = vsel %vm374, %v4597, 0.0
      %v4745 = vsel %vm374, %v4602, 0.0
      %v4746 = vadd.f32 %v4744, %v4745
      %v4747 = vrot.slane %v4746, 4
      %v4748 = vadd.f32 %v4746, %v4747
      %v4749 = vrot.slane %v4748, 2
      %v4750 = vadd.f32 %v4748, %v4749
      %v4751 = vrot.slane %v4750, 1
      %v4752 = vadd.f32 %v4750, %v4751
      %v4753 = vsel %vm374, %v4607, 0.0
      %v4754 = vsel %vm374, %v4612, 0.0
      %v4755 = vadd.f32 %v4753, %v4754
      %v4756 = vrot.slane %v4755, 4
      %v4757 = vadd.f32 %v4755, %v4756
      %v4758 = vrot.slane %v4757, 2
      %v4759 = vadd.f32 %v4757, %v4758
      %v4760 = vrot.slane %v4759, 1
      %v4761 = vadd.f32 %v4759, %v4760
      %v4762 = vsel %vm374, %v4617, 0.0
      %v4763 = vsel %vm374, %v4622, 0.0
      %v4764 = vadd.f32 %v4762, %v4763
      %v4765 = vrot.slane %v4764, 4
      %v4766 = vadd.f32 %v4764, %v4765
      %v4767 = vrot.slane %v4766, 2
      %v4768 = vadd.f32 %v4766, %v4767
      %v4769 = vrot.slane %v4768, 1
      %v4770 = vadd.f32 %v4768, %v4769
      %v4771 = vsel %vm374, %v4627, 0.0
      %v4772 = vsel %vm374, %v4632, 0.0
      %v4773 = vadd.f32 %v4771, %v4772
      %v4774 = vrot.slane %v4773, 4
      %v4775 = vadd.f32 %v4773, %v4774
      %v4776 = vrot.slane %v4775, 2
      %v4777 = vadd.f32 %v4775, %v4776
      %v4778 = vrot.slane %v4777, 1
      %v4779 = vadd.f32 %v4777, %v4778
      %v4780 = vsel %vm374, %v4637, 0.0
      %v4781 = vsel %vm374, %v4642, 0.0
      %v4782 = vadd.f32 %v4780, %v4781
      %v4783 = vrot.slane %v4782, 4
      %v4784 = vadd.f32 %v4782, %v4783
      %v4785 = vrot.slane %v4784, 2
      %v4786 = vadd.f32 %v4784, %v4785
      %v4787 = vrot.slane %v4786, 1
      %v4788 = vadd.f32 %v4786, %v4787
      %v4789 = vrcp.pop 16.0
      %v4790 = vmul.f32 %v4653, %v4789
      %v4791 = vmul.f32 %v4662, %v4789
      %v4792 = vmul.f32 %v4671, %v4789
      %v4793 = vmul.f32 %v4680, %v4789
      %v4794 = vmul.f32 %v4689, %v4789
      %v4795 = vmul.f32 %v4698, %v4789
      %v4796 = vmul.f32 %v4707, %v4789
      %v4797 = vmul.f32 %v4716, %v4789
      %v4798 = vmul.f32 %v4725, %v4789
      %v4799 = vmul.f32 %v4734, %v4789
      %v4800 = vmul.f32 %v4743, %v4789
      %v4801 = vmul.f32 %v4752, %v4789
      %v4802 = vmul.f32 %v4761, %v4789
      %v4803 = vmul.f32 %v4770, %v4789
      %v4804 = vmul.f32 %v4779, %v4789
      %v4805 = vmul.f32 %v4788, %v4789
      %v4806 = vld [vmem:[%s6] sm:$0x1]
      %v4808 = vlaneseq
      %v4809 = vshrl.u32 %v4808, 7
      %v4810 = vsub.s32 0, %v4809
      %v4811 = vrot.slane %v4806, %v4810
      %v4813 = vadd.f32 %v4790, %v4811
      %v4814 = vadd.f32 %v4791, %v4811
      %v4815 = vadd.f32 %v4792, %v4811
      %v4816 = vadd.f32 %v4793, %v4811
      %v4817 = vadd.f32 %v4794, %v4811
      %v4818 = vadd.f32 %v4795, %v4811
      %v4819 = vadd.f32 %v4796, %v4811
      %v4820 = vadd.f32 %v4797, %v4811
      %v4821 = vadd.f32 %v4798, %v4811
      %v4822 = vadd.f32 %v4799, %v4811
      %v4823 = vadd.f32 %v4800, %v4811
      %v4824 = vadd.f32 %v4801, %v4811
      %v4825 = vadd.f32 %v4802, %v4811
      %v4826 = vadd.f32 %v4803, %v4811
      %v4827 = vadd.f32 %v4804, %v4811
      %v4828 = vadd.f32 %v4805, %v4811
      %v4845 = vrot.slane %v4814, 7
      %vm4846 = vcmask 1041409
      %v4847 = vsel %vm4846, %v4845, %v4813
      %v4848 = vrot.slane %v4815, 6
      %vm4849 = vcmask 1042434
      %v4850 = vsel %vm4849, %v4848, %v4847
      %v4851 = vrot.slane %v4816, 5
      %vm4852 = vcmask 1043459
      %v4853 = vsel %vm4852, %v4851, %v4850
      %v4854 = vrot.slane %v4817, 4
      %vm4855 = vcmask 1044484
      %v4856 = vsel %vm4855, %v4854, %v4853
      %v4857 = vrot.slane %v4818, 3
      %vm4858 = vcmask 1045509
      %v4859 = vsel %vm4858, %v4857, %v4856
      %v4860 = vrot.slane %v4819, 2
      %vm4861 = vcmask 1046534
      %v4862 = vsel %vm4861, %v4860, %v4859
      %v4863 = vrot.slane %v4820, 1
      %vm4864 = vcmask 1047559
      %v4865 = vsel %vm4864, %v4863, %v4862
      %v4866 = vrot.slane %v4822, 7
      %v4867 = vsel %vm4846, %v4866, %v4821
      %v4868 = vrot.slane %v4823, 6
      %v4869 = vsel %vm4849, %v4868, %v4867
      %v4870 = vrot.slane %v4824, 5
      %v4871 = vsel %vm4852, %v4870, %v4869
      %v4872 = vrot.slane %v4825, 4
      %v4873 = vsel %vm4855, %v4872, %v4871
      %v4874 = vrot.slane %v4826, 3
      %v4875 = vsel %vm4858, %v4874, %v4873
      %v4876 = vrot.slane %v4827, 2
      %v4877 = vsel %vm4861, %v4876, %v4875
      %v4878 = vrot.slane %v4828, 1
      %v4879 = vsel %vm4864, %v4878, %v4877
      %4882 = vst.msk [vmem:[%s283] sm:$0xff] %vm374, %v4865
      %4883 = vst.msk [vmem:[%s283 + $0x8] sm:$0xff] %vm374, %v4879
      %s4884 = smul.u32 2, %s18
      %p4885 = scmp.lt.s32.totalorder %s4884, 3
      %s4886 = scalar_select %p4885, %s4884, 3
      %s4887 = smul.addr %s4886, 8
      %s4888 = scalar_lea.vmem %s7, %s4887
      // Predicated region
      $region49: #{resnet1d_forward.1} parent=47 // pred_check
        %p4889 = pneg %p188
      $region50: #{resnet1d_forward.1} parent=47 // pred_check_branch
        %4891 = sbr.rel (%p4889) target = $region52
      $region51: #{resnet1d_forward.1} parent=47 // pred_region
        %s4892 = smul.u32 2, %s18
      $region52: #{resnet1d_forward.1} parent=47 // pred_fallthru
        _
    $region48: #{resnet1d_forward.1} parent=5 // pred_fallthru
      _
    %p4893 = scmp.le.s32.totalorder 2, %s13
    // Predicated region
    $region53: #{resnet1d_forward.1} parent=5 // pred_check
      %p4894 = pneg %p4893
    $region54: #{resnet1d_forward.1} parent=5 // pred_check_branch
      %4896 = sbr.rel (%p4894) target = $region56
    $region55: #{resnet1d_forward.1} parent=5 // pred_region
      %s4897 = ssub.s32 %s13, 2
      // Predicated region
      $region57: #{resnet1d_forward.1} parent=55 // pred_check
        %p4898 = pneg %p194
      $region58: #{resnet1d_forward.1} parent=55 // pred_check_branch
        %4900 = sbr.rel (%p4898) target = $region60
      $region59: #{resnet1d_forward.1} parent=55 // pred_region
        %s4901 = smul.u32 2, %s19
        %p4902 = scmp.lt.s32.totalorder %s4901, 3
        %s4903 = scalar_select %p4902, %s4901, 3
        %s4904 = smul.addr %s4903, 8
        %s4905 = scalar_lea.vmem %s7, %s4904
      $region60: #{resnet1d_forward.1} parent=55 // pred_fallthru
        _
    $region56: #{resnet1d_forward.1} parent=5 // pred_fallthru
      _
  $region6: #{resnet1d_forward.1} parent=0 // loop_footer
    %s17 = sadd.s32 1, %s13
  $region7: #{resnet1d_forward.1} parent=0 // loop_footer_branch
    %12 = sbr.rel target = $region3
  $region8: #{resnet1d_forward.1} parent=0 // loop_exit
    _

</llo_original>
